<compile_context>
chip_gen: v7x
topology: tpu7x:2x2x1
jax: 0.10.0
libtpu: 0.0.40
codegen_flags: <defaults>
</compile_context>

<pallas_src>
import functools

import jax
import jax.numpy as jnp
from jax.experimental import pallas as pl
from jax.experimental.pallas import tpu as pltpu

BN_EPS = 1e-5


def _round_up(x, m):
    return (x + m - 1) // m * m


def _make_conv_stats_kernel(kh, kw, wp, l_rows, coutp):
    """Phase 1: conv (kh*kw shifted MXU matmuls) + per-image sum / sum-of-squares."""

    def kernel(x_ref, wt_ref, b_ref, mask_ref, conv_ref, stats_ref):
        # x_ref:    (Hp*Wp + kw-1, Cinp)  padded, flattened input slab for one image
        # wt_ref:   (kh*kw, Cinp, Coutp)  resident across the whole grid
        # b_ref:    (1, Coutp)            conv bias
        # mask_ref: (L, 1)                1.0 for valid (non-wrap) output positions
        # conv_ref: (L, Coutp)            conv + bias output (L = H*Wp, incl. wrap cols)
        # stats_ref:(2, Coutp)            row0 = sum, row1 = sum of squares (valid only)
        acc = jnp.zeros((l_rows, coutp), jnp.float32)
        for ki in range(kh):
            for kj in range(kw):
                s = ki * wp + kj                     # constant element shift per tap
                acc = acc + jnp.dot(
                    x_ref[s:s + l_rows, :], wt_ref[ki * kw + kj],
                    preferred_element_type=jnp.float32)
        y = acc + b_ref[...]
        conv_ref[...] = y.astype(conv_ref.dtype)

        # Per-image BN partial statistics (f32), wrap columns masked to zero.
        ym = y * mask_ref[...]
        s1 = jnp.sum(ym, axis=0, keepdims=True)
        s2 = jnp.sum(ym * ym, axis=0, keepdims=True)
        stats_ref[...] = jnp.concatenate([s1, s2], axis=0)

    return kernel


def _norm_relu_kernel(y_ref, scale_ref, shift_ref, o_ref):
    # Phase 2: folded BatchNorm affine + ReLU on a lane-dense (L, Coutp) tile.
    y = y_ref[...].astype(jnp.float32)
    o_ref[...] = jnp.maximum(y * scale_ref[...] + shift_ref[...], 0.0).astype(o_ref.dtype)


@functools.partial(jax.jit, static_argnames=("kernel_size", "use_bf16"))
def regular_forward(x_nchw, conv_w, conv_b, bn_gamma, bn_beta,
                    kernel_size=3, use_bf16=False):
    """Forward pass equivalent to Regular(in_ch, out_ch, kernel_size) in training mode.

    x_nchw:  (N, Cin, H, W)  float32
    conv_w:  (Cout, Cin, KH, KW), conv_b: (Cout,)
    bn_gamma, bn_beta: (Cout,)
    Returns: (N, Cout, H, W) float32
    """
    assert kernel_size % 2 == 1, "only odd kernel sizes ('same' padding) supported"
    n, cin, h, w = x_nchw.shape
    cout = conv_w.shape[0]
    kh = kw = kernel_size
    ph = kernel_size // 2
    hp, wp = h + 2 * ph, w + 2 * ph
    l_rows = h * wp                       # output rows computed per image (Wp-wide rows)
    flat_len = hp * wp + (kw - 1)         # + halo so the last tap's slice stays in bounds
    cinp = _round_up(cin, 8)              # sublane-friendly K per tap
    coutp = _round_up(cout, 128)          # lane-dense output tiles (unmasked stores)
    mm_dtype = jnp.bfloat16 if use_bf16 else jnp.float32   # matmul inputs (v6e/v7x: bf16)
    mid_dtype = jnp.bfloat16 if use_bf16 else jnp.float32  # conv intermediate in HBM

    # ---- wrapper glue (cheap): NCHW -> padded NHWC, flattened per image ----
    x_nhwc = jnp.transpose(x_nchw, (0, 2, 3, 1)).astype(jnp.float32)
    x_pad = jnp.pad(x_nhwc, ((0, 0), (ph, ph), (ph, ph), (0, cinp - cin)))
    x_flat = jnp.pad(x_pad.reshape(n, hp * wp, cinp),
                     ((0, 0), (0, kw - 1), (0, 0))).astype(mm_dtype)

    # weights (Cout, Cin, KH, KW) -> (KH*KW, Cinp, Coutp); bias -> (1, Coutp)
    wt = jnp.transpose(conv_w.astype(jnp.float32), (2, 3, 1, 0)).reshape(kh * kw, cin, cout)
    wt = jnp.pad(wt, ((0, 0), (0, cinp - cin), (0, coutp - cout))).astype(mm_dtype)
    bias = jnp.pad(conv_b.astype(jnp.float32), (0, coutp - cout)).reshape(1, coutp)

    # mask of valid (non-wrap) columns: position r has column r % Wp; valid iff < W
    col = jnp.arange(l_rows, dtype=jnp.int32) % wp
    mask = (col < w).astype(jnp.float32).reshape(l_rows, 1)

    conv_kernel = _make_conv_stats_kernel(kh, kw, wp, l_rows, coutp)

    # ---- phase 1: conv + per-image partial BN stats ----
    conv_flat, stats = pl.pallas_call(
        conv_kernel,
        out_shape=(
            jax.ShapeDtypeStruct((n, l_rows, coutp), mid_dtype),
            jax.ShapeDtypeStruct((n, 2, coutp), jnp.float32),
        ),
        grid=(n,),
        in_specs=[
            pl.BlockSpec((None, flat_len, cinp), lambda i: (i, 0, 0)),
            pl.BlockSpec((kh * kw, cinp, coutp), lambda i: (0, 0, 0)),
            pl.BlockSpec((1, coutp), lambda i: (0, 0)),
            pl.BlockSpec((l_rows, 1), lambda i: (0, 0)),
        ],
        out_specs=(
            pl.BlockSpec((None, l_rows, coutp), lambda i: (i, 0, 0)),
            pl.BlockSpec((None, 2, coutp), lambda i: (i, 0, 0)),
        ),
        compiler_params=pltpu.CompilerParams(
            dimension_semantics=("parallel",)),
    )(x_flat, wt, bias, mask)

    # ---- tiny XLA glue: global stats -> folded scale/shift ----
    m_count = float(n * h * w)
    s1 = jnp.sum(stats[:, 0, :], axis=0)
    s2 = jnp.sum(stats[:, 1, :], axis=0)
    mean = s1 / m_count
    var = jnp.maximum(s2 / m_count - mean * mean, 0.0)     # biased variance (PyTorch BN)
    gamma = jnp.pad(bn_gamma.astype(jnp.float32), (0, coutp - cout))
    beta = jnp.pad(bn_beta.astype(jnp.float32), (0, coutp - cout))
    scale_v = gamma * jax.lax.rsqrt(var + BN_EPS)
    shift_v = beta - mean * scale_v
    scale = scale_v.reshape(1, coutp)
    shift = shift_v.reshape(1, coutp)

    # ---- phase 2: normalize + ReLU ----
    out_flat = pl.pallas_call(
        _norm_relu_kernel,
        out_shape=jax.ShapeDtypeStruct((n, l_rows, coutp), jnp.float32),
        grid=(n,),
        in_specs=[
            pl.BlockSpec((None, l_rows, coutp), lambda i: (i, 0, 0)),
            pl.BlockSpec((1, coutp), lambda i: (0, 0)),
            pl.BlockSpec((1, coutp), lambda i: (0, 0)),
        ],
        out_specs=pl.BlockSpec((None, l_rows, coutp), lambda i: (i, 0, 0)),
        compiler_params=pltpu.CompilerParams(
            dimension_semantics=("parallel",)),
    )(conv_flat, scale, shift)

    # (N, L, Coutp) -> (N, H, Wp, Coutp) -> drop wrap columns / padded channels -> NCHW
    out = out_flat.reshape(n, h, wp, coutp)[:, :, :w, :cout]
    # TODO(synk): return NHWC directly (skip this transpose) if the consumer allows it.
    return jnp.transpose(out, (0, 3, 1, 2))


def _reference_forward(x_nchw, conv_w, conv_b, bn_gamma, bn_beta):
    """Pure-JAX reference (for correctness check only)."""
    y = jax.lax.conv_general_dilated(
        x_nchw, conv_w, window_strides=(1, 1), padding="SAME",
        dimension_numbers=("NCHW", "OIHW", "NCHW"),
        precision=jax.lax.Precision.HIGHEST,
    ) + conv_b.reshape(1, -1, 1, 1)
    mean = jnp.mean(y, axis=(0, 2, 3), keepdims=True)
    var = jnp.mean((y - mean) ** 2, axis=(0, 2, 3), keepdims=True)
    y = (y - mean) * jax.lax.rsqrt(var + BN_EPS)
    y = y * bn_gamma.reshape(1, -1, 1, 1) + bn_beta.reshape(1, -1, 1, 1)
    return jnp.maximum(y, 0.0)


if __name__ == "__main__":
    # Small shapes consistent with the module.
    N, CIN, COUT, H, W, KS = 2, 4, 8, 16, 16, 3

    key = jax.random.PRNGKey(0)
    kx, kw_, kb = jax.random.split(key, 3)

    x = jax.random.normal(kx, (N, CIN, H, W), dtype=jnp.float32)

    # Deterministic parameter init (PyTorch-like scales, seeded).
    fan_in = CIN * KS * KS
    bound = 1.0 / (fan_in ** 0.5)
    conv_w = jax.random.uniform(kw_, (COUT, CIN, KS, KS), jnp.float32, -bound, bound)
    conv_b = jax.random.uniform(kb, (COUT,), jnp.float32, -bound, bound)
    bn_gamma = jnp.ones((COUT,), jnp.float32)   # BatchNorm2d default weight
    bn_beta = jnp.zeros((COUT,), jnp.float32)   # BatchNorm2d default bias

    ref = jax.block_until_ready(
        _reference_forward(x, conv_w, conv_b, bn_gamma, bn_beta))

    # f32 matmul path: tight check against the HIGHEST-precision reference.
    out = jax.block_until_ready(
        regular_forward(x, conv_w, conv_b, bn_gamma, bn_beta,
                        kernel_size=KS, use_bf16=False))
    assert out.shape == (N, COUT, H, W), out.shape
    assert jnp.allclose(out, ref, atol=1e-3, rtol=1e-3), float(jnp.max(jnp.abs(out - ref)))

    # bf16 matmul / intermediate path (recommended on v6e/v7x): looser tolerance.
    out_bf16 = jax.block_until_ready(
        regular_forward(x, conv_w, conv_b, bn_gamma, bn_beta,
                        kernel_size=KS, use_bf16=True))
    assert jnp.allclose(out_bf16, ref, atol=5e-2, rtol=5e-2), \
        float(jnp.max(jnp.abs(out_bf16 - ref)))

    print("KERNEL_OK")
</pallas_src>

<mosaic_0001>
module attributes {stable_mosaic.version = 11 : i64} {
  func.func @kernel(%arg0: i32, %arg1: memref<1x326x8xf32, #tpu.memory_space<vmem>>, %arg2: memref<9x8x128xf32, #tpu.memory_space<vmem>>, %arg3: memref<1x128xf32, #tpu.memory_space<vmem>>, %arg4: memref<288x1xf32, #tpu.memory_space<vmem>>, %arg5: memref<1x288x128xf32, #tpu.memory_space<vmem>>, %arg6: memref<1x2x128xf32, #tpu.memory_space<vmem>>) attributes {dimension_semantics = [#tpu.dimension_semantics<parallel>], iteration_bounds = array<i64: 2>, scalar_prefetch = 0 : i64, scratch_operands = 0 : i64, tpu.core_type = #tpu.core_type<tc>, window_params = [{transform_indices = @transform_0, window_bounds = array<i64: 1, 326, 8>}, {pipeline_mode = #tpu.pipeline_mode<synchronous>, transform_indices = @transform_1, window_bounds = array<i64: 9, 8, 128>}, {pipeline_mode = #tpu.pipeline_mode<synchronous>, transform_indices = @transform_2, window_bounds = array<i64: 1, 128>}, {pipeline_mode = #tpu.pipeline_mode<synchronous>, transform_indices = @transform_3, window_bounds = array<i64: 288, 1>}, {transform_indices = @transform_4, window_bounds = array<i64: 1, 288, 128>}, {transform_indices = @transform_5, window_bounds = array<i64: 1, 2, 128>}]} {
    %cst = arith.constant 0.000000e+00 : f32
    %0 = vector.broadcast %cst : f32 to vector<288x128xf32>
    %c0 = arith.constant 0 : index
    %c0_0 = arith.constant 0 : index
    %c0_1 = arith.constant 0 : index
    %1 = vector.load %arg1[%c0, %c0_0, %c0_1] : memref<1x326x8xf32, #tpu.memory_space<vmem>>, vector<1x288x8xf32>
    %2 = vector.shape_cast %1 : vector<1x288x8xf32> to vector<288x8xf32>
    %c0_2 = arith.constant 0 : index
    %c0_3 = arith.constant 0 : index
    %c0_4 = arith.constant 0 : index
    %3 = vector.load %arg2[%c0_2, %c0_3, %c0_4] : memref<9x8x128xf32, #tpu.memory_space<vmem>>, vector<1x8x128xf32>
    %4 = vector.shape_cast %3 : vector<1x8x128xf32> to vector<8x128xf32>
    %cst_5 = arith.constant dense<0.000000e+00> : vector<288x128xf32>
    %5 = tpu.matmul %2, %4, %cst_5 {dimension_numbers = #tpu.dot_dimension_numbers<[1], [0], [0], [1], [0, 0, 1, 1], [], []>} : vector<288x8xf32>, vector<8x128xf32>, vector<288x128xf32> -> vector<288x128xf32>
    %6 = arith.addf %0, %5 : vector<288x128xf32>
    %c0_6 = arith.constant 0 : index
    %c1 = arith.constant 1 : index
    %c0_7 = arith.constant 0 : index
    %7 = vector.load %arg1[%c0_6, %c1, %c0_7] : memref<1x326x8xf32, #tpu.memory_space<vmem>>, vector<1x288x8xf32>
    %8 = vector.shape_cast %7 : vector<1x288x8xf32> to vector<288x8xf32>
    %c1_8 = arith.constant 1 : index
    %c0_9 = arith.constant 0 : index
    %c0_10 = arith.constant 0 : index
    %9 = vector.load %arg2[%c1_8, %c0_9, %c0_10] : memref<9x8x128xf32, #tpu.memory_space<vmem>>, vector<1x8x128xf32>
    %10 = vector.shape_cast %9 : vector<1x8x128xf32> to vector<8x128xf32>
    %cst_11 = arith.constant dense<0.000000e+00> : vector<288x128xf32>
    %11 = tpu.matmul %8, %10, %cst_11 {dimension_numbers = #tpu.dot_dimension_numbers<[1], [0], [0], [1], [0, 0, 1, 1], [], []>} : vector<288x8xf32>, vector<8x128xf32>, vector<288x128xf32> -> vector<288x128xf32>
    %12 = arith.addf %6, %11 : vector<288x128xf32>
    %c0_12 = arith.constant 0 : index
    %c2 = arith.constant 2 : index
    %c0_13 = arith.constant 0 : index
    %13 = vector.load %arg1[%c0_12, %c2, %c0_13] : memref<1x326x8xf32, #tpu.memory_space<vmem>>, vector<1x288x8xf32>
    %14 = vector.shape_cast %13 : vector<1x288x8xf32> to vector<288x8xf32>
    %c2_14 = arith.constant 2 : index
    %c0_15 = arith.constant 0 : index
    %c0_16 = arith.constant 0 : index
    %15 = vector.load %arg2[%c2_14, %c0_15, %c0_16] : memref<9x8x128xf32, #tpu.memory_space<vmem>>, vector<1x8x128xf32>
    %16 = vector.shape_cast %15 : vector<1x8x128xf32> to vector<8x128xf32>
    %cst_17 = arith.constant dense<0.000000e+00> : vector<288x128xf32>
    %17 = tpu.matmul %14, %16, %cst_17 {dimension_numbers = #tpu.dot_dimension_numbers<[1], [0], [0], [1], [0, 0, 1, 1], [], []>} : vector<288x8xf32>, vector<8x128xf32>, vector<288x128xf32> -> vector<288x128xf32>
    %18 = arith.addf %12, %17 : vector<288x128xf32>
    %c0_18 = arith.constant 0 : index
    %c18 = arith.constant 18 : index
    %c0_19 = arith.constant 0 : index
    %19 = vector.load %arg1[%c0_18, %c18, %c0_19] : memref<1x326x8xf32, #tpu.memory_space<vmem>>, vector<1x288x8xf32>
    %20 = vector.shape_cast %19 : vector<1x288x8xf32> to vector<288x8xf32>
    %c3 = arith.constant 3 : index
    %c0_20 = arith.constant 0 : index
    %c0_21 = arith.constant 0 : index
    %21 = vector.load %arg2[%c3, %c0_20, %c0_21] : memref<9x8x128xf32, #tpu.memory_space<vmem>>, vector<1x8x128xf32>
    %22 = vector.shape_cast %21 : vector<1x8x128xf32> to vector<8x128xf32>
    %cst_22 = arith.constant dense<0.000000e+00> : vector<288x128xf32>
    %23 = tpu.matmul %20, %22, %cst_22 {dimension_numbers = #tpu.dot_dimension_numbers<[1], [0], [0], [1], [0, 0, 1, 1], [], []>} : vector<288x8xf32>, vector<8x128xf32>, vector<288x128xf32> -> vector<288x128xf32>
    %24 = arith.addf %18, %23 : vector<288x128xf32>
    %c0_23 = arith.constant 0 : index
    %c19 = arith.constant 19 : index
    %c0_24 = arith.constant 0 : index
    %25 = vector.load %arg1[%c0_23, %c19, %c0_24] : memref<1x326x8xf32, #tpu.memory_space<vmem>>, vector<1x288x8xf32>
    %26 = vector.shape_cast %25 : vector<1x288x8xf32> to vector<288x8xf32>
    %c4 = arith.constant 4 : index
    %c0_25 = arith.constant 0 : index
    %c0_26 = arith.constant 0 : index
    %27 = vector.load %arg2[%c4, %c0_25, %c0_26] : memref<9x8x128xf32, #tpu.memory_space<vmem>>, vector<1x8x128xf32>
    %28 = vector.shape_cast %27 : vector<1x8x128xf32> to vector<8x128xf32>
    %cst_27 = arith.constant dense<0.000000e+00> : vector<288x128xf32>
    %29 = tpu.matmul %26, %28, %cst_27 {dimension_numbers = #tpu.dot_dimension_numbers<[1], [0], [0], [1], [0, 0, 1, 1], [], []>} : vector<288x8xf32>, vector<8x128xf32>, vector<288x128xf32> -> vector<288x128xf32>
    %30 = arith.addf %24, %29 : vector<288x128xf32>
    %c0_28 = arith.constant 0 : index
    %c20 = arith.constant 20 : index
    %c0_29 = arith.constant 0 : index
    %31 = vector.load %arg1[%c0_28, %c20, %c0_29] : memref<1x326x8xf32, #tpu.memory_space<vmem>>, vector<1x288x8xf32>
    %32 = vector.shape_cast %31 : vector<1x288x8xf32> to vector<288x8xf32>
    %c5 = arith.constant 5 : index
    %c0_30 = arith.constant 0 : index
    %c0_31 = arith.constant 0 : index
    %33 = vector.load %arg2[%c5, %c0_30, %c0_31] : memref<9x8x128xf32, #tpu.memory_space<vmem>>, vector<1x8x128xf32>
    %34 = vector.shape_cast %33 : vector<1x8x128xf32> to vector<8x128xf32>
    %cst_32 = arith.constant dense<0.000000e+00> : vector<288x128xf32>
    %35 = tpu.matmul %32, %34, %cst_32 {dimension_numbers = #tpu.dot_dimension_numbers<[1], [0], [0], [1], [0, 0, 1, 1], [], []>} : vector<288x8xf32>, vector<8x128xf32>, vector<288x128xf32> -> vector<288x128xf32>
    %36 = arith.addf %30, %35 : vector<288x128xf32>
    %c0_33 = arith.constant 0 : index
    %c36 = arith.constant 36 : index
    %c0_34 = arith.constant 0 : index
    %37 = vector.load %arg1[%c0_33, %c36, %c0_34] : memref<1x326x8xf32, #tpu.memory_space<vmem>>, vector<1x288x8xf32>
    %38 = vector.shape_cast %37 : vector<1x288x8xf32> to vector<288x8xf32>
    %c6 = arith.constant 6 : index
    %c0_35 = arith.constant 0 : index
    %c0_36 = arith.constant 0 : index
    %39 = vector.load %arg2[%c6, %c0_35, %c0_36] : memref<9x8x128xf32, #tpu.memory_space<vmem>>, vector<1x8x128xf32>
    %40 = vector.shape_cast %39 : vector<1x8x128xf32> to vector<8x128xf32>
    %cst_37 = arith.constant dense<0.000000e+00> : vector<288x128xf32>
    %41 = tpu.matmul %38, %40, %cst_37 {dimension_numbers = #tpu.dot_dimension_numbers<[1], [0], [0], [1], [0, 0, 1, 1], [], []>} : vector<288x8xf32>, vector<8x128xf32>, vector<288x128xf32> -> vector<288x128xf32>
    %42 = arith.addf %36, %41 : vector<288x128xf32>
    %c0_38 = arith.constant 0 : index
    %c37 = arith.constant 37 : index
    %c0_39 = arith.constant 0 : index
    %43 = vector.load %arg1[%c0_38, %c37, %c0_39] : memref<1x326x8xf32, #tpu.memory_space<vmem>>, vector<1x288x8xf32>
    %44 = vector.shape_cast %43 : vector<1x288x8xf32> to vector<288x8xf32>
    %c7 = arith.constant 7 : index
    %c0_40 = arith.constant 0 : index
    %c0_41 = arith.constant 0 : index
    %45 = vector.load %arg2[%c7, %c0_40, %c0_41] : memref<9x8x128xf32, #tpu.memory_space<vmem>>, vector<1x8x128xf32>
    %46 = vector.shape_cast %45 : vector<1x8x128xf32> to vector<8x128xf32>
    %cst_42 = arith.constant dense<0.000000e+00> : vector<288x128xf32>
    %47 = tpu.matmul %44, %46, %cst_42 {dimension_numbers = #tpu.dot_dimension_numbers<[1], [0], [0], [1], [0, 0, 1, 1], [], []>} : vector<288x8xf32>, vector<8x128xf32>, vector<288x128xf32> -> vector<288x128xf32>
    %48 = arith.addf %42, %47 : vector<288x128xf32>
    %c0_43 = arith.constant 0 : index
    %c38 = arith.constant 38 : index
    %c0_44 = arith.constant 0 : index
    %49 = vector.load %arg1[%c0_43, %c38, %c0_44] : memref<1x326x8xf32, #tpu.memory_space<vmem>>, vector<1x288x8xf32>
    %50 = vector.shape_cast %49 : vector<1x288x8xf32> to vector<288x8xf32>
    %c8 = arith.constant 8 : index
    %c0_45 = arith.constant 0 : index
    %c0_46 = arith.constant 0 : index
    %51 = vector.load %arg2[%c8, %c0_45, %c0_46] : memref<9x8x128xf32, #tpu.memory_space<vmem>>, vector<1x8x128xf32>
    %52 = vector.shape_cast %51 : vector<1x8x128xf32> to vector<8x128xf32>
    %cst_47 = arith.constant dense<0.000000e+00> : vector<288x128xf32>
    %53 = tpu.matmul %50, %52, %cst_47 {dimension_numbers = #tpu.dot_dimension_numbers<[1], [0], [0], [1], [0, 0, 1, 1], [], []>} : vector<288x8xf32>, vector<8x128xf32>, vector<288x128xf32> -> vector<288x128xf32>
    %54 = arith.addf %48, %53 : vector<288x128xf32>
    %c0_48 = arith.constant 0 : index
    %c0_49 = arith.constant 0 : index
    %55 = vector.load %arg3[%c0_48, %c0_49] : memref<1x128xf32, #tpu.memory_space<vmem>>, vector<1x128xf32>
    %56 = vector.broadcast %55 : vector<1x128xf32> to vector<288x128xf32>
    %57 = arith.addf %54, %56 : vector<288x128xf32>
    %c0_50 = arith.constant 0 : index
    %c0_51 = arith.constant 0 : index
    %c0_52 = arith.constant 0 : index
    %58 = vector.load %arg5[%c0_50, %c0_51, %c0_52] : memref<1x288x128xf32, #tpu.memory_space<vmem>>, vector<1x288x128xf32>
    %59 = vector.shape_cast %58 : vector<1x288x128xf32> to vector<288x128xf32>
    %60 = vector.shape_cast %57 : vector<288x128xf32> to vector<1x288x128xf32>
    tpu.vector_store %arg5[%c0_50, %c0_51, %c0_52], %60 {strides = array<i32>} : memref<1x288x128xf32, #tpu.memory_space<vmem>>, vector<1x288x128xf32>,
    %c0_53 = arith.constant 0 : index
    %c0_54 = arith.constant 0 : index
    %61 = vector.load %arg4[%c0_53, %c0_54] : memref<288x1xf32, #tpu.memory_space<vmem>>, vector<288x1xf32>
    %62 = vector.broadcast %61 : vector<288x1xf32> to vector<288x128xf32>
    %63 = arith.mulf %57, %62 : vector<288x128xf32>
    %cst_55 = arith.constant dense<0.000000e+00> : vector<128xf32>
    %64 = vector.multi_reduction <add>, %63, %cst_55 [0] : vector<288x128xf32> to vector<128xf32>
    %65 = vector.shape_cast %64 : vector<128xf32> to vector<1x128xf32>
    %66 = arith.mulf %63, %63 : vector<288x128xf32>
    %cst_56 = arith.constant dense<0.000000e+00> : vector<128xf32>
    %67 = vector.multi_reduction <add>, %66, %cst_56 [0] : vector<288x128xf32> to vector<128xf32>
    %68 = vector.shape_cast %67 : vector<128xf32> to vector<1x128xf32>
    %69 = tpu.concatenate %65, %68 in 0 : vector<1x128xf32>, vector<1x128xf32> -> vector<2x128xf32>
    %c0_57 = arith.constant 0 : index
    %c0_58 = arith.constant 0 : index
    %c0_59 = arith.constant 0 : index
    %70 = vector.load %arg6[%c0_57, %c0_58, %c0_59] : memref<1x2x128xf32, #tpu.memory_space<vmem>>, vector<1x2x128xf32>
    %71 = vector.shape_cast %70 : vector<1x2x128xf32> to vector<2x128xf32>
    %72 = vector.shape_cast %69 : vector<2x128xf32> to vector<1x2x128xf32>
    tpu.vector_store %arg6[%c0_57, %c0_58, %c0_59], %72 {strides = array<i32>} : memref<1x2x128xf32, #tpu.memory_space<vmem>>, vector<1x2x128xf32>,
    return
  }
  func.func @transform_0(%arg0: i32) -> (i32, i32, i32) {
    %c0_i32 = arith.constant 0 : i32
    %c0_i32_0 = arith.constant 0 : i32
    %c0_i32_1 = arith.constant 0 : i32
    return %arg0, %c0_i32, %c0_i32_0 : i32, i32, i32
  }
  func.func @transform_1(%arg0: i32) -> (i32, i32, i32) {
    %c0_i32 = arith.constant 0 : i32
    %c0_i32_0 = arith.constant 0 : i32
    %c0_i32_1 = arith.constant 0 : i32
    %c0_i32_2 = arith.constant 0 : i32
    return %c0_i32, %c0_i32_0, %c0_i32_1 : i32, i32, i32
  }
  func.func @transform_2(%arg0: i32) -> (i32, i32) {
    %c0_i32 = arith.constant 0 : i32
    %c0_i32_0 = arith.constant 0 : i32
    %c0_i32_1 = arith.constant 0 : i32
    return %c0_i32, %c0_i32_0 : i32, i32
  }
  func.func @transform_3(%arg0: i32) -> (i32, i32) {
    %c0_i32 = arith.constant 0 : i32
    %c0_i32_0 = arith.constant 0 : i32
    %c0_i32_1 = arith.constant 0 : i32
    return %c0_i32, %c0_i32_0 : i32, i32
  }
  func.func @transform_4(%arg0: i32) -> (i32, i32, i32) {
    %c0_i32 = arith.constant 0 : i32
    %c0_i32_0 = arith.constant 0 : i32
    %c0_i32_1 = arith.constant 0 : i32
    return %arg0, %c0_i32, %c0_i32_0 : i32, i32, i32
  }
  func.func @transform_5(%arg0: i32) -> (i32, i32, i32) {
    %c0_i32 = arith.constant 0 : i32
    %c0_i32_0 = arith.constant 0 : i32
    %c0_i32_1 = arith.constant 0 : i32
    return %arg0, %c0_i32, %c0_i32_0 : i32, i32, i32
  }
}

module attributes {stable_mosaic.version = 11 : i64} {
  func.func @_norm_relu_kernel(%arg0: i32, %arg1: memref<1x288x128xf32, #tpu.memory_space<vmem>>, %arg2: memref<1x128xf32, #tpu.memory_space<vmem>>, %arg3: memref<1x128xf32, #tpu.memory_space<vmem>>, %arg4: memref<1x288x128xf32, #tpu.memory_space<vmem>>) attributes {dimension_semantics = [#tpu.dimension_semantics<parallel>], iteration_bounds = array<i64: 2>, scalar_prefetch = 0 : i64, scratch_operands = 0 : i64, tpu.core_type = #tpu.core_type<tc>, window_params = [{transform_indices = @transform_0, window_bounds = array<i64: 1, 288, 128>}, {pipeline_mode = #tpu.pipeline_mode<synchronous>, transform_indices = @transform_1, window_bounds = array<i64: 1, 128>}, {pipeline_mode = #tpu.pipeline_mode<synchronous>, transform_indices = @transform_2, window_bounds = array<i64: 1, 128>}, {transform_indices = @transform_3, window_bounds = array<i64: 1, 288, 128>}]} {
    %c0 = arith.constant 0 : index
    %c0_0 = arith.constant 0 : index
    %c0_1 = arith.constant 0 : index
    %0 = vector.load %arg1[%c0, %c0_0, %c0_1] : memref<1x288x128xf32, #tpu.memory_space<vmem>>, vector<1x288x128xf32>
    %1 = vector.shape_cast %0 : vector<1x288x128xf32> to vector<288x128xf32>
    %c0_2 = arith.constant 0 : index
    %c0_3 = arith.constant 0 : index
    %2 = vector.load %arg2[%c0_2, %c0_3] : memref<1x128xf32, #tpu.memory_space<vmem>>, vector<1x128xf32>
    %3 = vector.broadcast %2 : vector<1x128xf32> to vector<288x128xf32>
    %4 = arith.mulf %1, %3 : vector<288x128xf32>
    %c0_4 = arith.constant 0 : index
    %c0_5 = arith.constant 0 : index
    %5 = vector.load %arg3[%c0_4, %c0_5] : memref<1x128xf32, #tpu.memory_space<vmem>>, vector<1x128xf32>
    %6 = vector.broadcast %5 : vector<1x128xf32> to vector<288x128xf32>
    %7 = arith.addf %4, %6 : vector<288x128xf32>
    %cst = arith.constant 0.000000e+00 : f32
    %8 = vector.broadcast %cst : f32 to vector<288x128xf32>
    %9 = arith.maximumf %7, %8 : vector<288x128xf32>
    %c0_6 = arith.constant 0 : index
    %c0_7 = arith.constant 0 : index
    %c0_8 = arith.constant 0 : index
    %10 = vector.load %arg4[%c0_6, %c0_7, %c0_8] : memref<1x288x128xf32, #tpu.memory_space<vmem>>, vector<1x288x128xf32>
    %11 = vector.shape_cast %10 : vector<1x288x128xf32> to vector<288x128xf32>
    %12 = vector.shape_cast %9 : vector<288x128xf32> to vector<1x288x128xf32>
    tpu.vector_store %arg4[%c0_6, %c0_7, %c0_8], %12 {strides = array<i32>} : memref<1x288x128xf32, #tpu.memory_space<vmem>>, vector<1x288x128xf32>,
    return
  }
  func.func @transform_0(%arg0: i32) -> (i32, i32, i32) {
    %c0_i32 = arith.constant 0 : i32
    %c0_i32_0 = arith.constant 0 : i32
    %c0_i32_1 = arith.constant 0 : i32
    return %arg0, %c0_i32, %c0_i32_0 : i32, i32, i32
  }
  func.func @transform_1(%arg0: i32) -> (i32, i32) {
    %c0_i32 = arith.constant 0 : i32
    %c0_i32_0 = arith.constant 0 : i32
    %c0_i32_1 = arith.constant 0 : i32
    return %c0_i32, %c0_i32_0 : i32, i32
  }
  func.func @transform_2(%arg0: i32) -> (i32, i32) {
    %c0_i32 = arith.constant 0 : i32
    %c0_i32_0 = arith.constant 0 : i32
    %c0_i32_1 = arith.constant 0 : i32
    return %c0_i32, %c0_i32_0 : i32, i32
  }
  func.func @transform_3(%arg0: i32) -> (i32, i32, i32) {
    %c0_i32 = arith.constant 0 : i32
    %c0_i32_0 = arith.constant 0 : i32
    %c0_i32_1 = arith.constant 0 : i32
    return %arg0, %c0_i32, %c0_i32_0 : i32, i32, i32
  }
}

</mosaic_0001>

<llo_original>
// kernel: regular_forward.3
$region0: #{regular_forward.3}
  #allocation0 [shape = 'u32[]', space=smem, size = 0x4, offset = 0x4, fixed_abs, tag = 'smem constant byte address 0x4 - core index']
  #allocation1 [shape = 'u32[144,128]{1,0:T(1,128)}', space=vmem, size = 0x12000, scoped, tag = 'internal scratch']
  %s0 = inlined_call_operand.vmem [shape: f32[2,288,128], index: 0, kind: input, shape index: {}]
  %s1 = inlined_call_operand.vmem [shape: f32[1,128], index: 1, kind: input, shape index: {}]
  %s2 = inlined_call_operand.vmem [shape: f32[1,128], index: 2, kind: input, shape index: {}]
  %s3 = inlined_call_operand.vmem [shape: f32[2,288,128], index: 3, kind: output, shape index: {}]
  %s4 = sld [smem:[#allocation0]]
  $region45: #{regular_forward.3} parent=0
    _
  %s6 = ssub.s32 1, %s4
  %s7 = scalar_select 0, %s6, %s4
  loop: start=0, step=1, limit=4
  $region2: #{regular_forward.3} parent=0 // loop_pre_header
    _
  $region3: #{regular_forward.3} parent=0 // loop_header
    %s9 = sphi 0, %s13
    %p10 = scmp.ge.s32.totalorder %s9, 4
    %s19 = sphi 0, %s21
    %s22 = sphi 0, %s19
    %s23 = sphi 0, %s22
    %s39 = sphi 0, %s23
    %s43 = sphi 0, %s43
    %s45 = sphi 0, %s43
    %s46 = sphi 0, %s45
    %s60 = sphi 0, %s46
    %s64 = sphi 0, %s64
    %s66 = sphi 0, %s64
    %s67 = sphi 0, %s66
    %s81 = sphi 0, %s67
    %s87 = sphi 0, %s89
    %s90 = sphi 0, %s87
    %s91 = sphi 0, %s90
    %s107 = sphi 0, %s91
  $region4: #{regular_forward.3} parent=0 // loop_header_branch
    %12 = sbr.rel (%p10) target = $region8
  $region5: #{regular_forward.3} parent=0 // loop_body
    %s14 = ssub.s32 %s9, 1
    %s15 = ssub.s32 %s9, 2
    %s16 = sadd.s32 %s9, 1
    %s17 = ssub.s32 %s9, %s16
    %p18 = scmp.eq.s32.totalorder %s17, 0
    %s20 = sadd.s32 %s19, 1
    %s21 = scalar_select %p18, %s19, %s20
    %p24 = pneg %p18
    %p25 = scmp.eq.s32.totalorder %s9, 1
    %p26 = por %p24, %p25
    %p27 = scmp.ne.s32.totalorder %s19, %s22
    %p28 = scmp.eq.s32.totalorder %s9, 0
    %p29 = por %p27, %p28
    %p30 = scmp.ne.s32.totalorder %s19, %s22
    %p31 = scmp.eq.s32.totalorder %s14, 1
    %p32 = por %p30, %p31
    %p33 = scmp.ne.s32.totalorder %s22, %s23
    %p34 = scmp.eq.s32.totalorder %s14, 0
    %p35 = por %p33, %p34
    %p36 = scmp.ne.s32.totalorder %s22, %s23
    %p37 = scmp.eq.s32.totalorder %s15, 1
    %p38 = por %p36, %p37
    %p40 = scmp.ne.s32.totalorder %s23, %s39
    %p41 = scmp.eq.s32.totalorder %s15, 0
    %p42 = por %p40, %p41
    %s44 = sadd.s32 %s43, 1
    %p47 = scmp.eq.s32.totalorder %s9, 1
    %p48 = scmp.ne.s32.totalorder %s43, %s45
    %p49 = scmp.eq.s32.totalorder %s9, 0
    %p50 = por %p48, %p49
    %p51 = scmp.ne.s32.totalorder %s43, %s45
    %p52 = scmp.eq.s32.totalorder %s14, 1
    %p53 = por %p51, %p52
    %p54 = scmp.ne.s32.totalorder %s45, %s46
    %p55 = scmp.eq.s32.totalorder %s14, 0
    %p56 = por %p54, %p55
    %p57 = scmp.ne.s32.totalorder %s45, %s46
    %p58 = scmp.eq.s32.totalorder %s15, 1
    %p59 = por %p57, %p58
    %p61 = scmp.ne.s32.totalorder %s46, %s60
    %p62 = scmp.eq.s32.totalorder %s15, 0
    %p63 = por %p61, %p62
    %s65 = sadd.s32 %s64, 1
    %p68 = scmp.eq.s32.totalorder %s9, 1
    %p69 = scmp.ne.s32.totalorder %s64, %s66
    %p70 = scmp.eq.s32.totalorder %s9, 0
    %p71 = por %p69, %p70
    %p72 = scmp.ne.s32.totalorder %s64, %s66
    %p73 = scmp.eq.s32.totalorder %s14, 1
    %p74 = por %p72, %p73
    %p75 = scmp.ne.s32.totalorder %s66, %s67
    %p76 = scmp.eq.s32.totalorder %s14, 0
    %p77 = por %p75, %p76
    %p78 = scmp.ne.s32.totalorder %s66, %s67
    %p79 = scmp.eq.s32.totalorder %s15, 1
    %p80 = por %p78, %p79
    %p82 = scmp.ne.s32.totalorder %s67, %s81
    %p83 = scmp.eq.s32.totalorder %s15, 0
    %p84 = por %p82, %p83
    %s85 = ssub.s32 %s9, %s16
    %p86 = scmp.eq.s32.totalorder %s85, 0
    %s88 = sadd.s32 %s87, 1
    %s89 = scalar_select %p86, %s87, %s88
    %p92 = pneg %p86
    %p93 = scmp.eq.s32.totalorder %s9, 1
    %p94 = por %p92, %p93
    %p95 = scmp.ne.s32.totalorder %s87, %s90
    %p96 = scmp.eq.s32.totalorder %s9, 0
    %p97 = por %p95, %p96
    %p98 = scmp.ne.s32.totalorder %s87, %s90
    %p99 = scmp.eq.s32.totalorder %s14, 1
    %p100 = por %p98, %p99
    %p101 = scmp.ne.s32.totalorder %s90, %s91
    %p102 = scmp.eq.s32.totalorder %s14, 0
    %p103 = por %p101, %p102
    %p104 = scmp.ne.s32.totalorder %s90, %s91
    %p105 = scmp.eq.s32.totalorder %s15, 1
    %p106 = por %p104, %p105
    %p108 = scmp.ne.s32.totalorder %s91, %s107
    %p109 = scmp.eq.s32.totalorder %s15, 0
    %p110 = por %p108, %p109
    %p111 = scmp.le.s32.totalorder 1, %s9
    %p112 = scmp.lt.s32.totalorder %s9, 3
    %p113 = pnand %p111, %p112
    %p114 = pneg %p113
    // Predicated region
    $region9: #{regular_forward.3} parent=5 // pred_check
      _
    $region10: #{regular_forward.3} parent=5 // pred_check_branch
      %116 = sbr.rel (%p113) target = $region12
    $region11: #{regular_forward.3} parent=5 // pred_region
      %s117 = ssub.s32 %s9, 1
      // Predicated region
      $region13: #{regular_forward.3} parent=11 // pred_check
        %p118 = pneg %p56
      $region14: #{regular_forward.3} parent=11 // pred_check_branch
        %120 = sbr.rel (%p118) target = $region16
      $region15: #{regular_forward.3} parent=11 // pred_region
        _
      $region16: #{regular_forward.3} parent=11 // pred_fallthru
        _
      // Predicated region
      $region17: #{regular_forward.3} parent=11 // pred_check
        %p121 = pneg %p77
      $region18: #{regular_forward.3} parent=11 // pred_check_branch
        %123 = sbr.rel (%p121) target = $region20
      $region19: #{regular_forward.3} parent=11 // pred_region
        _
      $region20: #{regular_forward.3} parent=11 // pred_fallthru
        _
    $region12: #{regular_forward.3} parent=5 // pred_fallthru
      _
    %p124 = scmp.lt.s32.totalorder %s9, 2
    // Predicated region
    $region21: #{regular_forward.3} parent=5 // pred_check
      %p125 = pneg %p124
    $region22: #{regular_forward.3} parent=5 // pred_check_branch
      %127 = sbr.rel (%p125) target = $region24
    $region23: #{regular_forward.3} parent=5 // pred_region
      // Predicated region
      $region25: #{regular_forward.3} parent=23 // pred_check
        %p128 = pneg %p29
      $region26: #{regular_forward.3} parent=23 // pred_check_branch
        %130 = sbr.rel (%p128) target = $region28
      $region27: #{regular_forward.3} parent=23 // pred_region
        %p131 = scmp.lt.s32.totalorder %s9, 1
        %s132 = scalar_select %p131, %s9, 1
        %s133 = smul.addr %s132, 36
        %s134 = smul.addr %s133, 8
        %s135 = scalar_lea.vmem %s0, %s134
      $region28: #{regular_forward.3} parent=23 // pred_fallthru
        _
    $region24: #{regular_forward.3} parent=5 // pred_fallthru
      _
    %p136 = scmp.le.s32.totalorder 1, %s9
    %p137 = scmp.lt.s32.totalorder %s9, 3
    %p138 = pnand %p136, %p137
    %p139 = pneg %p138
    // Predicated region
    $region29: #{regular_forward.3} parent=5 // pred_check
      _
    $region30: #{regular_forward.3} parent=5 // pred_check_branch
      %141 = sbr.rel (%p138) target = $region32
    $region31: #{regular_forward.3} parent=5 // pred_region
      %s142 = ssub.s32 %s9, 1
      %p143 = scmp.lt.s32.totalorder %s14, 1
      %s144 = scalar_select %p143, %s14, 1
      %s145 = smul.addr %s144, 36
      %s146 = smul.addr %s145, 8
      %s147 = scalar_lea.vmem %s0, %s146
      %p148 = pneg %p35
      %p149 = pneg %p32
      %p150 = pneg %p56
      %p151 = pneg %p53
      %p152 = pneg %p77
      %p153 = pneg %p74
      %p154 = pneg %p103
      %p155 = pneg %p100
      %p156 = scmp.lt.s32.totalorder %s14, 1
      %s157 = scalar_select %p156, %s14, 1
      %s158 = smul.addr %s157, 36
      %s159 = smul.addr %s158, 8
      %s160 = scalar_lea.vmem %s3, %s159
      %p161 = scmp.lt.s32.totalorder %s14, 1
      %s162 = scalar_select %p161, %s14, 1
      %s163 = smul.addr %s162, 36
      %s164 = smul.addr %s163, 8
      %s165 = scalar_lea.vmem %s0, %s164
      %p166 = scmp.lt.s32.totalorder %s14, 1
      %s167 = scalar_select %p166, %s14, 1
      %s168 = smul.addr %s167, 36
      %s169 = smul.addr %s168, 8
      %s170 = scalar_lea.vmem %s3, %s169
      %v171 = vld [vmem:[%s165] sm:$0xff]
      %v172 = vld [vmem:[%s165 + $0x8] sm:$0xff]
      %v173 = vld [vmem:[%s165 + $0x10] sm:$0xff]
      %v174 = vld [vmem:[%s165 + $0x18] sm:$0xff]
      %v175 = vld [vmem:[%s165 + $0x20] sm:$0xff]
      %v176 = vld [vmem:[%s165 + $0x28] sm:$0xff]
      %v177 = vld [vmem:[%s165 + $0x30] sm:$0xff]
      %v178 = vld [vmem:[%s165 + $0x38] sm:$0xff]
      %v179 = vld [vmem:[%s165 + $0x40] sm:$0xff]
      %v180 = vld [vmem:[%s165 + $0x48] sm:$0xff]
      %v181 = vld [vmem:[%s165 + $0x50] sm:$0xff]
      %v182 = vld [vmem:[%s165 + $0x58] sm:$0xff]
      %v183 = vld [vmem:[%s165 + $0x60] sm:$0xff]
      %v184 = vld [vmem:[%s165 + $0x68] sm:$0xff]
      %v185 = vld [vmem:[%s165 + $0x70] sm:$0xff]
      %v186 = vld [vmem:[%s165 + $0x78] sm:$0xff]
      %v187 = vld [vmem:[%s165 + $0x80] sm:$0xff]
      %v188 = vld [vmem:[%s165 + $0x88] sm:$0xff]
      %v189 = vld [vmem:[%s165 + $0x90] sm:$0xff]
      %v190 = vld [vmem:[%s165 + $0x98] sm:$0xff]
      %v191 = vld [vmem:[%s165 + $0xa0] sm:$0xff]
      %v192 = vld [vmem:[%s165 + $0xa8] sm:$0xff]
      %v193 = vld [vmem:[%s165 + $0xb0] sm:$0xff]
      %v194 = vld [vmem:[%s165 + $0xb8] sm:$0xff]
      %v195 = vld [vmem:[%s165 + $0xc0] sm:$0xff]
      %v196 = vld [vmem:[%s165 + $0xc8] sm:$0xff]
      %v197 = vld [vmem:[%s165 + $0xd0] sm:$0xff]
      %v198 = vld [vmem:[%s165 + $0xd8] sm:$0xff]
      %v199 = vld [vmem:[%s165 + $0xe0] sm:$0xff]
      %v200 = vld [vmem:[%s165 + $0xe8] sm:$0xff]
      %v201 = vld [vmem:[%s165 + $0xf0] sm:$0xff]
      %v202 = vld [vmem:[%s165 + $0xf8] sm:$0xff]
      %v203 = vld [vmem:[%s165 + $0x100] sm:$0xff]
      %v204 = vld [vmem:[%s165 + $0x108] sm:$0xff]
      %v205 = vld [vmem:[%s165 + $0x110] sm:$0xff]
      %v206 = vld [vmem:[%s165 + $0x118] sm:$0xff]
      %v207 = vld [vmem:[%s1] sm:$0x1]
      %v209 = vlaneseq
      %v210 = vshrl.u32 %v209, 7
      %v211 = vsub.s32 0, %v210
      %v212 = vrot.slane %v207, %v211
      %v214 = vmul.f32 %v171, %v212
      %v215 = vmul.f32 %v172, %v212
      %v216 = vmul.f32 %v173, %v212
      %v217 = vmul.f32 %v174, %v212
      %v218 = vmul.f32 %v175, %v212
      %v219 = vmul.f32 %v176, %v212
      %v220 = vmul.f32 %v177, %v212
      %v221 = vmul.f32 %v178, %v212
      %v222 = vmul.f32 %v179, %v212
      %v223 = vmul.f32 %v180, %v212
      %v224 = vmul.f32 %v181, %v212
      %v225 = vmul.f32 %v182, %v212
      %v226 = vmul.f32 %v183, %v212
      %v227 = vmul.f32 %v184, %v212
      %v228 = vmul.f32 %v185, %v212
      %v229 = vmul.f32 %v186, %v212
      %v230 = vmul.f32 %v187, %v212
      %v231 = vmul.f32 %v188, %v212
      %v232 = vmul.f32 %v189, %v212
      %v233 = vmul.f32 %v190, %v212
      %v234 = vmul.f32 %v191, %v212
      %v235 = vmul.f32 %v192, %v212
      %v236 = vmul.f32 %v193, %v212
      %v237 = vmul.f32 %v194, %v212
      %v238 = vmul.f32 %v195, %v212
      %v239 = vmul.f32 %v196, %v212
      %v240 = vmul.f32 %v197, %v212
      %v241 = vmul.f32 %v198, %v212
      %v242 = vmul.f32 %v199, %v212
      %v243 = vmul.f32 %v200, %v212
      %v244 = vmul.f32 %v201, %v212
      %v245 = vmul.f32 %v202, %v212
      %v246 = vmul.f32 %v203, %v212
      %v247 = vmul.f32 %v204, %v212
      %v248 = vmul.f32 %v205, %v212
      %v249 = vmul.f32 %v206, %v212
      %v250 = vld [vmem:[%s2] sm:$0x1]
      %v252 = vlaneseq
      %v253 = vshrl.u32 %v252, 7
      %v254 = vsub.s32 0, %v253
      %v255 = vrot.slane %v250, %v254
      %v257 = vadd.f32 %v214, %v255
      %v258 = vadd.f32 %v215, %v255
      %v259 = vadd.f32 %v216, %v255
      %v260 = vadd.f32 %v217, %v255
      %v261 = vadd.f32 %v218, %v255
      %v262 = vadd.f32 %v219, %v255
      %v263 = vadd.f32 %v220, %v255
      %v264 = vadd.f32 %v221, %v255
      %v265 = vadd.f32 %v222, %v255
      %v266 = vadd.f32 %v223, %v255
      %v267 = vadd.f32 %v224, %v255
      %v268 = vadd.f32 %v225, %v255
      %v269 = vadd.f32 %v226, %v255
      %v270 = vadd.f32 %v227, %v255
      %v271 = vadd.f32 %v228, %v255
      %v272 = vadd.f32 %v229, %v255
      %v273 = vadd.f32 %v230, %v255
      %v274 = vadd.f32 %v231, %v255
      %v275 = vadd.f32 %v232, %v255
      %v276 = vadd.f32 %v233, %v255
      %v277 = vadd.f32 %v234, %v255
      %v278 = vadd.f32 %v235, %v255
      %v279 = vadd.f32 %v236, %v255
      %v280 = vadd.f32 %v237, %v255
      %v281 = vadd.f32 %v238, %v255
      %v282 = vadd.f32 %v239, %v255
      %v283 = vadd.f32 %v240, %v255
      %v284 = vadd.f32 %v241, %v255
      %v285 = vadd.f32 %v242, %v255
      %v286 = vadd.f32 %v243, %v255
      %v287 = vadd.f32 %v244, %v255
      %v288 = vadd.f32 %v245, %v255
      %v289 = vadd.f32 %v246, %v255
      %v290 = vadd.f32 %v247, %v255
      %v291 = vadd.f32 %v248, %v255
      %v292 = vadd.f32 %v249, %v255
      %v293 = vmax.f32 %v257, 0.0
      %v294 = vmax.f32 %v258, 0.0
      %v295 = vmax.f32 %v259, 0.0
      %v296 = vmax.f32 %v260, 0.0
      %v297 = vmax.f32 %v261, 0.0
      %v298 = vmax.f32 %v262, 0.0
      %v299 = vmax.f32 %v263, 0.0
      %v300 = vmax.f32 %v264, 0.0
      %v301 = vmax.f32 %v265, 0.0
      %v302 = vmax.f32 %v266, 0.0
      %v303 = vmax.f32 %v267, 0.0
      %v304 = vmax.f32 %v268, 0.0
      %v305 = vmax.f32 %v269, 0.0
      %v306 = vmax.f32 %v270, 0.0
      %v307 = vmax.f32 %v271, 0.0
      %v308 = vmax.f32 %v272, 0.0
      %v309 = vmax.f32 %v273, 0.0
      %v310 = vmax.f32 %v274, 0.0
      %v311 = vmax.f32 %v275, 0.0
      %v312 = vmax.f32 %v276, 0.0
      %v313 = vmax.f32 %v277, 0.0
      %v314 = vmax.f32 %v278, 0.0
      %v315 = vmax.f32 %v279, 0.0
      %v316 = vmax.f32 %v280, 0.0
      %v317 = vmax.f32 %v281, 0.0
      %v318 = vmax.f32 %v282, 0.0
      %v319 = vmax.f32 %v283, 0.0
      %v320 = vmax.f32 %v284, 0.0
      %v321 = vmax.f32 %v285, 0.0
      %v322 = vmax.f32 %v286, 0.0
      %v323 = vmax.f32 %v287, 0.0
      %v324 = vmax.f32 %v288, 0.0
      %v325 = vmax.f32 %v289, 0.0
      %v326 = vmax.f32 %v290, 0.0
      %v327 = vmax.f32 %v291, 0.0
      %v328 = vmax.f32 %v292, 0.0
      %329 = vst [vmem:[%s170] sm:$0xff] %v293
      %330 = vst [vmem:[%s170 + $0x8] sm:$0xff] %v294
      %331 = vst [vmem:[%s170 + $0x10] sm:$0xff] %v295
      %332 = vst [vmem:[%s170 + $0x18] sm:$0xff] %v296
      %333 = vst [vmem:[%s170 + $0x20] sm:$0xff] %v297
      %334 = vst [vmem:[%s170 + $0x28] sm:$0xff] %v298
      %335 = vst [vmem:[%s170 + $0x30] sm:$0xff] %v299
      %336 = vst [vmem:[%s170 + $0x38] sm:$0xff] %v300
      %337 = vst [vmem:[%s170 + $0x40] sm:$0xff] %v301
      %338 = vst [vmem:[%s170 + $0x48] sm:$0xff] %v302
      %339 = vst [vmem:[%s170 + $0x50] sm:$0xff] %v303
      %340 = vst [vmem:[%s170 + $0x58] sm:$0xff] %v304
      %341 = vst [vmem:[%s170 + $0x60] sm:$0xff] %v305
      %342 = vst [vmem:[%s170 + $0x68] sm:$0xff] %v306
      %343 = vst [vmem:[%s170 + $0x70] sm:$0xff] %v307
      %344 = vst [vmem:[%s170 + $0x78] sm:$0xff] %v308
      %345 = vst [vmem:[%s170 + $0x80] sm:$0xff] %v309
      %346 = vst [vmem:[%s170 + $0x88] sm:$0xff] %v310
      %347 = vst [vmem:[%s170 + $0x90] sm:$0xff] %v311
      %348 = vst [vmem:[%s170 + $0x98] sm:$0xff] %v312
      %349 = vst [vmem:[%s170 + $0xa0] sm:$0xff] %v313
      %350 = vst [vmem:[%s170 + $0xa8] sm:$0xff] %v314
      %351 = vst [vmem:[%s170 + $0xb0] sm:$0xff] %v315
      %352 = vst [vmem:[%s170 + $0xb8] sm:$0xff] %v316
      %353 = vst [vmem:[%s170 + $0xc0] sm:$0xff] %v317
      %354 = vst [vmem:[%s170 + $0xc8] sm:$0xff] %v318
      %355 = vst [vmem:[%s170 + $0xd0] sm:$0xff] %v319
      %356 = vst [vmem:[%s170 + $0xd8] sm:$0xff] %v320
      %357 = vst [vmem:[%s170 + $0xe0] sm:$0xff] %v321
      %358 = vst [vmem:[%s170 + $0xe8] sm:$0xff] %v322
      %359 = vst [vmem:[%s170 + $0xf0] sm:$0xff] %v323
      %360 = vst [vmem:[%s170 + $0xf8] sm:$0xff] %v324
      %361 = vst [vmem:[%s170 + $0x100] sm:$0xff] %v325
      %362 = vst [vmem:[%s170 + $0x108] sm:$0xff] %v326
      %363 = vst [vmem:[%s170 + $0x110] sm:$0xff] %v327
      %364 = vst [vmem:[%s170 + $0x118] sm:$0xff] %v328
      %p365 = scmp.lt.s32.totalorder %s14, 1
      %s366 = scalar_select %p365, %s14, 1
      %s367 = smul.addr %s366, 36
      %s368 = smul.addr %s367, 8
      %s369 = scalar_lea.vmem %s3, %s368
      // Predicated region
      $region33: #{regular_forward.3} parent=31 // pred_check
        %p370 = pneg %p100
      $region34: #{regular_forward.3} parent=31 // pred_check_branch
        %372 = sbr.rel (%p370) target = $region36
      $region35: #{regular_forward.3} parent=31 // pred_region
        _
      $region36: #{regular_forward.3} parent=31 // pred_fallthru
        _
    $region32: #{regular_forward.3} parent=5 // pred_fallthru
      _
    %p373 = scmp.le.s32.totalorder 2, %s9
    // Predicated region
    $region37: #{regular_forward.3} parent=5 // pred_check
      %p374 = pneg %p373
    $region38: #{regular_forward.3} parent=5 // pred_check_branch
      %376 = sbr.rel (%p374) target = $region40
    $region39: #{regular_forward.3} parent=5 // pred_region
      %s377 = ssub.s32 %s9, 2
      // Predicated region
      $region41: #{regular_forward.3} parent=39 // pred_check
        %p378 = pneg %p106
      $region42: #{regular_forward.3} parent=39 // pred_check_branch
        %380 = sbr.rel (%p378) target = $region44
      $region43: #{regular_forward.3} parent=39 // pred_region
        %p381 = scmp.lt.s32.totalorder %s15, 1
        %s382 = scalar_select %p381, %s15, 1
        %s383 = smul.addr %s382, 36
        %s384 = smul.addr %s383, 8
        %s385 = scalar_lea.vmem %s3, %s384
      $region44: #{regular_forward.3} parent=39 // pred_fallthru
        _
    $region40: #{regular_forward.3} parent=5 // pred_fallthru
      _
  $region6: #{regular_forward.3} parent=0 // loop_footer
    %s13 = sadd.s32 1, %s9
  $region7: #{regular_forward.3} parent=0 // loop_footer_branch
    %8 = sbr.rel target = $region3
  $region8: #{regular_forward.3} parent=0 // loop_exit
    _

// kernel: regular_forward.2
$region0: #{regular_forward.2}
  #allocation0 [shape = 'u32[]', space=smem, size = 0x4, offset = 0x4, fixed_abs, tag = 'smem constant byte address 0x4 - core index']
  #allocation1 [shape = 'u32[144,128]{1,0:T(1,128)}', space=vmem, size = 0x12000, scoped, tag = 'internal scratch']
  %s0 = inlined_call_operand.vmem [shape: f32[2,326,8], index: 0, kind: input, shape index: {}]
  %s1 = inlined_call_operand.vmem [shape: f32[9,8,128], index: 1, kind: input, shape index: {}]
  %s2 = inlined_call_operand.vmem [shape: f32[1,128], index: 2, kind: input, shape index: {}]
  %s3 = inlined_call_operand.vmem [shape: f32[288,1], index: 3, kind: input, shape index: {}]
  %s4 = inlined_call_operand.vmem [shape: f32[2,288,128], index: 4, kind: output, shape index: {0}]
  %s5 = inlined_call_operand.vmem [shape: f32[2,2,128], index: 5, kind: output, shape index: {1}]
  %6 = xla_tuple %s4, %s5
  %s7 = sld [smem:[#allocation0]]
  $region57: #{regular_forward.2} parent=0
    _
  %s9 = ssub.s32 1, %s7
  %s10 = scalar_select 0, %s9, %s7
  loop: start=0, step=1, limit=4
  $region2: #{regular_forward.2} parent=0 // loop_pre_header
    _
  $region3: #{regular_forward.2} parent=0 // loop_header
    %s12 = sphi 0, %s16
    %p13 = scmp.ge.s32.totalorder %s12, 4
    %s22 = sphi 0, %s24
    %s25 = sphi 0, %s22
    %s26 = sphi 0, %s25
    %s42 = sphi 0, %s26
    %s46 = sphi 0, %s46
    %s48 = sphi 0, %s46
    %s49 = sphi 0, %s48
    %s63 = sphi 0, %s49
    %s67 = sphi 0, %s67
    %s69 = sphi 0, %s67
    %s70 = sphi 0, %s69
    %s84 = sphi 0, %s70
    %s88 = sphi 0, %s88
    %s90 = sphi 0, %s88
    %s91 = sphi 0, %s90
    %s105 = sphi 0, %s91
    %s111 = sphi 0, %s113
    %s114 = sphi 0, %s111
    %s115 = sphi 0, %s114
    %s131 = sphi 0, %s115
    %s137 = sphi 0, %s139
    %s140 = sphi 0, %s137
    %s141 = sphi 0, %s140
    %s157 = sphi 0, %s141
  $region4: #{regular_forward.2} parent=0 // loop_header_branch
    %15 = sbr.rel (%p13) target = $region8
  $region5: #{regular_forward.2} parent=0 // loop_body
    %s17 = ssub.s32 %s12, 1
    %s18 = ssub.s32 %s12, 2
    %s19 = sadd.s32 %s12, 1
    %s20 = ssub.s32 %s12, %s19
    %p21 = scmp.eq.s32.totalorder %s20, 0
    %s23 = sadd.s32 %s22, 1
    %s24 = scalar_select %p21, %s22, %s23
    %p27 = pneg %p21
    %p28 = scmp.eq.s32.totalorder %s12, 1
    %p29 = por %p27, %p28
    %p30 = scmp.ne.s32.totalorder %s22, %s25
    %p31 = scmp.eq.s32.totalorder %s12, 0
    %p32 = por %p30, %p31
    %p33 = scmp.ne.s32.totalorder %s22, %s25
    %p34 = scmp.eq.s32.totalorder %s17, 1
    %p35 = por %p33, %p34
    %p36 = scmp.ne.s32.totalorder %s25, %s26
    %p37 = scmp.eq.s32.totalorder %s17, 0
    %p38 = por %p36, %p37
    %p39 = scmp.ne.s32.totalorder %s25, %s26
    %p40 = scmp.eq.s32.totalorder %s18, 1
    %p41 = por %p39, %p40
    %p43 = scmp.ne.s32.totalorder %s26, %s42
    %p44 = scmp.eq.s32.totalorder %s18, 0
    %p45 = por %p43, %p44
    %s47 = sadd.s32 %s46, 1
    %p50 = scmp.eq.s32.totalorder %s12, 1
    %p51 = scmp.ne.s32.totalorder %s46, %s48
    %p52 = scmp.eq.s32.totalorder %s12, 0
    %p53 = por %p51, %p52
    %p54 = scmp.ne.s32.totalorder %s46, %s48
    %p55 = scmp.eq.s32.totalorder %s17, 1
    %p56 = por %p54, %p55
    %p57 = scmp.ne.s32.totalorder %s48, %s49
    %p58 = scmp.eq.s32.totalorder %s17, 0
    %p59 = por %p57, %p58
    %p60 = scmp.ne.s32.totalorder %s48, %s49
    %p61 = scmp.eq.s32.totalorder %s18, 1
    %p62 = por %p60, %p61
    %p64 = scmp.ne.s32.totalorder %s49, %s63
    %p65 = scmp.eq.s32.totalorder %s18, 0
    %p66 = por %p64, %p65
    %s68 = sadd.s32 %s67, 1
    %p71 = scmp.eq.s32.totalorder %s12, 1
    %p72 = scmp.ne.s32.totalorder %s67, %s69
    %p73 = scmp.eq.s32.totalorder %s12, 0
    %p74 = por %p72, %p73
    %p75 = scmp.ne.s32.totalorder %s67, %s69
    %p76 = scmp.eq.s32.totalorder %s17, 1
    %p77 = por %p75, %p76
    %p78 = scmp.ne.s32.totalorder %s69, %s70
    %p79 = scmp.eq.s32.totalorder %s17, 0
    %p80 = por %p78, %p79
    %p81 = scmp.ne.s32.totalorder %s69, %s70
    %p82 = scmp.eq.s32.totalorder %s18, 1
    %p83 = por %p81, %p82
    %p85 = scmp.ne.s32.totalorder %s70, %s84
    %p86 = scmp.eq.s32.totalorder %s18, 0
    %p87 = por %p85, %p86
    %s89 = sadd.s32 %s88, 1
    %p92 = scmp.eq.s32.totalorder %s12, 1
    %p93 = scmp.ne.s32.totalorder %s88, %s90
    %p94 = scmp.eq.s32.totalorder %s12, 0
    %p95 = por %p93, %p94
    %p96 = scmp.ne.s32.totalorder %s88, %s90
    %p97 = scmp.eq.s32.totalorder %s17, 1
    %p98 = por %p96, %p97
    %p99 = scmp.ne.s32.totalorder %s90, %s91
    %p100 = scmp.eq.s32.totalorder %s17, 0
    %p101 = por %p99, %p100
    %p102 = scmp.ne.s32.totalorder %s90, %s91
    %p103 = scmp.eq.s32.totalorder %s18, 1
    %p104 = por %p102, %p103
    %p106 = scmp.ne.s32.totalorder %s91, %s105
    %p107 = scmp.eq.s32.totalorder %s18, 0
    %p108 = por %p106, %p107
    %s109 = ssub.s32 %s12, %s19
    %p110 = scmp.eq.s32.totalorder %s109, 0
    %s112 = sadd.s32 %s111, 1
    %s113 = scalar_select %p110, %s111, %s112
    %p116 = pneg %p110
    %p117 = scmp.eq.s32.totalorder %s12, 1
    %p118 = por %p116, %p117
    %p119 = scmp.ne.s32.totalorder %s111, %s114
    %p120 = scmp.eq.s32.totalorder %s12, 0
    %p121 = por %p119, %p120
    %p122 = scmp.ne.s32.totalorder %s111, %s114
    %p123 = scmp.eq.s32.totalorder %s17, 1
    %p124 = por %p122, %p123
    %p125 = scmp.ne.s32.totalorder %s114, %s115
    %p126 = scmp.eq.s32.totalorder %s17, 0
    %p127 = por %p125, %p126
    %p128 = scmp.ne.s32.totalorder %s114, %s115
    %p129 = scmp.eq.s32.totalorder %s18, 1
    %p130 = por %p128, %p129
    %p132 = scmp.ne.s32.totalorder %s115, %s131
    %p133 = scmp.eq.s32.totalorder %s18, 0
    %p134 = por %p132, %p133
    %s135 = ssub.s32 %s12, %s19
    %p136 = scmp.eq.s32.totalorder %s135, 0
    %s138 = sadd.s32 %s137, 1
    %s139 = scalar_select %p136, %s137, %s138
    %p142 = pneg %p136
    %p143 = scmp.eq.s32.totalorder %s12, 1
    %p144 = por %p142, %p143
    %p145 = scmp.ne.s32.totalorder %s137, %s140
    %p146 = scmp.eq.s32.totalorder %s12, 0
    %p147 = por %p145, %p146
    %p148 = scmp.ne.s32.totalorder %s137, %s140
    %p149 = scmp.eq.s32.totalorder %s17, 1
    %p150 = por %p148, %p149
    %p151 = scmp.ne.s32.totalorder %s140, %s141
    %p152 = scmp.eq.s32.totalorder %s17, 0
    %p153 = por %p151, %p152
    %p154 = scmp.ne.s32.totalorder %s140, %s141
    %p155 = scmp.eq.s32.totalorder %s18, 1
    %p156 = por %p154, %p155
    %p158 = scmp.ne.s32.totalorder %s141, %s157
    %p159 = scmp.eq.s32.totalorder %s18, 0
    %p160 = por %p158, %p159
    %p161 = scmp.le.s32.totalorder 1, %s12
    %p162 = scmp.lt.s32.totalorder %s12, 3
    %p163 = pnand %p161, %p162
    %p164 = pneg %p163
    // Predicated region
    $region9: #{regular_forward.2} parent=5 // pred_check
      _
    $region10: #{regular_forward.2} parent=5 // pred_check_branch
      %166 = sbr.rel (%p163) target = $region12
    $region11: #{regular_forward.2} parent=5 // pred_region
      %s167 = ssub.s32 %s12, 1
      // Predicated region
      $region13: #{regular_forward.2} parent=11 // pred_check
        %p168 = pneg %p59
      $region14: #{regular_forward.2} parent=11 // pred_check_branch
        %170 = sbr.rel (%p168) target = $region16
      $region15: #{regular_forward.2} parent=11 // pred_region
        _
      $region16: #{regular_forward.2} parent=11 // pred_fallthru
        _
      // Predicated region
      $region17: #{regular_forward.2} parent=11 // pred_check
        %p171 = pneg %p80
      $region18: #{regular_forward.2} parent=11 // pred_check_branch
        %173 = sbr.rel (%p171) target = $region20
      $region19: #{regular_forward.2} parent=11 // pred_region
        _
      $region20: #{regular_forward.2} parent=11 // pred_fallthru
        _
      // Predicated region
      $region21: #{regular_forward.2} parent=11 // pred_check
        %p174 = pneg %p101
      $region22: #{regular_forward.2} parent=11 // pred_check_branch
        %176 = sbr.rel (%p174) target = $region24
      $region23: #{regular_forward.2} parent=11 // pred_region
        _
      $region24: #{regular_forward.2} parent=11 // pred_fallthru
        _
    $region12: #{regular_forward.2} parent=5 // pred_fallthru
      _
    %p177 = scmp.lt.s32.totalorder %s12, 2
    // Predicated region
    $region25: #{regular_forward.2} parent=5 // pred_check
      %p178 = pneg %p177
    $region26: #{regular_forward.2} parent=5 // pred_check_branch
      %180 = sbr.rel (%p178) target = $region28
    $region27: #{regular_forward.2} parent=5 // pred_region
      // Predicated region
      $region29: #{regular_forward.2} parent=27 // pred_check
        %p181 = pneg %p32
      $region30: #{regular_forward.2} parent=27 // pred_check_branch
        %183 = sbr.rel (%p181) target = $region32
      $region31: #{regular_forward.2} parent=27 // pred_region
        %p184 = scmp.lt.s32.totalorder %s12, 1
        %s185 = scalar_select %p184, %s12, 1
        %s186 = smul.addr %s185, 41
        %s187 = smul.addr %s186, 8
        %s188 = scalar_lea.vmem %s0, %s187
      $region32: #{regular_forward.2} parent=27 // pred_fallthru
        _
    $region28: #{regular_forward.2} parent=5 // pred_fallthru
      _
    %p189 = scmp.le.s32.totalorder 1, %s12
    %p190 = scmp.lt.s32.totalorder %s12, 3
    %p191 = pnand %p189, %p190
    %p192 = pneg %p191
    // Predicated region
    $region33: #{regular_forward.2} parent=5 // pred_check
      _
    $region34: #{regular_forward.2} parent=5 // pred_check_branch
      %194 = sbr.rel (%p191) target = $region36
    $region35: #{regular_forward.2} parent=5 // pred_region
      %s195 = ssub.s32 %s12, 1
      %p196 = scmp.lt.s32.totalorder %s17, 1
      %s197 = scalar_select %p196, %s17, 1
      %s198 = smul.addr %s197, 41
      %s199 = smul.addr %s198, 8
      %s200 = scalar_lea.vmem %s0, %s199
      %p201 = pneg %p38
      %p202 = pneg %p35
      %p203 = pneg %p59
      %p204 = pneg %p56
      %p205 = pneg %p80
      %p206 = pneg %p77
      %p207 = pneg %p101
      %p208 = pneg %p98
      %p209 = pneg %p127
      %p210 = pneg %p124
      %p211 = scmp.lt.s32.totalorder %s17, 1
      %s212 = scalar_select %p211, %s17, 1
      %s213 = smul.addr %s212, 36
      %s214 = smul.addr %s213, 8
      %s215 = scalar_lea.vmem %s4, %s214
      %p216 = pneg %p153
      %p217 = pneg %p150
      %p218 = scmp.lt.s32.totalorder %s17, 1
      %s219 = scalar_select %p218, %s17, 1
      %s220 = smul.addr %s219, 2
      %s221 = scalar_lea.vmem %s5, %s220
      %p222 = scmp.lt.s32.totalorder %s17, 1
      %s223 = scalar_select %p222, %s17, 1
      %s224 = smul.addr %s223, 41
      %s225 = smul.addr %s224, 8
      %s226 = scalar_lea.vmem %s0, %s225
      %p227 = scmp.lt.s32.totalorder %s17, 1
      %s228 = scalar_select %p227, %s17, 1
      %s229 = smul.addr %s228, 36
      %s230 = smul.addr %s229, 8
      %s231 = scalar_lea.vmem %s4, %s230
      %p232 = scmp.lt.s32.totalorder %s17, 1
      %s233 = scalar_select %p232, %s17, 1
      %s234 = smul.addr %s233, 2
      %s235 = scalar_lea.vmem %s5, %s234
      %v236 = vld [vmem:[%s226] sm:$0xff]
      %v237 = vld [vmem:[%s226 + $0x8] sm:$0xff]
      %v238 = vld [vmem:[%s226 + $0x10] sm:$0xff]
      %v239 = vld [vmem:[%s226 + $0x18] sm:$0xff]
      %v240 = vld [vmem:[%s226 + $0x20] sm:$0xff]
      %v241 = vld [vmem:[%s226 + $0x28] sm:$0xff]
      %v242 = vld [vmem:[%s226 + $0x30] sm:$0xff]
      %v243 = vld [vmem:[%s226 + $0x38] sm:$0xff]
      %v244 = vld [vmem:[%s226 + $0x40] sm:$0xff]
      %v245 = vld [vmem:[%s226 + $0x48] sm:$0xff]
      %v246 = vld [vmem:[%s226 + $0x50] sm:$0xff]
      %v247 = vld [vmem:[%s226 + $0x58] sm:$0xff]
      %v248 = vld [vmem:[%s226 + $0x60] sm:$0xff]
      %v249 = vld [vmem:[%s226 + $0x68] sm:$0xff]
      %v250 = vld [vmem:[%s226 + $0x70] sm:$0xff]
      %v251 = vld [vmem:[%s226 + $0x78] sm:$0xff]
      %v252 = vld [vmem:[%s226 + $0x80] sm:$0xff]
      %v253 = vld [vmem:[%s226 + $0x88] sm:$0xff]
      %v254 = vld [vmem:[%s226 + $0x90] sm:$0xff]
      %v255 = vld [vmem:[%s226 + $0x98] sm:$0xff]
      %v256 = vld [vmem:[%s226 + $0xa0] sm:$0xff]
      %v257 = vld [vmem:[%s226 + $0xa8] sm:$0xff]
      %v258 = vld [vmem:[%s226 + $0xb0] sm:$0xff]
      %v259 = vld [vmem:[%s226 + $0xb8] sm:$0xff]
      %v260 = vld [vmem:[%s226 + $0xc0] sm:$0xff]
      %v261 = vld [vmem:[%s226 + $0xc8] sm:$0xff]
      %v262 = vld [vmem:[%s226 + $0xd0] sm:$0xff]
      %v263 = vld [vmem:[%s226 + $0xd8] sm:$0xff]
      %v264 = vld [vmem:[%s226 + $0xe0] sm:$0xff]
      %v265 = vld [vmem:[%s226 + $0xe8] sm:$0xff]
      %v266 = vld [vmem:[%s226 + $0xf0] sm:$0xff]
      %v267 = vld [vmem:[%s226 + $0xf8] sm:$0xff]
      %v268 = vld [vmem:[%s226 + $0x100] sm:$0xff]
      %v269 = vld [vmem:[%s226 + $0x108] sm:$0xff]
      %v270 = vld [vmem:[%s226 + $0x110] sm:$0xff]
      %v271 = vld [vmem:[%s226 + $0x118] sm:$0xff]
      %v272 = vld [vmem:[%s1] sm:$0xff]
      %v273 = vld [vmem:[%s226 + $0x1] sm:$0xff]
      %v274 = vld [vmem:[%s226 + $0x9] sm:$0xff]
      %v275 = vld [vmem:[%s226 + $0x11] sm:$0xff]
      %v276 = vld [vmem:[%s226 + $0x19] sm:$0xff]
      %v277 = vld [vmem:[%s226 + $0x21] sm:$0xff]
      %v278 = vld [vmem:[%s226 + $0x29] sm:$0xff]
      %v279 = vld [vmem:[%s226 + $0x31] sm:$0xff]
      %v280 = vld [vmem:[%s226 + $0x39] sm:$0xff]
      %v281 = vld [vmem:[%s226 + $0x41] sm:$0xff]
      %v282 = vld [vmem:[%s226 + $0x49] sm:$0xff]
      %v283 = vld [vmem:[%s226 + $0x51] sm:$0xff]
      %v284 = vld [vmem:[%s226 + $0x59] sm:$0xff]
      %v285 = vld [vmem:[%s226 + $0x61] sm:$0xff]
      %v286 = vld [vmem:[%s226 + $0x69] sm:$0xff]
      %v287 = vld [vmem:[%s226 + $0x71] sm:$0xff]
      %v288 = vld [vmem:[%s226 + $0x79] sm:$0xff]
      %v289 = vld [vmem:[%s226 + $0x81] sm:$0xff]
      %v290 = vld [vmem:[%s226 + $0x89] sm:$0xff]
      %v291 = vld [vmem:[%s226 + $0x91] sm:$0xff]
      %v292 = vld [vmem:[%s226 + $0x99] sm:$0xff]
      %v293 = vld [vmem:[%s226 + $0xa1] sm:$0xff]
      %v294 = vld [vmem:[%s226 + $0xa9] sm:$0xff]
      %v295 = vld [vmem:[%s226 + $0xb1] sm:$0xff]
      %v296 = vld [vmem:[%s226 + $0xb9] sm:$0xff]
      %v297 = vld [vmem:[%s226 + $0xc1] sm:$0xff]
      %v298 = vld [vmem:[%s226 + $0xc9] sm:$0xff]
      %v299 = vld [vmem:[%s226 + $0xd1] sm:$0xff]
      %v300 = vld [vmem:[%s226 + $0xd9] sm:$0xff]
      %v301 = vld [vmem:[%s226 + $0xe1] sm:$0xff]
      %v302 = vld [vmem:[%s226 + $0xe9] sm:$0xff]
      %v303 = vld [vmem:[%s226 + $0xf1] sm:$0xff]
      %v304 = vld [vmem:[%s226 + $0xf9] sm:$0xff]
      %v305 = vld [vmem:[%s226 + $0x101] sm:$0xff]
      %v306 = vld [vmem:[%s226 + $0x109] sm:$0xff]
      %v307 = vld [vmem:[%s226 + $0x111] sm:$0xff]
      %v308 = vld [vmem:[%s226 + $0x119] sm:$0xff]
      %s309 = scalar_lea.vmem %s1, 8
      %v310 = vld [vmem:[%s309] sm:$0xff]
      %vm311 = vcmask 64512
      %v313 = vsel %vm311, %v273, 0
      %v316 = vsel %vm311, %v274, 0
      %v319 = vsel %vm311, %v275, 0
      %v322 = vsel %vm311, %v276, 0
      %v325 = vsel %vm311, %v277, 0
      %v328 = vsel %vm311, %v278, 0
      %v331 = vsel %vm311, %v279, 0
      %v334 = vsel %vm311, %v280, 0
      %v337 = vsel %vm311, %v281, 0
      %v340 = vsel %vm311, %v282, 0
      %v343 = vsel %vm311, %v283, 0
      %v346 = vsel %vm311, %v284, 0
      %v349 = vsel %vm311, %v285, 0
      %v352 = vsel %vm311, %v286, 0
      %v355 = vsel %vm311, %v287, 0
      %v358 = vsel %vm311, %v288, 0
      %v361 = vsel %vm311, %v289, 0
      %v364 = vsel %vm311, %v290, 0
      %v367 = vsel %vm311, %v291, 0
      %v370 = vsel %vm311, %v292, 0
      %v373 = vsel %vm311, %v293, 0
      %v376 = vsel %vm311, %v294, 0
      %v379 = vsel %vm311, %v295, 0
      %v382 = vsel %vm311, %v296, 0
      %v385 = vsel %vm311, %v297, 0
      %v388 = vsel %vm311, %v298, 0
      %v391 = vsel %vm311, %v299, 0
      %v394 = vsel %vm311, %v300, 0
      %v397 = vsel %vm311, %v301, 0
      %v400 = vsel %vm311, %v302, 0
      %v403 = vsel %vm311, %v303, 0
      %v406 = vsel %vm311, %v304, 0
      %v409 = vsel %vm311, %v305, 0
      %v412 = vsel %vm311, %v306, 0
      %v415 = vsel %vm311, %v307, 0
      %v418 = vsel %vm311, %v308, 0
      %420 = vmatprep.subr.mxu0 0.0
      %421 = vmatpush1.msra.mxu0 %v310
      %422 = vmatprep.subr.mxu0 0.0
      %423 = vmatpush1.msra.mxu0 0.0
      %424 = vmatprep.subr.mxu0 0.0
      %425 = vmatpush1.msra.mxu0 0.0
      %426 = vmatprep.subr.mxu0 0.0
      %427 = vmatpush1.msra.mxu0 0.0
      %428 = vmatprep.subr.mxu0 0.0
      %429 = vmatpush1.msra.mxu0 0.0
      %430 = vmatprep.subr.mxu0 0.0
      %431 = vmatpush1.msra.mxu0 0.0
      %432 = vmatprep.subr.mxu0 0.0
      %433 = vmatpush1.msra.mxu0 0.0
      %434 = vmatprep.subr.mxu0 0.0
      %435 = vmatpush1.msra.mxu0 0.0
      %436 = vmatprep.subr.mxu0 0.0
      %437 = vmatpush1.msra.mxu0 0.0
      %438 = vmatprep.subr.mxu0 0.0
      %439 = vmatpush1.msra.mxu0 0.0
      %440 = vmatprep.subr.mxu0 0.0
      %441 = vmatpush1.msra.mxu0 0.0
      %442 = vmatprep.subr.mxu0 0.0
      %443 = vmatpush1.msra.mxu0 0.0
      %444 = vmatprep.subr.mxu0 0.0
      %445 = vmatpush1.msra.mxu0 0.0
      %446 = vmatprep.subr.mxu0 0.0
      %447 = vmatpush1.msra.mxu0 0.0
      %448 = vmatprep.subr.mxu0 0.0
      %449 = vmatpush1.msra.mxu0 0.0
      %450 = vmatprep.subr.mxu0 0.0
      %451 = vmatpush1.msra.mxu0 0.0
      %452 = vmatprep.subr.mxu0 0.0
      %453 = vmatpush1.msra.mxu0 0.0
      %454 = vmatprep.subr.mxu0 0.0
      %455 = vmatpush1.msra.mxu0 0.0
      %456 = vmatprep.subr.mxu0 0.0
      %457 = vmatpush1.msra.mxu0 0.0
      %458 = vmatprep.subr.mxu0 0.0
      %459 = vmatpush1.msra.mxu0 0.0
      %460 = vmatprep.subr.mxu0 0.0
      %461 = vmatpush1.msra.mxu0 0.0
      %462 = vmatprep.subr.mxu0 0.0
      %463 = vmatpush1.msra.mxu0 0.0
      %464 = vmatprep.subr.mxu0 0.0
      %465 = vmatpush1.msra.mxu0 0.0
      %466 = vmatprep.subr.mxu0 0.0
      %467 = vmatpush1.msra.mxu0 0.0
      %468 = vmatprep.subr.mxu0 0.0
      %469 = vmatpush1.msra.mxu0 0.0
      %470 = vmatprep.subr.mxu0 0.0
      %471 = vmatpush1.msra.mxu0 0.0
      %472 = vmatprep.subr.mxu0 0.0
      %473 = vmatpush1.msra.mxu0 0.0
      %474 = vmatprep.subr.mxu0 0.0
      %475 = vmatpush1.msra.mxu0 0.0
      %476 = vmatprep.subr.mxu0 0.0
      %477 = vmatpush1.msra.mxu0 0.0
      %478 = vmatprep.subr.mxu0 0.0
      %479 = vmatpush1.msra.mxu0 0.0
      %480 = vmatprep.subr.mxu0 0.0
      %481 = vmatpush1.msra.mxu0 0.0
      %482 = vmatprep.subr.mxu0 0.0
      %483 = vmatpush1.msra.mxu0 0.0
      %484 = vmatprep.mubr.f32.mxu0 0.0
      %485 = vmatmul.mubr.f32.gmra.mrb[0].mxu0 %v313
      %v486 = vpop.f32.mrb[0].mxu0
      %v487 = vadd.f32 0.0, %v486
      %v488 = vpop.f32.mrb[0].mxu0
      %489 = vmatprep.mubr.f32.mxu0 0.0
      %490 = vmatmul.mubr.f32.gmra.mrb[0].mxu0 %v316
      %v491 = vpop.f32.mrb[0].mxu0
      %v492 = vadd.f32 0.0, %v491
      %v493 = vpop.f32.mrb[0].mxu0
      %494 = vmatprep.mubr.f32.mxu0 0.0
      %495 = vmatmul.mubr.f32.gmra.mrb[0].mxu0 %v319
      %v496 = vpop.f32.mrb[0].mxu0
      %v497 = vadd.f32 0.0, %v496
      %v498 = vpop.f32.mrb[0].mxu0
      %499 = vmatprep.mubr.f32.mxu0 0.0
      %500 = vmatmul.mubr.f32.gmra.mrb[0].mxu0 %v322
      %v501 = vpop.f32.mrb[0].mxu0
      %v502 = vadd.f32 0.0, %v501
      %v503 = vpop.f32.mrb[0].mxu0
      %504 = vmatprep.mubr.f32.mxu0 0.0
      %505 = vmatmul.mubr.f32.gmra.mrb[0].mxu0 %v325
      %v506 = vpop.f32.mrb[0].mxu0
      %v507 = vadd.f32 0.0, %v506
      %v508 = vpop.f32.mrb[0].mxu0
      %509 = vmatprep.mubr.f32.mxu0 0.0
      %510 = vmatmul.mubr.f32.gmra.mrb[0].mxu0 %v328
      %v511 = vpop.f32.mrb[0].mxu0
      %v512 = vadd.f32 0.0, %v511
      %v513 = vpop.f32.mrb[0].mxu0
      %514 = vmatprep.mubr.f32.mxu0 0.0
      %515 = vmatmul.mubr.f32.gmra.mrb[0].mxu0 %v331
      %v516 = vpop.f32.mrb[0].mxu0
      %v517 = vadd.f32 0.0, %v516
      %v518 = vpop.f32.mrb[0].mxu0
      %519 = vmatprep.mubr.f32.mxu0 0.0
      %520 = vmatmul.mubr.f32.gmra.mrb[0].mxu0 %v334
      %v521 = vpop.f32.mrb[0].mxu0
      %v522 = vadd.f32 0.0, %v521
      %v523 = vpop.f32.mrb[0].mxu0
      %524 = vmatprep.mubr.f32.mxu0 0.0
      %525 = vmatmul.mubr.f32.gmra.mrb[0].mxu0 %v337
      %v526 = vpop.f32.mrb[0].mxu0
      %v527 = vadd.f32 0.0, %v526
      %v528 = vpop.f32.mrb[0].mxu0
      %529 = vmatprep.mubr.f32.mxu0 0.0
      %530 = vmatmul.mubr.f32.gmra.mrb[0].mxu0 %v340
      %v531 = vpop.f32.mrb[0].mxu0
      %v532 = vadd.f32 0.0, %v531
      %v533 = vpop.f32.mrb[0].mxu0
      %534 = vmatprep.mubr.f32.mxu0 0.0
      %535 = vmatmul.mubr.f32.gmra.mrb[0].mxu0 %v343
      %v536 = vpop.f32.mrb[0].mxu0
      %v537 = vadd.f32 0.0, %v536
      %v538 = vpop.f32.mrb[0].mxu0
      %539 = vmatprep.mubr.f32.mxu0 0.0
      %540 = vmatmul.mubr.f32.gmra.mrb[0].mxu0 %v346
      %v541 = vpop.f32.mrb[0].mxu0
      %v542 = vadd.f32 0.0, %v541
      %v543 = vpop.f32.mrb[0].mxu0
      %544 = vmatprep.mubr.f32.mxu0 0.0
      %545 = vmatmul.mubr.f32.gmra.mrb[0].mxu0 %v349
      %v546 = vpop.f32.mrb[0].mxu0
      %v547 = vadd.f32 0.0, %v546
      %v548 = vpop.f32.mrb[0].mxu0
      %549 = vmatprep.mubr.f32.mxu0 0.0
      %550 = vmatmul.mubr.f32.gmra.mrb[0].mxu0 %v352
      %v551 = vpop.f32.mrb[0].mxu0
      %v552 = vadd.f32 0.0, %v551
      %v553 = vpop.f32.mrb[0].mxu0
      %554 = vmatprep.mubr.f32.mxu0 0.0
      %555 = vmatmul.mubr.f32.gmra.mrb[0].mxu0 %v355
      %v556 = vpop.f32.mrb[0].mxu0
      %v557 = vadd.f32 0.0, %v556
      %v558 = vpop.f32.mrb[0].mxu0
      %559 = vmatprep.mubr.f32.mxu0 0.0
      %560 = vmatmul.mubr.f32.gmra.mrb[0].mxu0 %v358
      %v561 = vpop.f32.mrb[0].mxu0
      %v562 = vadd.f32 0.0, %v561
      %v563 = vpop.f32.mrb[0].mxu0
      %564 = vmatprep.mubr.f32.mxu0 0.0
      %565 = vmatmul.mubr.f32.gmra.mrb[0].mxu0 %v361
      %v566 = vpop.f32.mrb[0].mxu0
      %v567 = vadd.f32 0.0, %v566
      %v568 = vpop.f32.mrb[0].mxu0
      %569 = vmatprep.mubr.f32.mxu0 0.0
      %570 = vmatmul.mubr.f32.gmra.mrb[0].mxu0 %v364
      %v571 = vpop.f32.mrb[0].mxu0
      %v572 = vadd.f32 0.0, %v571
      %v573 = vpop.f32.mrb[0].mxu0
      %574 = vmatprep.mubr.f32.mxu0 0.0
      %575 = vmatmul.mubr.f32.gmra.mrb[0].mxu0 %v367
      %v576 = vpop.f32.mrb[0].mxu0
      %v577 = vadd.f32 0.0, %v576
      %v578 = vpop.f32.mrb[0].mxu0
      %579 = vmatprep.mubr.f32.mxu0 0.0
      %580 = vmatmul.mubr.f32.gmra.mrb[0].mxu0 %v370
      %v581 = vpop.f32.mrb[0].mxu0
      %v582 = vadd.f32 0.0, %v581
      %v583 = vpop.f32.mrb[0].mxu0
      %584 = vmatprep.mubr.f32.mxu0 0.0
      %585 = vmatmul.mubr.f32.gmra.mrb[0].mxu0 %v373
      %v586 = vpop.f32.mrb[0].mxu0
      %v587 = vadd.f32 0.0, %v586
      %v588 = vpop.f32.mrb[0].mxu0
      %589 = vmatprep.mubr.f32.mxu0 0.0
      %590 = vmatmul.mubr.f32.gmra.mrb[0].mxu0 %v376
      %v591 = vpop.f32.mrb[0].mxu0
      %v592 = vadd.f32 0.0, %v591
      %v593 = vpop.f32.mrb[0].mxu0
      %594 = vmatprep.mubr.f32.mxu0 0.0
      %595 = vmatmul.mubr.f32.gmra.mrb[0].mxu0 %v379
      %v596 = vpop.f32.mrb[0].mxu0
      %v597 = vadd.f32 0.0, %v596
      %v598 = vpop.f32.mrb[0].mxu0
      %599 = vmatprep.mubr.f32.mxu0 0.0
      %600 = vmatmul.mubr.f32.gmra.mrb[0].mxu0 %v382
      %v601 = vpop.f32.mrb[0].mxu0
      %v602 = vadd.f32 0.0, %v601
      %v603 = vpop.f32.mrb[0].mxu0
      %604 = vmatprep.mubr.f32.mxu0 0.0
      %605 = vmatmul.mubr.f32.gmra.mrb[0].mxu0 %v385
      %v606 = vpop.f32.mrb[0].mxu0
      %v607 = vadd.f32 0.0, %v606
      %v608 = vpop.f32.mrb[0].mxu0
      %609 = vmatprep.mubr.f32.mxu0 0.0
      %610 = vmatmul.mubr.f32.gmra.mrb[0].mxu0 %v388
      %v611 = vpop.f32.mrb[0].mxu0
      %v612 = vadd.f32 0.0, %v611
      %v613 = vpop.f32.mrb[0].mxu0
      %614 = vmatprep.mubr.f32.mxu0 0.0
      %615 = vmatmul.mubr.f32.gmra.mrb[0].mxu0 %v391
      %v616 = vpop.f32.mrb[0].mxu0
      %v617 = vadd.f32 0.0, %v616
      %v618 = vpop.f32.mrb[0].mxu0
      %619 = vmatprep.mubr.f32.mxu0 0.0
      %620 = vmatmul.mubr.f32.gmra.mrb[0].mxu0 %v394
      %v621 = vpop.f32.mrb[0].mxu0
      %v622 = vadd.f32 0.0, %v621
      %v623 = vpop.f32.mrb[0].mxu0
      %624 = vmatprep.mubr.f32.mxu0 0.0
      %625 = vmatmul.mubr.f32.gmra.mrb[0].mxu0 %v397
      %v626 = vpop.f32.mrb[0].mxu0
      %v627 = vadd.f32 0.0, %v626
      %v628 = vpop.f32.mrb[0].mxu0
      %629 = vmatprep.mubr.f32.mxu0 0.0
      %630 = vmatmul.mubr.f32.gmra.mrb[0].mxu0 %v400
      %v631 = vpop.f32.mrb[0].mxu0
      %v632 = vadd.f32 0.0, %v631
      %v633 = vpop.f32.mrb[0].mxu0
      %634 = vmatprep.mubr.f32.mxu0 0.0
      %635 = vmatmul.mubr.f32.gmra.mrb[0].mxu0 %v403
      %v636 = vpop.f32.mrb[0].mxu0
      %v637 = vadd.f32 0.0, %v636
      %v638 = vpop.f32.mrb[0].mxu0
      %639 = vmatprep.mubr.f32.mxu0 0.0
      %640 = vmatmul.mubr.f32.gmra.mrb[0].mxu0 %v406
      %v641 = vpop.f32.mrb[0].mxu0
      %v642 = vadd.f32 0.0, %v641
      %v643 = vpop.f32.mrb[0].mxu0
      %644 = vmatprep.mubr.f32.mxu0 0.0
      %645 = vmatmul.mubr.f32.gmra.mrb[0].mxu0 %v409
      %v646 = vpop.f32.mrb[0].mxu0
      %v647 = vadd.f32 0.0, %v646
      %v648 = vpop.f32.mrb[0].mxu0
      %649 = vmatprep.mubr.f32.mxu0 0.0
      %650 = vmatmul.mubr.f32.gmra.mrb[0].mxu0 %v412
      %v651 = vpop.f32.mrb[0].mxu0
      %v652 = vadd.f32 0.0, %v651
      %v653 = vpop.f32.mrb[0].mxu0
      %654 = vmatprep.mubr.f32.mxu0 0.0
      %655 = vmatmul.mubr.f32.gmra.mrb[0].mxu0 %v415
      %v656 = vpop.f32.mrb[0].mxu0
      %v657 = vadd.f32 0.0, %v656
      %v658 = vpop.f32.mrb[0].mxu0
      %659 = vmatprep.mubr.f32.mxu0 0.0
      %660 = vmatmul.mubr.f32.gmra.mrb[0].mxu0 %v418
      %v661 = vpop.f32.mrb[0].mxu0
      %v662 = vadd.f32 0.0, %v661
      %v663 = vpop.f32.mrb[0].mxu0
      %664 = vdwg.mxu0
      %v666 = vsel %vm311, %v236, 0
      %v669 = vsel %vm311, %v237, 0
      %v672 = vsel %vm311, %v238, 0
      %v675 = vsel %vm311, %v239, 0
      %v678 = vsel %vm311, %v240, 0
      %v681 = vsel %vm311, %v241, 0
      %v684 = vsel %vm311, %v242, 0
      %v687 = vsel %vm311, %v243, 0
      %v690 = vsel %vm311, %v244, 0
      %v693 = vsel %vm311, %v245, 0
      %v696 = vsel %vm311, %v246, 0
      %v699 = vsel %vm311, %v247, 0
      %v702 = vsel %vm311, %v248, 0
      %v705 = vsel %vm311, %v249, 0
      %v708 = vsel %vm311, %v250, 0
      %v711 = vsel %vm311, %v251, 0
      %v714 = vsel %vm311, %v252, 0
      %v717 = vsel %vm311, %v253, 0
      %v720 = vsel %vm311, %v254, 0
      %v723 = vsel %vm311, %v255, 0
      %v726 = vsel %vm311, %v256, 0
      %v729 = vsel %vm311, %v257, 0
      %v732 = vsel %vm311, %v258, 0
      %v735 = vsel %vm311, %v259, 0
      %v738 = vsel %vm311, %v260, 0
      %v741 = vsel %vm311, %v261, 0
      %v744 = vsel %vm311, %v262, 0
      %v747 = vsel %vm311, %v263, 0
      %v750 = vsel %vm311, %v264, 0
      %v753 = vsel %vm311, %v265, 0
      %v756 = vsel %vm311, %v266, 0
      %v759 = vsel %vm311, %v267, 0
      %v762 = vsel %vm311, %v268, 0
      %v765 = vsel %vm311, %v269, 0
      %v768 = vsel %vm311, %v270, 0
      %v771 = vsel %vm311, %v271, 0
      %773 = vmatprep.subr.mxu0 0.0
      %774 = vmatpush1.msra.mxu0 %v272
      %775 = vmatprep.subr.mxu0 0.0
      %776 = vmatpush1.msra.mxu0 0.0
      %777 = vmatprep.subr.mxu0 0.0
      %778 = vmatpush1.msra.mxu0 0.0
      %779 = vmatprep.subr.mxu0 0.0
      %780 = vmatpush1.msra.mxu0 0.0
      %781 = vmatprep.subr.mxu0 0.0
      %782 = vmatpush1.msra.mxu0 0.0
      %783 = vmatprep.subr.mxu0 0.0
      %784 = vmatpush1.msra.mxu0 0.0
      %785 = vmatprep.subr.mxu0 0.0
      %786 = vmatpush1.msra.mxu0 0.0
      %787 = vmatprep.subr.mxu0 0.0
      %788 = vmatpush1.msra.mxu0 0.0
      %789 = vmatprep.subr.mxu0 0.0
      %790 = vmatpush1.msra.mxu0 0.0
      %791 = vmatprep.subr.mxu0 0.0
      %792 = vmatpush1.msra.mxu0 0.0
      %793 = vmatprep.subr.mxu0 0.0
      %794 = vmatpush1.msra.mxu0 0.0
      %795 = vmatprep.subr.mxu0 0.0
      %796 = vmatpush1.msra.mxu0 0.0
      %797 = vmatprep.subr.mxu0 0.0
      %798 = vmatpush1.msra.mxu0 0.0
      %799 = vmatprep.subr.mxu0 0.0
      %800 = vmatpush1.msra.mxu0 0.0
      %801 = vmatprep.subr.mxu0 0.0
      %802 = vmatpush1.msra.mxu0 0.0
      %803 = vmatprep.subr.mxu0 0.0
      %804 = vmatpush1.msra.mxu0 0.0
      %805 = vmatprep.subr.mxu0 0.0
      %806 = vmatpush1.msra.mxu0 0.0
      %807 = vmatprep.subr.mxu0 0.0
      %808 = vmatpush1.msra.mxu0 0.0
      %809 = vmatprep.subr.mxu0 0.0
      %810 = vmatpush1.msra.mxu0 0.0
      %811 = vmatprep.subr.mxu0 0.0
      %812 = vmatpush1.msra.mxu0 0.0
      %813 = vmatprep.subr.mxu0 0.0
      %814 = vmatpush1.msra.mxu0 0.0
      %815 = vmatprep.subr.mxu0 0.0
      %816 = vmatpush1.msra.mxu0 0.0
      %817 = vmatprep.subr.mxu0 0.0
      %818 = vmatpush1.msra.mxu0 0.0
      %819 = vmatprep.subr.mxu0 0.0
      %820 = vmatpush1.msra.mxu0 0.0
      %821 = vmatprep.subr.mxu0 0.0
      %822 = vmatpush1.msra.mxu0 0.0
      %823 = vmatprep.subr.mxu0 0.0
      %824 = vmatpush1.msra.mxu0 0.0
      %825 = vmatprep.subr.mxu0 0.0
      %826 = vmatpush1.msra.mxu0 0.0
      %827 = vmatprep.subr.mxu0 0.0
      %828 = vmatpush1.msra.mxu0 0.0
      %829 = vmatprep.subr.mxu0 0.0
      %830 = vmatpush1.msra.mxu0 0.0
      %831 = vmatprep.subr.mxu0 0.0
      %832 = vmatpush1.msra.mxu0 0.0
      %833 = vmatprep.subr.mxu0 0.0
      %834 = vmatpush1.msra.mxu0 0.0
      %835 = vmatprep.subr.mxu0 0.0
      %836 = vmatpush1.msra.mxu0 0.0
      %837 = vmatprep.mubr.f32.mxu0 0.0
      %838 = vmatmul.mubr.f32.gmra.mrb[0].mxu0 %v666
      %v839 = vpop.f32.mrb[0].mxu0
      %v840 = vadd.f32 %v487, %v839
      %v841 = vpop.f32.mrb[0].mxu0
      %842 = vmatprep.mubr.f32.mxu0 0.0
      %843 = vmatmul.mubr.f32.gmra.mrb[0].mxu0 %v669
      %v844 = vpop.f32.mrb[0].mxu0
      %v845 = vadd.f32 %v492, %v844
      %v846 = vpop.f32.mrb[0].mxu0
      %847 = vmatprep.mubr.f32.mxu0 0.0
      %848 = vmatmul.mubr.f32.gmra.mrb[0].mxu0 %v672
      %v849 = vpop.f32.mrb[0].mxu0
      %v850 = vadd.f32 %v497, %v849
      %v851 = vpop.f32.mrb[0].mxu0
      %852 = vmatprep.mubr.f32.mxu0 0.0
      %853 = vmatmul.mubr.f32.gmra.mrb[0].mxu0 %v675
      %v854 = vpop.f32.mrb[0].mxu0
      %v855 = vadd.f32 %v502, %v854
      %v856 = vpop.f32.mrb[0].mxu0
      %857 = vmatprep.mubr.f32.mxu0 0.0
      %858 = vmatmul.mubr.f32.gmra.mrb[0].mxu0 %v678
      %v859 = vpop.f32.mrb[0].mxu0
      %v860 = vadd.f32 %v507, %v859
      %v861 = vpop.f32.mrb[0].mxu0
      %862 = vmatprep.mubr.f32.mxu0 0.0
      %863 = vmatmul.mubr.f32.gmra.mrb[0].mxu0 %v681
      %v864 = vpop.f32.mrb[0].mxu0
      %v865 = vadd.f32 %v512, %v864
      %v866 = vpop.f32.mrb[0].mxu0
      %867 = vmatprep.mubr.f32.mxu0 0.0
      %868 = vmatmul.mubr.f32.gmra.mrb[0].mxu0 %v684
      %v869 = vpop.f32.mrb[0].mxu0
      %v870 = vadd.f32 %v517, %v869
      %v871 = vpop.f32.mrb[0].mxu0
      %872 = vmatprep.mubr.f32.mxu0 0.0
      %873 = vmatmul.mubr.f32.gmra.mrb[0].mxu0 %v687
      %v874 = vpop.f32.mrb[0].mxu0
      %v875 = vadd.f32 %v522, %v874
      %v876 = vpop.f32.mrb[0].mxu0
      %877 = vmatprep.mubr.f32.mxu0 0.0
      %878 = vmatmul.mubr.f32.gmra.mrb[0].mxu0 %v690
      %v879 = vpop.f32.mrb[0].mxu0
      %v880 = vadd.f32 %v527, %v879
      %v881 = vpop.f32.mrb[0].mxu0
      %882 = vmatprep.mubr.f32.mxu0 0.0
      %883 = vmatmul.mubr.f32.gmra.mrb[0].mxu0 %v693
      %v884 = vpop.f32.mrb[0].mxu0
      %v885 = vadd.f32 %v532, %v884
      %v886 = vpop.f32.mrb[0].mxu0
      %887 = vmatprep.mubr.f32.mxu0 0.0
      %888 = vmatmul.mubr.f32.gmra.mrb[0].mxu0 %v696
      %v889 = vpop.f32.mrb[0].mxu0
      %v890 = vadd.f32 %v537, %v889
      %v891 = vpop.f32.mrb[0].mxu0
      %892 = vmatprep.mubr.f32.mxu0 0.0
      %893 = vmatmul.mubr.f32.gmra.mrb[0].mxu0 %v699
      %v894 = vpop.f32.mrb[0].mxu0
      %v895 = vadd.f32 %v542, %v894
      %v896 = vpop.f32.mrb[0].mxu0
      %897 = vmatprep.mubr.f32.mxu0 0.0
      %898 = vmatmul.mubr.f32.gmra.mrb[0].mxu0 %v702
      %v899 = vpop.f32.mrb[0].mxu0
      %v900 = vadd.f32 %v547, %v899
      %v901 = vpop.f32.mrb[0].mxu0
      %902 = vmatprep.mubr.f32.mxu0 0.0
      %903 = vmatmul.mubr.f32.gmra.mrb[0].mxu0 %v705
      %v904 = vpop.f32.mrb[0].mxu0
      %v905 = vadd.f32 %v552, %v904
      %v906 = vpop.f32.mrb[0].mxu0
      %907 = vmatprep.mubr.f32.mxu0 0.0
      %908 = vmatmul.mubr.f32.gmra.mrb[0].mxu0 %v708
      %v909 = vpop.f32.mrb[0].mxu0
      %v910 = vadd.f32 %v557, %v909
      %v911 = vpop.f32.mrb[0].mxu0
      %912 = vmatprep.mubr.f32.mxu0 0.0
      %913 = vmatmul.mubr.f32.gmra.mrb[0].mxu0 %v711
      %v914 = vpop.f32.mrb[0].mxu0
      %v915 = vadd.f32 %v562, %v914
      %v916 = vpop.f32.mrb[0].mxu0
      %917 = vmatprep.mubr.f32.mxu0 0.0
      %918 = vmatmul.mubr.f32.gmra.mrb[0].mxu0 %v714
      %v919 = vpop.f32.mrb[0].mxu0
      %v920 = vadd.f32 %v567, %v919
      %v921 = vpop.f32.mrb[0].mxu0
      %922 = vmatprep.mubr.f32.mxu0 0.0
      %923 = vmatmul.mubr.f32.gmra.mrb[0].mxu0 %v717
      %v924 = vpop.f32.mrb[0].mxu0
      %v925 = vadd.f32 %v572, %v924
      %v926 = vpop.f32.mrb[0].mxu0
      %927 = vmatprep.mubr.f32.mxu0 0.0
      %928 = vmatmul.mubr.f32.gmra.mrb[0].mxu0 %v720
      %v929 = vpop.f32.mrb[0].mxu0
      %v930 = vadd.f32 %v577, %v929
      %v931 = vpop.f32.mrb[0].mxu0
      %932 = vmatprep.mubr.f32.mxu0 0.0
      %933 = vmatmul.mubr.f32.gmra.mrb[0].mxu0 %v723
      %v934 = vpop.f32.mrb[0].mxu0
      %v935 = vadd.f32 %v582, %v934
      %v936 = vpop.f32.mrb[0].mxu0
      %937 = vmatprep.mubr.f32.mxu0 0.0
      %938 = vmatmul.mubr.f32.gmra.mrb[0].mxu0 %v726
      %v939 = vpop.f32.mrb[0].mxu0
      %v940 = vadd.f32 %v587, %v939
      %v941 = vpop.f32.mrb[0].mxu0
      %942 = vmatprep.mubr.f32.mxu0 0.0
      %943 = vmatmul.mubr.f32.gmra.mrb[0].mxu0 %v729
      %v944 = vpop.f32.mrb[0].mxu0
      %v945 = vadd.f32 %v592, %v944
      %v946 = vpop.f32.mrb[0].mxu0
      %947 = vmatprep.mubr.f32.mxu0 0.0
      %948 = vmatmul.mubr.f32.gmra.mrb[0].mxu0 %v732
      %v949 = vpop.f32.mrb[0].mxu0
      %v950 = vadd.f32 %v597, %v949
      %v951 = vpop.f32.mrb[0].mxu0
      %952 = vmatprep.mubr.f32.mxu0 0.0
      %953 = vmatmul.mubr.f32.gmra.mrb[0].mxu0 %v735
      %v954 = vpop.f32.mrb[0].mxu0
      %v955 = vadd.f32 %v602, %v954
      %v956 = vpop.f32.mrb[0].mxu0
      %957 = vmatprep.mubr.f32.mxu0 0.0
      %958 = vmatmul.mubr.f32.gmra.mrb[0].mxu0 %v738
      %v959 = vpop.f32.mrb[0].mxu0
      %v960 = vadd.f32 %v607, %v959
      %v961 = vpop.f32.mrb[0].mxu0
      %962 = vmatprep.mubr.f32.mxu0 0.0
      %963 = vmatmul.mubr.f32.gmra.mrb[0].mxu0 %v741
      %v964 = vpop.f32.mrb[0].mxu0
      %v965 = vadd.f32 %v612, %v964
      %v966 = vpop.f32.mrb[0].mxu0
      %967 = vmatprep.mubr.f32.mxu0 0.0
      %968 = vmatmul.mubr.f32.gmra.mrb[0].mxu0 %v744
      %v969 = vpop.f32.mrb[0].mxu0
      %v970 = vadd.f32 %v617, %v969
      %v971 = vpop.f32.mrb[0].mxu0
      %972 = vmatprep.mubr.f32.mxu0 0.0
      %973 = vmatmul.mubr.f32.gmra.mrb[0].mxu0 %v747
      %v974 = vpop.f32.mrb[0].mxu0
      %v975 = vadd.f32 %v622, %v974
      %v976 = vpop.f32.mrb[0].mxu0
      %977 = vmatprep.mubr.f32.mxu0 0.0
      %978 = vmatmul.mubr.f32.gmra.mrb[0].mxu0 %v750
      %v979 = vpop.f32.mrb[0].mxu0
      %v980 = vadd.f32 %v627, %v979
      %v981 = vpop.f32.mrb[0].mxu0
      %982 = vmatprep.mubr.f32.mxu0 0.0
      %983 = vmatmul.mubr.f32.gmra.mrb[0].mxu0 %v753
      %v984 = vpop.f32.mrb[0].mxu0
      %v985 = vadd.f32 %v632, %v984
      %v986 = vpop.f32.mrb[0].mxu0
      %987 = vmatprep.mubr.f32.mxu0 0.0
      %988 = vmatmul.mubr.f32.gmra.mrb[0].mxu0 %v756
      %v989 = vpop.f32.mrb[0].mxu0
      %v990 = vadd.f32 %v637, %v989
      %v991 = vpop.f32.mrb[0].mxu0
      %992 = vmatprep.mubr.f32.mxu0 0.0
      %993 = vmatmul.mubr.f32.gmra.mrb[0].mxu0 %v759
      %v994 = vpop.f32.mrb[0].mxu0
      %v995 = vadd.f32 %v642, %v994
      %v996 = vpop.f32.mrb[0].mxu0
      %997 = vmatprep.mubr.f32.mxu0 0.0
      %998 = vmatmul.mubr.f32.gmra.mrb[0].mxu0 %v762
      %v999 = vpop.f32.mrb[0].mxu0
      %v1000 = vadd.f32 %v647, %v999
      %v1001 = vpop.f32.mrb[0].mxu0
      %1002 = vmatprep.mubr.f32.mxu0 0.0
      %1003 = vmatmul.mubr.f32.gmra.mrb[0].mxu0 %v765
      %v1004 = vpop.f32.mrb[0].mxu0
      %v1005 = vadd.f32 %v652, %v1004
      %v1006 = vpop.f32.mrb[0].mxu0
      %1007 = vmatprep.mubr.f32.mxu0 0.0
      %1008 = vmatmul.mubr.f32.gmra.mrb[0].mxu0 %v768
      %v1009 = vpop.f32.mrb[0].mxu0
      %v1010 = vadd.f32 %v657, %v1009
      %v1011 = vpop.f32.mrb[0].mxu0
      %1012 = vmatprep.mubr.f32.mxu0 0.0
      %1013 = vmatmul.mubr.f32.gmra.mrb[0].mxu0 %v771
      %v1014 = vpop.f32.mrb[0].mxu0
      %v1015 = vadd.f32 %v662, %v1014
      %v1016 = vpop.f32.mrb[0].mxu0
      %1017 = vdwg.mxu0
      %v1018 = vld [vmem:[%s226 + $0x2] sm:$0xff]
      %v1019 = vld [vmem:[%s226 + $0xa] sm:$0xff]
      %v1020 = vld [vmem:[%s226 + $0x12] sm:$0xff]
      %v1021 = vld [vmem:[%s226 + $0x1a] sm:$0xff]
      %v1022 = vld [vmem:[%s226 + $0x22] sm:$0xff]
      %v1023 = vld [vmem:[%s226 + $0x2a] sm:$0xff]
      %v1024 = vld [vmem:[%s226 + $0x32] sm:$0xff]
      %v1025 = vld [vmem:[%s226 + $0x3a] sm:$0xff]
      %v1026 = vld [vmem:[%s226 + $0x42] sm:$0xff]
      %v1027 = vld [vmem:[%s226 + $0x4a] sm:$0xff]
      %v1028 = vld [vmem:[%s226 + $0x52] sm:$0xff]
      %v1029 = vld [vmem:[%s226 + $0x5a] sm:$0xff]
      %v1030 = vld [vmem:[%s226 + $0x62] sm:$0xff]
      %v1031 = vld [vmem:[%s226 + $0x6a] sm:$0xff]
      %v1032 = vld [vmem:[%s226 + $0x72] sm:$0xff]
      %v1033 = vld [vmem:[%s226 + $0x7a] sm:$0xff]
      %v1034 = vld [vmem:[%s226 + $0x82] sm:$0xff]
      %v1035 = vld [vmem:[%s226 + $0x8a] sm:$0xff]
      %v1036 = vld [vmem:[%s226 + $0x92] sm:$0xff]
      %v1037 = vld [vmem:[%s226 + $0x9a] sm:$0xff]
      %v1038 = vld [vmem:[%s226 + $0xa2] sm:$0xff]
      %v1039 = vld [vmem:[%s226 + $0xaa] sm:$0xff]
      %v1040 = vld [vmem:[%s226 + $0xb2] sm:$0xff]
      %v1041 = vld [vmem:[%s226 + $0xba] sm:$0xff]
      %v1042 = vld [vmem:[%s226 + $0xc2] sm:$0xff]
      %v1043 = vld [vmem:[%s226 + $0xca] sm:$0xff]
      %v1044 = vld [vmem:[%s226 + $0xd2] sm:$0xff]
      %v1045 = vld [vmem:[%s226 + $0xda] sm:$0xff]
      %v1046 = vld [vmem:[%s226 + $0xe2] sm:$0xff]
      %v1047 = vld [vmem:[%s226 + $0xea] sm:$0xff]
      %v1048 = vld [vmem:[%s226 + $0xf2] sm:$0xff]
      %v1049 = vld [vmem:[%s226 + $0xfa] sm:$0xff]
      %v1050 = vld [vmem:[%s226 + $0x102] sm:$0xff]
      %v1051 = vld [vmem:[%s226 + $0x10a] sm:$0xff]
      %v1052 = vld [vmem:[%s226 + $0x112] sm:$0xff]
      %v1053 = vld [vmem:[%s226 + $0x11a] sm:$0xff]
      %s1054 = scalar_lea.vmem %s1, 16
      %v1055 = vld [vmem:[%s1054] sm:$0xff]
      %v1057 = vsel %vm311, %v1018, 0
      %v1060 = vsel %vm311, %v1019, 0
      %v1063 = vsel %vm311, %v1020, 0
      %v1066 = vsel %vm311, %v1021, 0
      %v1069 = vsel %vm311, %v1022, 0
      %v1072 = vsel %vm311, %v1023, 0
      %v1075 = vsel %vm311, %v1024, 0
      %v1078 = vsel %vm311, %v1025, 0
      %v1081 = vsel %vm311, %v1026, 0
      %v1084 = vsel %vm311, %v1027, 0
      %v1087 = vsel %vm311, %v1028, 0
      %v1090 = vsel %vm311, %v1029, 0
      %v1093 = vsel %vm311, %v1030, 0
      %v1096 = vsel %vm311, %v1031, 0
      %v1099 = vsel %vm311, %v1032, 0
      %v1102 = vsel %vm311, %v1033, 0
      %v1105 = vsel %vm311, %v1034, 0
      %v1108 = vsel %vm311, %v1035, 0
      %v1111 = vsel %vm311, %v1036, 0
      %v1114 = vsel %vm311, %v1037, 0
      %v1117 = vsel %vm311, %v1038, 0
      %v1120 = vsel %vm311, %v1039, 0
      %v1123 = vsel %vm311, %v1040, 0
      %v1126 = vsel %vm311, %v1041, 0
      %v1129 = vsel %vm311, %v1042, 0
      %v1132 = vsel %vm311, %v1043, 0
      %v1135 = vsel %vm311, %v1044, 0
      %v1138 = vsel %vm311, %v1045, 0
      %v1141 = vsel %vm311, %v1046, 0
      %v1144 = vsel %vm311, %v1047, 0
      %v1147 = vsel %vm311, %v1048, 0
      %v1150 = vsel %vm311, %v1049, 0
      %v1153 = vsel %vm311, %v1050, 0
      %v1156 = vsel %vm311, %v1051, 0
      %v1159 = vsel %vm311, %v1052, 0
      %v1162 = vsel %vm311, %v1053, 0
      %1164 = vmatprep.subr.mxu0 0.0
      %1165 = vmatpush1.msra.mxu0 %v1055
      %1166 = vmatprep.subr.mxu0 0.0
      %1167 = vmatpush1.msra.mxu0 0.0
      %1168 = vmatprep.subr.mxu0 0.0
      %1169 = vmatpush1.msra.mxu0 0.0
      %1170 = vmatprep.subr.mxu0 0.0
      %1171 = vmatpush1.msra.mxu0 0.0
      %1172 = vmatprep.subr.mxu0 0.0
      %1173 = vmatpush1.msra.mxu0 0.0
      %1174 = vmatprep.subr.mxu0 0.0
      %1175 = vmatpush1.msra.mxu0 0.0
      %1176 = vmatprep.subr.mxu0 0.0
      %1177 = vmatpush1.msra.mxu0 0.0
      %1178 = vmatprep.subr.mxu0 0.0
      %1179 = vmatpush1.msra.mxu0 0.0
      %1180 = vmatprep.subr.mxu0 0.0
      %1181 = vmatpush1.msra.mxu0 0.0
      %1182 = vmatprep.subr.mxu0 0.0
      %1183 = vmatpush1.msra.mxu0 0.0
      %1184 = vmatprep.subr.mxu0 0.0
      %1185 = vmatpush1.msra.mxu0 0.0
      %1186 = vmatprep.subr.mxu0 0.0
      %1187 = vmatpush1.msra.mxu0 0.0
      %1188 = vmatprep.subr.mxu0 0.0
      %1189 = vmatpush1.msra.mxu0 0.0
      %1190 = vmatprep.subr.mxu0 0.0
      %1191 = vmatpush1.msra.mxu0 0.0
      %1192 = vmatprep.subr.mxu0 0.0
      %1193 = vmatpush1.msra.mxu0 0.0
      %1194 = vmatprep.subr.mxu0 0.0
      %1195 = vmatpush1.msra.mxu0 0.0
      %1196 = vmatprep.subr.mxu0 0.0
      %1197 = vmatpush1.msra.mxu0 0.0
      %1198 = vmatprep.subr.mxu0 0.0
      %1199 = vmatpush1.msra.mxu0 0.0
      %1200 = vmatprep.subr.mxu0 0.0
      %1201 = vmatpush1.msra.mxu0 0.0
      %1202 = vmatprep.subr.mxu0 0.0
      %1203 = vmatpush1.msra.mxu0 0.0
      %1204 = vmatprep.subr.mxu0 0.0
      %1205 = vmatpush1.msra.mxu0 0.0
      %1206 = vmatprep.subr.mxu0 0.0
      %1207 = vmatpush1.msra.mxu0 0.0
      %1208 = vmatprep.subr.mxu0 0.0
      %1209 = vmatpush1.msra.mxu0 0.0
      %1210 = vmatprep.subr.mxu0 0.0
      %1211 = vmatpush1.msra.mxu0 0.0
      %1212 = vmatprep.subr.mxu0 0.0
      %1213 = vmatpush1.msra.mxu0 0.0
      %1214 = vmatprep.subr.mxu0 0.0
      %1215 = vmatpush1.msra.mxu0 0.0
      %1216 = vmatprep.subr.mxu0 0.0
      %1217 = vmatpush1.msra.mxu0 0.0
      %1218 = vmatprep.subr.mxu0 0.0
      %1219 = vmatpush1.msra.mxu0 0.0
      %1220 = vmatprep.subr.mxu0 0.0
      %1221 = vmatpush1.msra.mxu0 0.0
      %1222 = vmatprep.subr.mxu0 0.0
      %1223 = vmatpush1.msra.mxu0 0.0
      %1224 = vmatprep.subr.mxu0 0.0
      %1225 = vmatpush1.msra.mxu0 0.0
      %1226 = vmatprep.subr.mxu0 0.0
      %1227 = vmatpush1.msra.mxu0 0.0
      %1228 = vmatprep.mubr.f32.mxu0 0.0
      %1229 = vmatmul.mubr.f32.gmra.mrb[0].mxu0 %v1057
      %v1230 = vpop.f32.mrb[0].mxu0
      %v1231 = vadd.f32 0.0, %v1230
      %v1232 = vpop.f32.mrb[0].mxu0
      %1233 = vmatprep.mubr.f32.mxu0 0.0
      %1234 = vmatmul.mubr.f32.gmra.mrb[0].mxu0 %v1060
      %v1235 = vpop.f32.mrb[0].mxu0
      %v1236 = vadd.f32 0.0, %v1235
      %v1237 = vpop.f32.mrb[0].mxu0
      %1238 = vmatprep.mubr.f32.mxu0 0.0
      %1239 = vmatmul.mubr.f32.gmra.mrb[0].mxu0 %v1063
      %v1240 = vpop.f32.mrb[0].mxu0
      %v1241 = vadd.f32 0.0, %v1240
      %v1242 = vpop.f32.mrb[0].mxu0
      %1243 = vmatprep.mubr.f32.mxu0 0.0
      %1244 = vmatmul.mubr.f32.gmra.mrb[0].mxu0 %v1066
      %v1245 = vpop.f32.mrb[0].mxu0
      %v1246 = vadd.f32 0.0, %v1245
      %v1247 = vpop.f32.mrb[0].mxu0
      %1248 = vmatprep.mubr.f32.mxu0 0.0
      %1249 = vmatmul.mubr.f32.gmra.mrb[0].mxu0 %v1069
      %v1250 = vpop.f32.mrb[0].mxu0
      %v1251 = vadd.f32 0.0, %v1250
      %v1252 = vpop.f32.mrb[0].mxu0
      %1253 = vmatprep.mubr.f32.mxu0 0.0
      %1254 = vmatmul.mubr.f32.gmra.mrb[0].mxu0 %v1072
      %v1255 = vpop.f32.mrb[0].mxu0
      %v1256 = vadd.f32 0.0, %v1255
      %v1257 = vpop.f32.mrb[0].mxu0
      %1258 = vmatprep.mubr.f32.mxu0 0.0
      %1259 = vmatmul.mubr.f32.gmra.mrb[0].mxu0 %v1075
      %v1260 = vpop.f32.mrb[0].mxu0
      %v1261 = vadd.f32 0.0, %v1260
      %v1262 = vpop.f32.mrb[0].mxu0
      %1263 = vmatprep.mubr.f32.mxu0 0.0
      %1264 = vmatmul.mubr.f32.gmra.mrb[0].mxu0 %v1078
      %v1265 = vpop.f32.mrb[0].mxu0
      %v1266 = vadd.f32 0.0, %v1265
      %v1267 = vpop.f32.mrb[0].mxu0
      %1268 = vmatprep.mubr.f32.mxu0 0.0
      %1269 = vmatmul.mubr.f32.gmra.mrb[0].mxu0 %v1081
      %v1270 = vpop.f32.mrb[0].mxu0
      %v1271 = vadd.f32 0.0, %v1270
      %v1272 = vpop.f32.mrb[0].mxu0
      %1273 = vmatprep.mubr.f32.mxu0 0.0
      %1274 = vmatmul.mubr.f32.gmra.mrb[0].mxu0 %v1084
      %v1275 = vpop.f32.mrb[0].mxu0
      %v1276 = vadd.f32 0.0, %v1275
      %v1277 = vpop.f32.mrb[0].mxu0
      %1278 = vmatprep.mubr.f32.mxu0 0.0
      %1279 = vmatmul.mubr.f32.gmra.mrb[0].mxu0 %v1087
      %v1280 = vpop.f32.mrb[0].mxu0
      %v1281 = vadd.f32 0.0, %v1280
      %v1282 = vpop.f32.mrb[0].mxu0
      %1283 = vmatprep.mubr.f32.mxu0 0.0
      %1284 = vmatmul.mubr.f32.gmra.mrb[0].mxu0 %v1090
      %v1285 = vpop.f32.mrb[0].mxu0
      %v1286 = vadd.f32 0.0, %v1285
      %v1287 = vpop.f32.mrb[0].mxu0
      %1288 = vmatprep.mubr.f32.mxu0 0.0
      %1289 = vmatmul.mubr.f32.gmra.mrb[0].mxu0 %v1093
      %v1290 = vpop.f32.mrb[0].mxu0
      %v1291 = vadd.f32 0.0, %v1290
      %v1292 = vpop.f32.mrb[0].mxu0
      %1293 = vmatprep.mubr.f32.mxu0 0.0
      %1294 = vmatmul.mubr.f32.gmra.mrb[0].mxu0 %v1096
      %v1295 = vpop.f32.mrb[0].mxu0
      %v1296 = vadd.f32 0.0, %v1295
      %v1297 = vpop.f32.mrb[0].mxu0
      %1298 = vmatprep.mubr.f32.mxu0 0.0
      %1299 = vmatmul.mubr.f32.gmra.mrb[0].mxu0 %v1099
      %v1300 = vpop.f32.mrb[0].mxu0
      %v1301 = vadd.f32 0.0, %v1300
      %v1302 = vpop.f32.mrb[0].mxu0
      %1303 = vmatprep.mubr.f32.mxu0 0.0
      %1304 = vmatmul.mubr.f32.gmra.mrb[0].mxu0 %v1102
      %v1305 = vpop.f32.mrb[0].mxu0
      %v1306 = vadd.f32 0.0, %v1305
      %v1307 = vpop.f32.mrb[0].mxu0
      %1308 = vmatprep.mubr.f32.mxu0 0.0
      %1309 = vmatmul.mubr.f32.gmra.mrb[0].mxu0 %v1105
      %v1310 = vpop.f32.mrb[0].mxu0
      %v1311 = vadd.f32 0.0, %v1310
      %v1312 = vpop.f32.mrb[0].mxu0
      %1313 = vmatprep.mubr.f32.mxu0 0.0
      %1314 = vmatmul.mubr.f32.gmra.mrb[0].mxu0 %v1108
      %v1315 = vpop.f32.mrb[0].mxu0
      %v1316 = vadd.f32 0.0, %v1315
      %v1317 = vpop.f32.mrb[0].mxu0
      %1318 = vmatprep.mubr.f32.mxu0 0.0
      %1319 = vmatmul.mubr.f32.gmra.mrb[0].mxu0 %v1111
      %v1320 = vpop.f32.mrb[0].mxu0
      %v1321 = vadd.f32 0.0, %v1320
      %v1322 = vpop.f32.mrb[0].mxu0
      %1323 = vmatprep.mubr.f32.mxu0 0.0
      %1324 = vmatmul.mubr.f32.gmra.mrb[0].mxu0 %v1114
      %v1325 = vpop.f32.mrb[0].mxu0
      %v1326 = vadd.f32 0.0, %v1325
      %v1327 = vpop.f32.mrb[0].mxu0
      %1328 = vmatprep.mubr.f32.mxu0 0.0
      %1329 = vmatmul.mubr.f32.gmra.mrb[0].mxu0 %v1117
      %v1330 = vpop.f32.mrb[0].mxu0
      %v1331 = vadd.f32 0.0, %v1330
      %v1332 = vpop.f32.mrb[0].mxu0
      %1333 = vmatprep.mubr.f32.mxu0 0.0
      %1334 = vmatmul.mubr.f32.gmra.mrb[0].mxu0 %v1120
      %v1335 = vpop.f32.mrb[0].mxu0
      %v1336 = vadd.f32 0.0, %v1335
      %v1337 = vpop.f32.mrb[0].mxu0
      %1338 = vmatprep.mubr.f32.mxu0 0.0
      %1339 = vmatmul.mubr.f32.gmra.mrb[0].mxu0 %v1123
      %v1340 = vpop.f32.mrb[0].mxu0
      %v1341 = vadd.f32 0.0, %v1340
      %v1342 = vpop.f32.mrb[0].mxu0
      %1343 = vmatprep.mubr.f32.mxu0 0.0
      %1344 = vmatmul.mubr.f32.gmra.mrb[0].mxu0 %v1126
      %v1345 = vpop.f32.mrb[0].mxu0
      %v1346 = vadd.f32 0.0, %v1345
      %v1347 = vpop.f32.mrb[0].mxu0
      %1348 = vmatprep.mubr.f32.mxu0 0.0
      %1349 = vmatmul.mubr.f32.gmra.mrb[0].mxu0 %v1129
      %v1350 = vpop.f32.mrb[0].mxu0
      %v1351 = vadd.f32 0.0, %v1350
      %v1352 = vpop.f32.mrb[0].mxu0
      %1353 = vmatprep.mubr.f32.mxu0 0.0
      %1354 = vmatmul.mubr.f32.gmra.mrb[0].mxu0 %v1132
      %v1355 = vpop.f32.mrb[0].mxu0
      %v1356 = vadd.f32 0.0, %v1355
      %v1357 = vpop.f32.mrb[0].mxu0
      %1358 = vmatprep.mubr.f32.mxu0 0.0
      %1359 = vmatmul.mubr.f32.gmra.mrb[0].mxu0 %v1135
      %v1360 = vpop.f32.mrb[0].mxu0
      %v1361 = vadd.f32 0.0, %v1360
      %v1362 = vpop.f32.mrb[0].mxu0
      %1363 = vmatprep.mubr.f32.mxu0 0.0
      %1364 = vmatmul.mubr.f32.gmra.mrb[0].mxu0 %v1138
      %v1365 = vpop.f32.mrb[0].mxu0
      %v1366 = vadd.f32 0.0, %v1365
      %v1367 = vpop.f32.mrb[0].mxu0
      %1368 = vmatprep.mubr.f32.mxu0 0.0
      %1369 = vmatmul.mubr.f32.gmra.mrb[0].mxu0 %v1141
      %v1370 = vpop.f32.mrb[0].mxu0
      %v1371 = vadd.f32 0.0, %v1370
      %v1372 = vpop.f32.mrb[0].mxu0
      %1373 = vmatprep.mubr.f32.mxu0 0.0
      %1374 = vmatmul.mubr.f32.gmra.mrb[0].mxu0 %v1144
      %v1375 = vpop.f32.mrb[0].mxu0
      %v1376 = vadd.f32 0.0, %v1375
      %v1377 = vpop.f32.mrb[0].mxu0
      %1378 = vmatprep.mubr.f32.mxu0 0.0
      %1379 = vmatmul.mubr.f32.gmra.mrb[0].mxu0 %v1147
      %v1380 = vpop.f32.mrb[0].mxu0
      %v1381 = vadd.f32 0.0, %v1380
      %v1382 = vpop.f32.mrb[0].mxu0
      %1383 = vmatprep.mubr.f32.mxu0 0.0
      %1384 = vmatmul.mubr.f32.gmra.mrb[0].mxu0 %v1150
      %v1385 = vpop.f32.mrb[0].mxu0
      %v1386 = vadd.f32 0.0, %v1385
      %v1387 = vpop.f32.mrb[0].mxu0
      %1388 = vmatprep.mubr.f32.mxu0 0.0
      %1389 = vmatmul.mubr.f32.gmra.mrb[0].mxu0 %v1153
      %v1390 = vpop.f32.mrb[0].mxu0
      %v1391 = vadd.f32 0.0, %v1390
      %v1392 = vpop.f32.mrb[0].mxu0
      %1393 = vmatprep.mubr.f32.mxu0 0.0
      %1394 = vmatmul.mubr.f32.gmra.mrb[0].mxu0 %v1156
      %v1395 = vpop.f32.mrb[0].mxu0
      %v1396 = vadd.f32 0.0, %v1395
      %v1397 = vpop.f32.mrb[0].mxu0
      %1398 = vmatprep.mubr.f32.mxu0 0.0
      %1399 = vmatmul.mubr.f32.gmra.mrb[0].mxu0 %v1159
      %v1400 = vpop.f32.mrb[0].mxu0
      %v1401 = vadd.f32 0.0, %v1400
      %v1402 = vpop.f32.mrb[0].mxu0
      %1403 = vmatprep.mubr.f32.mxu0 0.0
      %1404 = vmatmul.mubr.f32.gmra.mrb[0].mxu0 %v1162
      %v1405 = vpop.f32.mrb[0].mxu0
      %v1406 = vadd.f32 0.0, %v1405
      %v1407 = vpop.f32.mrb[0].mxu0
      %1408 = vdwg.mxu0
      %v1409 = vadd.f32 %v840, %v1231
      %v1410 = vadd.f32 %v845, %v1236
      %v1411 = vadd.f32 %v850, %v1241
      %v1412 = vadd.f32 %v855, %v1246
      %v1413 = vadd.f32 %v860, %v1251
      %v1414 = vadd.f32 %v865, %v1256
      %v1415 = vadd.f32 %v870, %v1261
      %v1416 = vadd.f32 %v875, %v1266
      %v1417 = vadd.f32 %v880, %v1271
      %v1418 = vadd.f32 %v885, %v1276
      %v1419 = vadd.f32 %v890, %v1281
      %v1420 = vadd.f32 %v895, %v1286
      %v1421 = vadd.f32 %v900, %v1291
      %v1422 = vadd.f32 %v905, %v1296
      %v1423 = vadd.f32 %v910, %v1301
      %v1424 = vadd.f32 %v915, %v1306
      %v1425 = vadd.f32 %v920, %v1311
      %v1426 = vadd.f32 %v925, %v1316
      %v1427 = vadd.f32 %v930, %v1321
      %v1428 = vadd.f32 %v935, %v1326
      %v1429 = vadd.f32 %v940, %v1331
      %v1430 = vadd.f32 %v945, %v1336
      %v1431 = vadd.f32 %v950, %v1341
      %v1432 = vadd.f32 %v955, %v1346
      %v1433 = vadd.f32 %v960, %v1351
      %v1434 = vadd.f32 %v965, %v1356
      %v1435 = vadd.f32 %v970, %v1361
      %v1436 = vadd.f32 %v975, %v1366
      %v1437 = vadd.f32 %v980, %v1371
      %v1438 = vadd.f32 %v985, %v1376
      %v1439 = vadd.f32 %v990, %v1381
      %v1440 = vadd.f32 %v995, %v1386
      %v1441 = vadd.f32 %v1000, %v1391
      %v1442 = vadd.f32 %v1005, %v1396
      %v1443 = vadd.f32 %v1010, %v1401
      %v1444 = vadd.f32 %v1015, %v1406
      %v1445 = vld [vmem:[%s226 + $0x12] sm:$0xff]
      %v1446 = vld [vmem:[%s226 + $0x1a] sm:$0xff]
      %v1447 = vld [vmem:[%s226 + $0x22] sm:$0xff]
      %v1448 = vld [vmem:[%s226 + $0x2a] sm:$0xff]
      %v1449 = vld [vmem:[%s226 + $0x32] sm:$0xff]
      %v1450 = vld [vmem:[%s226 + $0x3a] sm:$0xff]
      %v1451 = vld [vmem:[%s226 + $0x42] sm:$0xff]
      %v1452 = vld [vmem:[%s226 + $0x4a] sm:$0xff]
      %v1453 = vld [vmem:[%s226 + $0x52] sm:$0xff]
      %v1454 = vld [vmem:[%s226 + $0x5a] sm:$0xff]
      %v1455 = vld [vmem:[%s226 + $0x62] sm:$0xff]
      %v1456 = vld [vmem:[%s226 + $0x6a] sm:$0xff]
      %v1457 = vld [vmem:[%s226 + $0x72] sm:$0xff]
      %v1458 = vld [vmem:[%s226 + $0x7a] sm:$0xff]
      %v1459 = vld [vmem:[%s226 + $0x82] sm:$0xff]
      %v1460 = vld [vmem:[%s226 + $0x8a] sm:$0xff]
      %v1461 = vld [vmem:[%s226 + $0x92] sm:$0xff]
      %v1462 = vld [vmem:[%s226 + $0x9a] sm:$0xff]
      %v1463 = vld [vmem:[%s226 + $0xa2] sm:$0xff]
      %v1464 = vld [vmem:[%s226 + $0xaa] sm:$0xff]
      %v1465 = vld [vmem:[%s226 + $0xb2] sm:$0xff]
      %v1466 = vld [vmem:[%s226 + $0xba] sm:$0xff]
      %v1467 = vld [vmem:[%s226 + $0xc2] sm:$0xff]
      %v1468 = vld [vmem:[%s226 + $0xca] sm:$0xff]
      %v1469 = vld [vmem:[%s226 + $0xd2] sm:$0xff]
      %v1470 = vld [vmem:[%s226 + $0xda] sm:$0xff]
      %v1471 = vld [vmem:[%s226 + $0xe2] sm:$0xff]
      %v1472 = vld [vmem:[%s226 + $0xea] sm:$0xff]
      %v1473 = vld [vmem:[%s226 + $0xf2] sm:$0xff]
      %v1474 = vld [vmem:[%s226 + $0xfa] sm:$0xff]
      %v1475 = vld [vmem:[%s226 + $0x102] sm:$0xff]
      %v1476 = vld [vmem:[%s226 + $0x10a] sm:$0xff]
      %v1477 = vld [vmem:[%s226 + $0x112] sm:$0xff]
      %v1478 = vld [vmem:[%s226 + $0x11a] sm:$0xff]
      %v1479 = vld [vmem:[%s226 + $0x122] sm:$0xff]
      %v1480 = vld [vmem:[%s226 + $0x12a] sm:$0xff]
      %s1481 = scalar_lea.vmem %s1, 24
      %v1482 = vld [vmem:[%s1481] sm:$0xff]
      %v1484 = vsel %vm311, %v1445, 0
      %v1487 = vsel %vm311, %v1446, 0
      %v1490 = vsel %vm311, %v1447, 0
      %v1493 = vsel %vm311, %v1448, 0
      %v1496 = vsel %vm311, %v1449, 0
      %v1499 = vsel %vm311, %v1450, 0
      %v1502 = vsel %vm311, %v1451, 0
      %v1505 = vsel %vm311, %v1452, 0
      %v1508 = vsel %vm311, %v1453, 0
      %v1511 = vsel %vm311, %v1454, 0
      %v1514 = vsel %vm311, %v1455, 0
      %v1517 = vsel %vm311, %v1456, 0
      %v1520 = vsel %vm311, %v1457, 0
      %v1523 = vsel %vm311, %v1458, 0
      %v1526 = vsel %vm311, %v1459, 0
      %v1529 = vsel %vm311, %v1460, 0
      %v1532 = vsel %vm311, %v1461, 0
      %v1535 = vsel %vm311, %v1462, 0
      %v1538 = vsel %vm311, %v1463, 0
      %v1541 = vsel %vm311, %v1464, 0
      %v1544 = vsel %vm311, %v1465, 0
      %v1547 = vsel %vm311, %v1466, 0
      %v1550 = vsel %vm311, %v1467, 0
      %v1553 = vsel %vm311, %v1468, 0
      %v1556 = vsel %vm311, %v1469, 0
      %v1559 = vsel %vm311, %v1470, 0
      %v1562 = vsel %vm311, %v1471, 0
      %v1565 = vsel %vm311, %v1472, 0
      %v1568 = vsel %vm311, %v1473, 0
      %v1571 = vsel %vm311, %v1474, 0
      %v1574 = vsel %vm311, %v1475, 0
      %v1577 = vsel %vm311, %v1476, 0
      %v1580 = vsel %vm311, %v1477, 0
      %v1583 = vsel %vm311, %v1478, 0
      %v1586 = vsel %vm311, %v1479, 0
      %v1589 = vsel %vm311, %v1480, 0
      %1591 = vmatprep.subr.mxu0 0.0
      %1592 = vmatpush1.msra.mxu0 %v1482
      %1593 = vmatprep.subr.mxu0 0.0
      %1594 = vmatpush1.msra.mxu0 0.0
      %1595 = vmatprep.subr.mxu0 0.0
      %1596 = vmatpush1.msra.mxu0 0.0
      %1597 = vmatprep.subr.mxu0 0.0
      %1598 = vmatpush1.msra.mxu0 0.0
      %1599 = vmatprep.subr.mxu0 0.0
      %1600 = vmatpush1.msra.mxu0 0.0
      %1601 = vmatprep.subr.mxu0 0.0
      %1602 = vmatpush1.msra.mxu0 0.0
      %1603 = vmatprep.subr.mxu0 0.0
      %1604 = vmatpush1.msra.mxu0 0.0
      %1605 = vmatprep.subr.mxu0 0.0
      %1606 = vmatpush1.msra.mxu0 0.0
      %1607 = vmatprep.subr.mxu0 0.0
      %1608 = vmatpush1.msra.mxu0 0.0
      %1609 = vmatprep.subr.mxu0 0.0
      %1610 = vmatpush1.msra.mxu0 0.0
      %1611 = vmatprep.subr.mxu0 0.0
      %1612 = vmatpush1.msra.mxu0 0.0
      %1613 = vmatprep.subr.mxu0 0.0
      %1614 = vmatpush1.msra.mxu0 0.0
      %1615 = vmatprep.subr.mxu0 0.0
      %1616 = vmatpush1.msra.mxu0 0.0
      %1617 = vmatprep.subr.mxu0 0.0
      %1618 = vmatpush1.msra.mxu0 0.0
      %1619 = vmatprep.subr.mxu0 0.0
      %1620 = vmatpush1.msra.mxu0 0.0
      %1621 = vmatprep.subr.mxu0 0.0
      %1622 = vmatpush1.msra.mxu0 0.0
      %1623 = vmatprep.subr.mxu0 0.0
      %1624 = vmatpush1.msra.mxu0 0.0
      %1625 = vmatprep.subr.mxu0 0.0
      %1626 = vmatpush1.msra.mxu0 0.0
      %1627 = vmatprep.subr.mxu0 0.0
      %1628 = vmatpush1.msra.mxu0 0.0
      %1629 = vmatprep.subr.mxu0 0.0
      %1630 = vmatpush1.msra.mxu0 0.0
      %1631 = vmatprep.subr.mxu0 0.0
      %1632 = vmatpush1.msra.mxu0 0.0
      %1633 = vmatprep.subr.mxu0 0.0
      %1634 = vmatpush1.msra.mxu0 0.0
      %1635 = vmatprep.subr.mxu0 0.0
      %1636 = vmatpush1.msra.mxu0 0.0
      %1637 = vmatprep.subr.mxu0 0.0
      %1638 = vmatpush1.msra.mxu0 0.0
      %1639 = vmatprep.subr.mxu0 0.0
      %1640 = vmatpush1.msra.mxu0 0.0
      %1641 = vmatprep.subr.mxu0 0.0
      %1642 = vmatpush1.msra.mxu0 0.0
      %1643 = vmatprep.subr.mxu0 0.0
      %1644 = vmatpush1.msra.mxu0 0.0
      %1645 = vmatprep.subr.mxu0 0.0
      %1646 = vmatpush1.msra.mxu0 0.0
      %1647 = vmatprep.subr.mxu0 0.0
      %1648 = vmatpush1.msra.mxu0 0.0
      %1649 = vmatprep.subr.mxu0 0.0
      %1650 = vmatpush1.msra.mxu0 0.0
      %1651 = vmatprep.subr.mxu0 0.0
      %1652 = vmatpush1.msra.mxu0 0.0
      %1653 = vmatprep.subr.mxu0 0.0
      %1654 = vmatpush1.msra.mxu0 0.0
      %1655 = vmatprep.mubr.f32.mxu0 0.0
      %1656 = vmatmul.mubr.f32.gmra.mrb[0].mxu0 %v1484
      %v1657 = vpop.f32.mrb[0].mxu0
      %v1658 = vadd.f32 0.0, %v1657
      %v1659 = vpop.f32.mrb[0].mxu0
      %1660 = vmatprep.mubr.f32.mxu0 0.0
      %1661 = vmatmul.mubr.f32.gmra.mrb[0].mxu0 %v1487
      %v1662 = vpop.f32.mrb[0].mxu0
      %v1663 = vadd.f32 0.0, %v1662
      %v1664 = vpop.f32.mrb[0].mxu0
      %1665 = vmatprep.mubr.f32.mxu0 0.0
      %1666 = vmatmul.mubr.f32.gmra.mrb[0].mxu0 %v1490
      %v1667 = vpop.f32.mrb[0].mxu0
      %v1668 = vadd.f32 0.0, %v1667
      %v1669 = vpop.f32.mrb[0].mxu0
      %1670 = vmatprep.mubr.f32.mxu0 0.0
      %1671 = vmatmul.mubr.f32.gmra.mrb[0].mxu0 %v1493
      %v1672 = vpop.f32.mrb[0].mxu0
      %v1673 = vadd.f32 0.0, %v1672
      %v1674 = vpop.f32.mrb[0].mxu0
      %1675 = vmatprep.mubr.f32.mxu0 0.0
      %1676 = vmatmul.mubr.f32.gmra.mrb[0].mxu0 %v1496
      %v1677 = vpop.f32.mrb[0].mxu0
      %v1678 = vadd.f32 0.0, %v1677
      %v1679 = vpop.f32.mrb[0].mxu0
      %1680 = vmatprep.mubr.f32.mxu0 0.0
      %1681 = vmatmul.mubr.f32.gmra.mrb[0].mxu0 %v1499
      %v1682 = vpop.f32.mrb[0].mxu0
      %v1683 = vadd.f32 0.0, %v1682
      %v1684 = vpop.f32.mrb[0].mxu0
      %1685 = vmatprep.mubr.f32.mxu0 0.0
      %1686 = vmatmul.mubr.f32.gmra.mrb[0].mxu0 %v1502
      %v1687 = vpop.f32.mrb[0].mxu0
      %v1688 = vadd.f32 0.0, %v1687
      %v1689 = vpop.f32.mrb[0].mxu0
      %1690 = vmatprep.mubr.f32.mxu0 0.0
      %1691 = vmatmul.mubr.f32.gmra.mrb[0].mxu0 %v1505
      %v1692 = vpop.f32.mrb[0].mxu0
      %v1693 = vadd.f32 0.0, %v1692
      %v1694 = vpop.f32.mrb[0].mxu0
      %1695 = vmatprep.mubr.f32.mxu0 0.0
      %1696 = vmatmul.mubr.f32.gmra.mrb[0].mxu0 %v1508
      %v1697 = vpop.f32.mrb[0].mxu0
      %v1698 = vadd.f32 0.0, %v1697
      %v1699 = vpop.f32.mrb[0].mxu0
      %1700 = vmatprep.mubr.f32.mxu0 0.0
      %1701 = vmatmul.mubr.f32.gmra.mrb[0].mxu0 %v1511
      %v1702 = vpop.f32.mrb[0].mxu0
      %v1703 = vadd.f32 0.0, %v1702
      %v1704 = vpop.f32.mrb[0].mxu0
      %1705 = vmatprep.mubr.f32.mxu0 0.0
      %1706 = vmatmul.mubr.f32.gmra.mrb[0].mxu0 %v1514
      %v1707 = vpop.f32.mrb[0].mxu0
      %v1708 = vadd.f32 0.0, %v1707
      %v1709 = vpop.f32.mrb[0].mxu0
      %1710 = vmatprep.mubr.f32.mxu0 0.0
      %1711 = vmatmul.mubr.f32.gmra.mrb[0].mxu0 %v1517
      %v1712 = vpop.f32.mrb[0].mxu0
      %v1713 = vadd.f32 0.0, %v1712
      %v1714 = vpop.f32.mrb[0].mxu0
      %1715 = vmatprep.mubr.f32.mxu0 0.0
      %1716 = vmatmul.mubr.f32.gmra.mrb[0].mxu0 %v1520
      %v1717 = vpop.f32.mrb[0].mxu0
      %v1718 = vadd.f32 0.0, %v1717
      %v1719 = vpop.f32.mrb[0].mxu0
      %1720 = vmatprep.mubr.f32.mxu0 0.0
      %1721 = vmatmul.mubr.f32.gmra.mrb[0].mxu0 %v1523
      %v1722 = vpop.f32.mrb[0].mxu0
      %v1723 = vadd.f32 0.0, %v1722
      %v1724 = vpop.f32.mrb[0].mxu0
      %1725 = vmatprep.mubr.f32.mxu0 0.0
      %1726 = vmatmul.mubr.f32.gmra.mrb[0].mxu0 %v1526
      %v1727 = vpop.f32.mrb[0].mxu0
      %v1728 = vadd.f32 0.0, %v1727
      %v1729 = vpop.f32.mrb[0].mxu0
      %1730 = vmatprep.mubr.f32.mxu0 0.0
      %1731 = vmatmul.mubr.f32.gmra.mrb[0].mxu0 %v1529
      %v1732 = vpop.f32.mrb[0].mxu0
      %v1733 = vadd.f32 0.0, %v1732
      %v1734 = vpop.f32.mrb[0].mxu0
      %1735 = vmatprep.mubr.f32.mxu0 0.0
      %1736 = vmatmul.mubr.f32.gmra.mrb[0].mxu0 %v1532
      %v1737 = vpop.f32.mrb[0].mxu0
      %v1738 = vadd.f32 0.0, %v1737
      %v1739 = vpop.f32.mrb[0].mxu0
      %1740 = vmatprep.mubr.f32.mxu0 0.0
      %1741 = vmatmul.mubr.f32.gmra.mrb[0].mxu0 %v1535
      %v1742 = vpop.f32.mrb[0].mxu0
      %v1743 = vadd.f32 0.0, %v1742
      %v1744 = vpop.f32.mrb[0].mxu0
      %1745 = vmatprep.mubr.f32.mxu0 0.0
      %1746 = vmatmul.mubr.f32.gmra.mrb[0].mxu0 %v1538
      %v1747 = vpop.f32.mrb[0].mxu0
      %v1748 = vadd.f32 0.0, %v1747
      %v1749 = vpop.f32.mrb[0].mxu0
      %1750 = vmatprep.mubr.f32.mxu0 0.0
      %1751 = vmatmul.mubr.f32.gmra.mrb[0].mxu0 %v1541
      %v1752 = vpop.f32.mrb[0].mxu0
      %v1753 = vadd.f32 0.0, %v1752
      %v1754 = vpop.f32.mrb[0].mxu0
      %1755 = vmatprep.mubr.f32.mxu0 0.0
      %1756 = vmatmul.mubr.f32.gmra.mrb[0].mxu0 %v1544
      %v1757 = vpop.f32.mrb[0].mxu0
      %v1758 = vadd.f32 0.0, %v1757
      %v1759 = vpop.f32.mrb[0].mxu0
      %1760 = vmatprep.mubr.f32.mxu0 0.0
      %1761 = vmatmul.mubr.f32.gmra.mrb[0].mxu0 %v1547
      %v1762 = vpop.f32.mrb[0].mxu0
      %v1763 = vadd.f32 0.0, %v1762
      %v1764 = vpop.f32.mrb[0].mxu0
      %1765 = vmatprep.mubr.f32.mxu0 0.0
      %1766 = vmatmul.mubr.f32.gmra.mrb[0].mxu0 %v1550
      %v1767 = vpop.f32.mrb[0].mxu0
      %v1768 = vadd.f32 0.0, %v1767
      %v1769 = vpop.f32.mrb[0].mxu0
      %1770 = vmatprep.mubr.f32.mxu0 0.0
      %1771 = vmatmul.mubr.f32.gmra.mrb[0].mxu0 %v1553
      %v1772 = vpop.f32.mrb[0].mxu0
      %v1773 = vadd.f32 0.0, %v1772
      %v1774 = vpop.f32.mrb[0].mxu0
      %1775 = vmatprep.mubr.f32.mxu0 0.0
      %1776 = vmatmul.mubr.f32.gmra.mrb[0].mxu0 %v1556
      %v1777 = vpop.f32.mrb[0].mxu0
      %v1778 = vadd.f32 0.0, %v1777
      %v1779 = vpop.f32.mrb[0].mxu0
      %1780 = vmatprep.mubr.f32.mxu0 0.0
      %1781 = vmatmul.mubr.f32.gmra.mrb[0].mxu0 %v1559
      %v1782 = vpop.f32.mrb[0].mxu0
      %v1783 = vadd.f32 0.0, %v1782
      %v1784 = vpop.f32.mrb[0].mxu0
      %1785 = vmatprep.mubr.f32.mxu0 0.0
      %1786 = vmatmul.mubr.f32.gmra.mrb[0].mxu0 %v1562
      %v1787 = vpop.f32.mrb[0].mxu0
      %v1788 = vadd.f32 0.0, %v1787
      %v1789 = vpop.f32.mrb[0].mxu0
      %1790 = vmatprep.mubr.f32.mxu0 0.0
      %1791 = vmatmul.mubr.f32.gmra.mrb[0].mxu0 %v1565
      %v1792 = vpop.f32.mrb[0].mxu0
      %v1793 = vadd.f32 0.0, %v1792
      %v1794 = vpop.f32.mrb[0].mxu0
      %1795 = vmatprep.mubr.f32.mxu0 0.0
      %1796 = vmatmul.mubr.f32.gmra.mrb[0].mxu0 %v1568
      %v1797 = vpop.f32.mrb[0].mxu0
      %v1798 = vadd.f32 0.0, %v1797
      %v1799 = vpop.f32.mrb[0].mxu0
      %1800 = vmatprep.mubr.f32.mxu0 0.0
      %1801 = vmatmul.mubr.f32.gmra.mrb[0].mxu0 %v1571
      %v1802 = vpop.f32.mrb[0].mxu0
      %v1803 = vadd.f32 0.0, %v1802
      %v1804 = vpop.f32.mrb[0].mxu0
      %1805 = vmatprep.mubr.f32.mxu0 0.0
      %1806 = vmatmul.mubr.f32.gmra.mrb[0].mxu0 %v1574
      %v1807 = vpop.f32.mrb[0].mxu0
      %v1808 = vadd.f32 0.0, %v1807
      %v1809 = vpop.f32.mrb[0].mxu0
      %1810 = vmatprep.mubr.f32.mxu0 0.0
      %1811 = vmatmul.mubr.f32.gmra.mrb[0].mxu0 %v1577
      %v1812 = vpop.f32.mrb[0].mxu0
      %v1813 = vadd.f32 0.0, %v1812
      %v1814 = vpop.f32.mrb[0].mxu0
      %1815 = vmatprep.mubr.f32.mxu0 0.0
      %1816 = vmatmul.mubr.f32.gmra.mrb[0].mxu0 %v1580
      %v1817 = vpop.f32.mrb[0].mxu0
      %v1818 = vadd.f32 0.0, %v1817
      %v1819 = vpop.f32.mrb[0].mxu0
      %1820 = vmatprep.mubr.f32.mxu0 0.0
      %1821 = vmatmul.mubr.f32.gmra.mrb[0].mxu0 %v1583
      %v1822 = vpop.f32.mrb[0].mxu0
      %v1823 = vadd.f32 0.0, %v1822
      %v1824 = vpop.f32.mrb[0].mxu0
      %1825 = vmatprep.mubr.f32.mxu0 0.0
      %1826 = vmatmul.mubr.f32.gmra.mrb[0].mxu0 %v1586
      %v1827 = vpop.f32.mrb[0].mxu0
      %v1828 = vadd.f32 0.0, %v1827
      %v1829 = vpop.f32.mrb[0].mxu0
      %1830 = vmatprep.mubr.f32.mxu0 0.0
      %1831 = vmatmul.mubr.f32.gmra.mrb[0].mxu0 %v1589
      %v1832 = vpop.f32.mrb[0].mxu0
      %v1833 = vadd.f32 0.0, %v1832
      %v1834 = vpop.f32.mrb[0].mxu0
      %1835 = vdwg.mxu0
      %v1836 = vadd.f32 %v1409, %v1658
      %v1837 = vadd.f32 %v1410, %v1663
      %v1838 = vadd.f32 %v1411, %v1668
      %v1839 = vadd.f32 %v1412, %v1673
      %v1840 = vadd.f32 %v1413, %v1678
      %v1841 = vadd.f32 %v1414, %v1683
      %v1842 = vadd.f32 %v1415, %v1688
      %v1843 = vadd.f32 %v1416, %v1693
      %v1844 = vadd.f32 %v1417, %v1698
      %v1845 = vadd.f32 %v1418, %v1703
      %v1846 = vadd.f32 %v1419, %v1708
      %v1847 = vadd.f32 %v1420, %v1713
      %v1848 = vadd.f32 %v1421, %v1718
      %v1849 = vadd.f32 %v1422, %v1723
      %v1850 = vadd.f32 %v1423, %v1728
      %v1851 = vadd.f32 %v1424, %v1733
      %v1852 = vadd.f32 %v1425, %v1738
      %v1853 = vadd.f32 %v1426, %v1743
      %v1854 = vadd.f32 %v1427, %v1748
      %v1855 = vadd.f32 %v1428, %v1753
      %v1856 = vadd.f32 %v1429, %v1758
      %v1857 = vadd.f32 %v1430, %v1763
      %v1858 = vadd.f32 %v1431, %v1768
      %v1859 = vadd.f32 %v1432, %v1773
      %v1860 = vadd.f32 %v1433, %v1778
      %v1861 = vadd.f32 %v1434, %v1783
      %v1862 = vadd.f32 %v1435, %v1788
      %v1863 = vadd.f32 %v1436, %v1793
      %v1864 = vadd.f32 %v1437, %v1798
      %v1865 = vadd.f32 %v1438, %v1803
      %v1866 = vadd.f32 %v1439, %v1808
      %v1867 = vadd.f32 %v1440, %v1813
      %v1868 = vadd.f32 %v1441, %v1818
      %v1869 = vadd.f32 %v1442, %v1823
      %v1870 = vadd.f32 %v1443, %v1828
      %v1871 = vadd.f32 %v1444, %v1833
      %v1872 = vld [vmem:[%s226 + $0x13] sm:$0xff]
      %v1873 = vld [vmem:[%s226 + $0x1b] sm:$0xff]
      %v1874 = vld [vmem:[%s226 + $0x23] sm:$0xff]
      %v1875 = vld [vmem:[%s226 + $0x2b] sm:$0xff]
      %v1876 = vld [vmem:[%s226 + $0x33] sm:$0xff]
      %v1877 = vld [vmem:[%s226 + $0x3b] sm:$0xff]
      %v1878 = vld [vmem:[%s226 + $0x43] sm:$0xff]
      %v1879 = vld [vmem:[%s226 + $0x4b] sm:$0xff]
      %v1880 = vld [vmem:[%s226 + $0x53] sm:$0xff]
      %v1881 = vld [vmem:[%s226 + $0x5b] sm:$0xff]
      %v1882 = vld [vmem:[%s226 + $0x63] sm:$0xff]
      %v1883 = vld [vmem:[%s226 + $0x6b] sm:$0xff]
      %v1884 = vld [vmem:[%s226 + $0x73] sm:$0xff]
      %v1885 = vld [vmem:[%s226 + $0x7b] sm:$0xff]
      %v1886 = vld [vmem:[%s226 + $0x83] sm:$0xff]
      %v1887 = vld [vmem:[%s226 + $0x8b] sm:$0xff]
      %v1888 = vld [vmem:[%s226 + $0x93] sm:$0xff]
      %v1889 = vld [vmem:[%s226 + $0x9b] sm:$0xff]
      %v1890 = vld [vmem:[%s226 + $0xa3] sm:$0xff]
      %v1891 = vld [vmem:[%s226 + $0xab] sm:$0xff]
      %v1892 = vld [vmem:[%s226 + $0xb3] sm:$0xff]
      %v1893 = vld [vmem:[%s226 + $0xbb] sm:$0xff]
      %v1894 = vld [vmem:[%s226 + $0xc3] sm:$0xff]
      %v1895 = vld [vmem:[%s226 + $0xcb] sm:$0xff]
      %v1896 = vld [vmem:[%s226 + $0xd3] sm:$0xff]
      %v1897 = vld [vmem:[%s226 + $0xdb] sm:$0xff]
      %v1898 = vld [vmem:[%s226 + $0xe3] sm:$0xff]
      %v1899 = vld [vmem:[%s226 + $0xeb] sm:$0xff]
      %v1900 = vld [vmem:[%s226 + $0xf3] sm:$0xff]
      %v1901 = vld [vmem:[%s226 + $0xfb] sm:$0xff]
      %v1902 = vld [vmem:[%s226 + $0x103] sm:$0xff]
      %v1903 = vld [vmem:[%s226 + $0x10b] sm:$0xff]
      %v1904 = vld [vmem:[%s226 + $0x113] sm:$0xff]
      %v1905 = vld [vmem:[%s226 + $0x11b] sm:$0xff]
      %v1906 = vld [vmem:[%s226 + $0x123] sm:$0xff]
      %v1907 = vld [vmem:[%s226 + $0x12b] sm:$0xff]
      %s1908 = scalar_lea.vmem %s1, 32
      %v1909 = vld [vmem:[%s1908] sm:$0xff]
      %v1911 = vsel %vm311, %v1872, 0
      %v1914 = vsel %vm311, %v1873, 0
      %v1917 = vsel %vm311, %v1874, 0
      %v1920 = vsel %vm311, %v1875, 0
      %v1923 = vsel %vm311, %v1876, 0
      %v1926 = vsel %vm311, %v1877, 0
      %v1929 = vsel %vm311, %v1878, 0
      %v1932 = vsel %vm311, %v1879, 0
      %v1935 = vsel %vm311, %v1880, 0
      %v1938 = vsel %vm311, %v1881, 0
      %v1941 = vsel %vm311, %v1882, 0
      %v1944 = vsel %vm311, %v1883, 0
      %v1947 = vsel %vm311, %v1884, 0
      %v1950 = vsel %vm311, %v1885, 0
      %v1953 = vsel %vm311, %v1886, 0
      %v1956 = vsel %vm311, %v1887, 0
      %v1959 = vsel %vm311, %v1888, 0
      %v1962 = vsel %vm311, %v1889, 0
      %v1965 = vsel %vm311, %v1890, 0
      %v1968 = vsel %vm311, %v1891, 0
      %v1971 = vsel %vm311, %v1892, 0
      %v1974 = vsel %vm311, %v1893, 0
      %v1977 = vsel %vm311, %v1894, 0
      %v1980 = vsel %vm311, %v1895, 0
      %v1983 = vsel %vm311, %v1896, 0
      %v1986 = vsel %vm311, %v1897, 0
      %v1989 = vsel %vm311, %v1898, 0
      %v1992 = vsel %vm311, %v1899, 0
      %v1995 = vsel %vm311, %v1900, 0
      %v1998 = vsel %vm311, %v1901, 0
      %v2001 = vsel %vm311, %v1902, 0
      %v2004 = vsel %vm311, %v1903, 0
      %v2007 = vsel %vm311, %v1904, 0
      %v2010 = vsel %vm311, %v1905, 0
      %v2013 = vsel %vm311, %v1906, 0
      %v2016 = vsel %vm311, %v1907, 0
      %2018 = vmatprep.subr.mxu0 0.0
      %2019 = vmatpush1.msra.mxu0 %v1909
      %2020 = vmatprep.subr.mxu0 0.0
      %2021 = vmatpush1.msra.mxu0 0.0
      %2022 = vmatprep.subr.mxu0 0.0
      %2023 = vmatpush1.msra.mxu0 0.0
      %2024 = vmatprep.subr.mxu0 0.0
      %2025 = vmatpush1.msra.mxu0 0.0
      %2026 = vmatprep.subr.mxu0 0.0
      %2027 = vmatpush1.msra.mxu0 0.0
      %2028 = vmatprep.subr.mxu0 0.0
      %2029 = vmatpush1.msra.mxu0 0.0
      %2030 = vmatprep.subr.mxu0 0.0
      %2031 = vmatpush1.msra.mxu0 0.0
      %2032 = vmatprep.subr.mxu0 0.0
      %2033 = vmatpush1.msra.mxu0 0.0
      %2034 = vmatprep.subr.mxu0 0.0
      %2035 = vmatpush1.msra.mxu0 0.0
      %2036 = vmatprep.subr.mxu0 0.0
      %2037 = vmatpush1.msra.mxu0 0.0
      %2038 = vmatprep.subr.mxu0 0.0
      %2039 = vmatpush1.msra.mxu0 0.0
      %2040 = vmatprep.subr.mxu0 0.0
      %2041 = vmatpush1.msra.mxu0 0.0
      %2042 = vmatprep.subr.mxu0 0.0
      %2043 = vmatpush1.msra.mxu0 0.0
      %2044 = vmatprep.subr.mxu0 0.0
      %2045 = vmatpush1.msra.mxu0 0.0
      %2046 = vmatprep.subr.mxu0 0.0
      %2047 = vmatpush1.msra.mxu0 0.0
      %2048 = vmatprep.subr.mxu0 0.0
      %2049 = vmatpush1.msra.mxu0 0.0
      %2050 = vmatprep.subr.mxu0 0.0
      %2051 = vmatpush1.msra.mxu0 0.0
      %2052 = vmatprep.subr.mxu0 0.0
      %2053 = vmatpush1.msra.mxu0 0.0
      %2054 = vmatprep.subr.mxu0 0.0
      %2055 = vmatpush1.msra.mxu0 0.0
      %2056 = vmatprep.subr.mxu0 0.0
      %2057 = vmatpush1.msra.mxu0 0.0
      %2058 = vmatprep.subr.mxu0 0.0
      %2059 = vmatpush1.msra.mxu0 0.0
      %2060 = vmatprep.subr.mxu0 0.0
      %2061 = vmatpush1.msra.mxu0 0.0
      %2062 = vmatprep.subr.mxu0 0.0
      %2063 = vmatpush1.msra.mxu0 0.0
      %2064 = vmatprep.subr.mxu0 0.0
      %2065 = vmatpush1.msra.mxu0 0.0
      %2066 = vmatprep.subr.mxu0 0.0
      %2067 = vmatpush1.msra.mxu0 0.0
      %2068 = vmatprep.subr.mxu0 0.0
      %2069 = vmatpush1.msra.mxu0 0.0
      %2070 = vmatprep.subr.mxu0 0.0
      %2071 = vmatpush1.msra.mxu0 0.0
      %2072 = vmatprep.subr.mxu0 0.0
      %2073 = vmatpush1.msra.mxu0 0.0
      %2074 = vmatprep.subr.mxu0 0.0
      %2075 = vmatpush1.msra.mxu0 0.0
      %2076 = vmatprep.subr.mxu0 0.0
      %2077 = vmatpush1.msra.mxu0 0.0
      %2078 = vmatprep.subr.mxu0 0.0
      %2079 = vmatpush1.msra.mxu0 0.0
      %2080 = vmatprep.subr.mxu0 0.0
      %2081 = vmatpush1.msra.mxu0 0.0
      %2082 = vmatprep.mubr.f32.mxu0 0.0
      %2083 = vmatmul.mubr.f32.gmra.mrb[0].mxu0 %v1911
      %v2084 = vpop.f32.mrb[0].mxu0
      %v2085 = vadd.f32 0.0, %v2084
      %v2086 = vpop.f32.mrb[0].mxu0
      %2087 = vmatprep.mubr.f32.mxu0 0.0
      %2088 = vmatmul.mubr.f32.gmra.mrb[0].mxu0 %v1914
      %v2089 = vpop.f32.mrb[0].mxu0
      %v2090 = vadd.f32 0.0, %v2089
      %v2091 = vpop.f32.mrb[0].mxu0
      %2092 = vmatprep.mubr.f32.mxu0 0.0
      %2093 = vmatmul.mubr.f32.gmra.mrb[0].mxu0 %v1917
      %v2094 = vpop.f32.mrb[0].mxu0
      %v2095 = vadd.f32 0.0, %v2094
      %v2096 = vpop.f32.mrb[0].mxu0
      %2097 = vmatprep.mubr.f32.mxu0 0.0
      %2098 = vmatmul.mubr.f32.gmra.mrb[0].mxu0 %v1920
      %v2099 = vpop.f32.mrb[0].mxu0
      %v2100 = vadd.f32 0.0, %v2099
      %v2101 = vpop.f32.mrb[0].mxu0
      %2102 = vmatprep.mubr.f32.mxu0 0.0
      %2103 = vmatmul.mubr.f32.gmra.mrb[0].mxu0 %v1923
      %v2104 = vpop.f32.mrb[0].mxu0
      %v2105 = vadd.f32 0.0, %v2104
      %v2106 = vpop.f32.mrb[0].mxu0
      %2107 = vmatprep.mubr.f32.mxu0 0.0
      %2108 = vmatmul.mubr.f32.gmra.mrb[0].mxu0 %v1926
      %v2109 = vpop.f32.mrb[0].mxu0
      %v2110 = vadd.f32 0.0, %v2109
      %v2111 = vpop.f32.mrb[0].mxu0
      %2112 = vmatprep.mubr.f32.mxu0 0.0
      %2113 = vmatmul.mubr.f32.gmra.mrb[0].mxu0 %v1929
      %v2114 = vpop.f32.mrb[0].mxu0
      %v2115 = vadd.f32 0.0, %v2114
      %v2116 = vpop.f32.mrb[0].mxu0
      %2117 = vmatprep.mubr.f32.mxu0 0.0
      %2118 = vmatmul.mubr.f32.gmra.mrb[0].mxu0 %v1932
      %v2119 = vpop.f32.mrb[0].mxu0
      %v2120 = vadd.f32 0.0, %v2119
      %v2121 = vpop.f32.mrb[0].mxu0
      %2122 = vmatprep.mubr.f32.mxu0 0.0
      %2123 = vmatmul.mubr.f32.gmra.mrb[0].mxu0 %v1935
      %v2124 = vpop.f32.mrb[0].mxu0
      %v2125 = vadd.f32 0.0, %v2124
      %v2126 = vpop.f32.mrb[0].mxu0
      %2127 = vmatprep.mubr.f32.mxu0 0.0
      %2128 = vmatmul.mubr.f32.gmra.mrb[0].mxu0 %v1938
      %v2129 = vpop.f32.mrb[0].mxu0
      %v2130 = vadd.f32 0.0, %v2129
      %v2131 = vpop.f32.mrb[0].mxu0
      %2132 = vmatprep.mubr.f32.mxu0 0.0
      %2133 = vmatmul.mubr.f32.gmra.mrb[0].mxu0 %v1941
      %v2134 = vpop.f32.mrb[0].mxu0
      %v2135 = vadd.f32 0.0, %v2134
      %v2136 = vpop.f32.mrb[0].mxu0
      %2137 = vmatprep.mubr.f32.mxu0 0.0
      %2138 = vmatmul.mubr.f32.gmra.mrb[0].mxu0 %v1944
      %v2139 = vpop.f32.mrb[0].mxu0
      %v2140 = vadd.f32 0.0, %v2139
      %v2141 = vpop.f32.mrb[0].mxu0
      %2142 = vmatprep.mubr.f32.mxu0 0.0
      %2143 = vmatmul.mubr.f32.gmra.mrb[0].mxu0 %v1947
      %v2144 = vpop.f32.mrb[0].mxu0
      %v2145 = vadd.f32 0.0, %v2144
      %v2146 = vpop.f32.mrb[0].mxu0
      %2147 = vmatprep.mubr.f32.mxu0 0.0
      %2148 = vmatmul.mubr.f32.gmra.mrb[0].mxu0 %v1950
      %v2149 = vpop.f32.mrb[0].mxu0
      %v2150 = vadd.f32 0.0, %v2149
      %v2151 = vpop.f32.mrb[0].mxu0
      %2152 = vmatprep.mubr.f32.mxu0 0.0
      %2153 = vmatmul.mubr.f32.gmra.mrb[0].mxu0 %v1953
      %v2154 = vpop.f32.mrb[0].mxu0
      %v2155 = vadd.f32 0.0, %v2154
      %v2156 = vpop.f32.mrb[0].mxu0
      %2157 = vmatprep.mubr.f32.mxu0 0.0
      %2158 = vmatmul.mubr.f32.gmra.mrb[0].mxu0 %v1956
      %v2159 = vpop.f32.mrb[0].mxu0
      %v2160 = vadd.f32 0.0, %v2159
      %v2161 = vpop.f32.mrb[0].mxu0
      %2162 = vmatprep.mubr.f32.mxu0 0.0
      %2163 = vmatmul.mubr.f32.gmra.mrb[0].mxu0 %v1959
      %v2164 = vpop.f32.mrb[0].mxu0
      %v2165 = vadd.f32 0.0, %v2164
      %v2166 = vpop.f32.mrb[0].mxu0
      %2167 = vmatprep.mubr.f32.mxu0 0.0
      %2168 = vmatmul.mubr.f32.gmra.mrb[0].mxu0 %v1962
      %v2169 = vpop.f32.mrb[0].mxu0
      %v2170 = vadd.f32 0.0, %v2169
      %v2171 = vpop.f32.mrb[0].mxu0
      %2172 = vmatprep.mubr.f32.mxu0 0.0
      %2173 = vmatmul.mubr.f32.gmra.mrb[0].mxu0 %v1965
      %v2174 = vpop.f32.mrb[0].mxu0
      %v2175 = vadd.f32 0.0, %v2174
      %v2176 = vpop.f32.mrb[0].mxu0
      %2177 = vmatprep.mubr.f32.mxu0 0.0
      %2178 = vmatmul.mubr.f32.gmra.mrb[0].mxu0 %v1968
      %v2179 = vpop.f32.mrb[0].mxu0
      %v2180 = vadd.f32 0.0, %v2179
      %v2181 = vpop.f32.mrb[0].mxu0
      %2182 = vmatprep.mubr.f32.mxu0 0.0
      %2183 = vmatmul.mubr.f32.gmra.mrb[0].mxu0 %v1971
      %v2184 = vpop.f32.mrb[0].mxu0
      %v2185 = vadd.f32 0.0, %v2184
      %v2186 = vpop.f32.mrb[0].mxu0
      %2187 = vmatprep.mubr.f32.mxu0 0.0
      %2188 = vmatmul.mubr.f32.gmra.mrb[0].mxu0 %v1974
      %v2189 = vpop.f32.mrb[0].mxu0
      %v2190 = vadd.f32 0.0, %v2189
      %v2191 = vpop.f32.mrb[0].mxu0
      %2192 = vmatprep.mubr.f32.mxu0 0.0
      %2193 = vmatmul.mubr.f32.gmra.mrb[0].mxu0 %v1977
      %v2194 = vpop.f32.mrb[0].mxu0
      %v2195 = vadd.f32 0.0, %v2194
      %v2196 = vpop.f32.mrb[0].mxu0
      %2197 = vmatprep.mubr.f32.mxu0 0.0
      %2198 = vmatmul.mubr.f32.gmra.mrb[0].mxu0 %v1980
      %v2199 = vpop.f32.mrb[0].mxu0
      %v2200 = vadd.f32 0.0, %v2199
      %v2201 = vpop.f32.mrb[0].mxu0
      %2202 = vmatprep.mubr.f32.mxu0 0.0
      %2203 = vmatmul.mubr.f32.gmra.mrb[0].mxu0 %v1983
      %v2204 = vpop.f32.mrb[0].mxu0
      %v2205 = vadd.f32 0.0, %v2204
      %v2206 = vpop.f32.mrb[0].mxu0
      %2207 = vmatprep.mubr.f32.mxu0 0.0
      %2208 = vmatmul.mubr.f32.gmra.mrb[0].mxu0 %v1986
      %v2209 = vpop.f32.mrb[0].mxu0
      %v2210 = vadd.f32 0.0, %v2209
      %v2211 = vpop.f32.mrb[0].mxu0
      %2212 = vmatprep.mubr.f32.mxu0 0.0
      %2213 = vmatmul.mubr.f32.gmra.mrb[0].mxu0 %v1989
      %v2214 = vpop.f32.mrb[0].mxu0
      %v2215 = vadd.f32 0.0, %v2214
      %v2216 = vpop.f32.mrb[0].mxu0
      %2217 = vmatprep.mubr.f32.mxu0 0.0
      %2218 = vmatmul.mubr.f32.gmra.mrb[0].mxu0 %v1992
      %v2219 = vpop.f32.mrb[0].mxu0
      %v2220 = vadd.f32 0.0, %v2219
      %v2221 = vpop.f32.mrb[0].mxu0
      %2222 = vmatprep.mubr.f32.mxu0 0.0
      %2223 = vmatmul.mubr.f32.gmra.mrb[0].mxu0 %v1995
      %v2224 = vpop.f32.mrb[0].mxu0
      %v2225 = vadd.f32 0.0, %v2224
      %v2226 = vpop.f32.mrb[0].mxu0
      %2227 = vmatprep.mubr.f32.mxu0 0.0
      %2228 = vmatmul.mubr.f32.gmra.mrb[0].mxu0 %v1998
      %v2229 = vpop.f32.mrb[0].mxu0
      %v2230 = vadd.f32 0.0, %v2229
      %v2231 = vpop.f32.mrb[0].mxu0
      %2232 = vmatprep.mubr.f32.mxu0 0.0
      %2233 = vmatmul.mubr.f32.gmra.mrb[0].mxu0 %v2001
      %v2234 = vpop.f32.mrb[0].mxu0
      %v2235 = vadd.f32 0.0, %v2234
      %v2236 = vpop.f32.mrb[0].mxu0
      %2237 = vmatprep.mubr.f32.mxu0 0.0
      %2238 = vmatmul.mubr.f32.gmra.mrb[0].mxu0 %v2004
      %v2239 = vpop.f32.mrb[0].mxu0
      %v2240 = vadd.f32 0.0, %v2239
      %v2241 = vpop.f32.mrb[0].mxu0
      %2242 = vmatprep.mubr.f32.mxu0 0.0
      %2243 = vmatmul.mubr.f32.gmra.mrb[0].mxu0 %v2007
      %v2244 = vpop.f32.mrb[0].mxu0
      %v2245 = vadd.f32 0.0, %v2244
      %v2246 = vpop.f32.mrb[0].mxu0
      %2247 = vmatprep.mubr.f32.mxu0 0.0
      %2248 = vmatmul.mubr.f32.gmra.mrb[0].mxu0 %v2010
      %v2249 = vpop.f32.mrb[0].mxu0
      %v2250 = vadd.f32 0.0, %v2249
      %v2251 = vpop.f32.mrb[0].mxu0
      %2252 = vmatprep.mubr.f32.mxu0 0.0
      %2253 = vmatmul.mubr.f32.gmra.mrb[0].mxu0 %v2013
      %v2254 = vpop.f32.mrb[0].mxu0
      %v2255 = vadd.f32 0.0, %v2254
      %v2256 = vpop.f32.mrb[0].mxu0
      %2257 = vmatprep.mubr.f32.mxu0 0.0
      %2258 = vmatmul.mubr.f32.gmra.mrb[0].mxu0 %v2016
      %v2259 = vpop.f32.mrb[0].mxu0
      %v2260 = vadd.f32 0.0, %v2259
      %v2261 = vpop.f32.mrb[0].mxu0
      %2262 = vdwg.mxu0
      %v2263 = vadd.f32 %v1836, %v2085
      %v2264 = vadd.f32 %v1837, %v2090
      %v2265 = vadd.f32 %v1838, %v2095
      %v2266 = vadd.f32 %v1839, %v2100
      %v2267 = vadd.f32 %v1840, %v2105
      %v2268 = vadd.f32 %v1841, %v2110
      %v2269 = vadd.f32 %v1842, %v2115
      %v2270 = vadd.f32 %v1843, %v2120
      %v2271 = vadd.f32 %v1844, %v2125
      %v2272 = vadd.f32 %v1845, %v2130
      %v2273 = vadd.f32 %v1846, %v2135
      %v2274 = vadd.f32 %v1847, %v2140
      %v2275 = vadd.f32 %v1848, %v2145
      %v2276 = vadd.f32 %v1849, %v2150
      %v2277 = vadd.f32 %v1850, %v2155
      %v2278 = vadd.f32 %v1851, %v2160
      %v2279 = vadd.f32 %v1852, %v2165
      %v2280 = vadd.f32 %v1853, %v2170
      %v2281 = vadd.f32 %v1854, %v2175
      %v2282 = vadd.f32 %v1855, %v2180
      %v2283 = vadd.f32 %v1856, %v2185
      %v2284 = vadd.f32 %v1857, %v2190
      %v2285 = vadd.f32 %v1858, %v2195
      %v2286 = vadd.f32 %v1859, %v2200
      %v2287 = vadd.f32 %v1860, %v2205
      %v2288 = vadd.f32 %v1861, %v2210
      %v2289 = vadd.f32 %v1862, %v2215
      %v2290 = vadd.f32 %v1863, %v2220
      %v2291 = vadd.f32 %v1864, %v2225
      %v2292 = vadd.f32 %v1865, %v2230
      %v2293 = vadd.f32 %v1866, %v2235
      %v2294 = vadd.f32 %v1867, %v2240
      %v2295 = vadd.f32 %v1868, %v2245
      %v2296 = vadd.f32 %v1869, %v2250
      %v2297 = vadd.f32 %v1870, %v2255
      %v2298 = vadd.f32 %v1871, %v2260
      %v2299 = vld [vmem:[%s226 + $0x14] sm:$0xff]
      %v2300 = vld [vmem:[%s226 + $0x1c] sm:$0xff]
      %v2301 = vld [vmem:[%s226 + $0x24] sm:$0xff]
      %v2302 = vld [vmem:[%s226 + $0x2c] sm:$0xff]
      %v2303 = vld [vmem:[%s226 + $0x34] sm:$0xff]
      %v2304 = vld [vmem:[%s226 + $0x3c] sm:$0xff]
      %v2305 = vld [vmem:[%s226 + $0x44] sm:$0xff]
      %v2306 = vld [vmem:[%s226 + $0x4c] sm:$0xff]
      %v2307 = vld [vmem:[%s226 + $0x54] sm:$0xff]
      %v2308 = vld [vmem:[%s226 + $0x5c] sm:$0xff]
      %v2309 = vld [vmem:[%s226 + $0x64] sm:$0xff]
      %v2310 = vld [vmem:[%s226 + $0x6c] sm:$0xff]
      %v2311 = vld [vmem:[%s226 + $0x74] sm:$0xff]
      %v2312 = vld [vmem:[%s226 + $0x7c] sm:$0xff]
      %v2313 = vld [vmem:[%s226 + $0x84] sm:$0xff]
      %v2314 = vld [vmem:[%s226 + $0x8c] sm:$0xff]
      %v2315 = vld [vmem:[%s226 + $0x94] sm:$0xff]
      %v2316 = vld [vmem:[%s226 + $0x9c] sm:$0xff]
      %v2317 = vld [vmem:[%s226 + $0xa4] sm:$0xff]
      %v2318 = vld [vmem:[%s226 + $0xac] sm:$0xff]
      %v2319 = vld [vmem:[%s226 + $0xb4] sm:$0xff]
      %v2320 = vld [vmem:[%s226 + $0xbc] sm:$0xff]
      %v2321 = vld [vmem:[%s226 + $0xc4] sm:$0xff]
      %v2322 = vld [vmem:[%s226 + $0xcc] sm:$0xff]
      %v2323 = vld [vmem:[%s226 + $0xd4] sm:$0xff]
      %v2324 = vld [vmem:[%s226 + $0xdc] sm:$0xff]
      %v2325 = vld [vmem:[%s226 + $0xe4] sm:$0xff]
      %v2326 = vld [vmem:[%s226 + $0xec] sm:$0xff]
      %v2327 = vld [vmem:[%s226 + $0xf4] sm:$0xff]
      %v2328 = vld [vmem:[%s226 + $0xfc] sm:$0xff]
      %v2329 = vld [vmem:[%s226 + $0x104] sm:$0xff]
      %v2330 = vld [vmem:[%s226 + $0x10c] sm:$0xff]
      %v2331 = vld [vmem:[%s226 + $0x114] sm:$0xff]
      %v2332 = vld [vmem:[%s226 + $0x11c] sm:$0xff]
      %v2333 = vld [vmem:[%s226 + $0x124] sm:$0xff]
      %v2334 = vld [vmem:[%s226 + $0x12c] sm:$0xff]
      %s2335 = scalar_lea.vmem %s1, 40
      %v2336 = vld [vmem:[%s2335] sm:$0xff]
      %v2338 = vsel %vm311, %v2299, 0
      %v2341 = vsel %vm311, %v2300, 0
      %v2344 = vsel %vm311, %v2301, 0
      %v2347 = vsel %vm311, %v2302, 0
      %v2350 = vsel %vm311, %v2303, 0
      %v2353 = vsel %vm311, %v2304, 0
      %v2356 = vsel %vm311, %v2305, 0
      %v2359 = vsel %vm311, %v2306, 0
      %v2362 = vsel %vm311, %v2307, 0
      %v2365 = vsel %vm311, %v2308, 0
      %v2368 = vsel %vm311, %v2309, 0
      %v2371 = vsel %vm311, %v2310, 0
      %v2374 = vsel %vm311, %v2311, 0
      %v2377 = vsel %vm311, %v2312, 0
      %v2380 = vsel %vm311, %v2313, 0
      %v2383 = vsel %vm311, %v2314, 0
      %v2386 = vsel %vm311, %v2315, 0
      %v2389 = vsel %vm311, %v2316, 0
      %v2392 = vsel %vm311, %v2317, 0
      %v2395 = vsel %vm311, %v2318, 0
      %v2398 = vsel %vm311, %v2319, 0
      %v2401 = vsel %vm311, %v2320, 0
      %v2404 = vsel %vm311, %v2321, 0
      %v2407 = vsel %vm311, %v2322, 0
      %v2410 = vsel %vm311, %v2323, 0
      %v2413 = vsel %vm311, %v2324, 0
      %v2416 = vsel %vm311, %v2325, 0
      %v2419 = vsel %vm311, %v2326, 0
      %v2422 = vsel %vm311, %v2327, 0
      %v2425 = vsel %vm311, %v2328, 0
      %v2428 = vsel %vm311, %v2329, 0
      %v2431 = vsel %vm311, %v2330, 0
      %v2434 = vsel %vm311, %v2331, 0
      %v2437 = vsel %vm311, %v2332, 0
      %v2440 = vsel %vm311, %v2333, 0
      %v2443 = vsel %vm311, %v2334, 0
      %2445 = vmatprep.subr.mxu0 0.0
      %2446 = vmatpush1.msra.mxu0 %v2336
      %2447 = vmatprep.subr.mxu0 0.0
      %2448 = vmatpush1.msra.mxu0 0.0
      %2449 = vmatprep.subr.mxu0 0.0
      %2450 = vmatpush1.msra.mxu0 0.0
      %2451 = vmatprep.subr.mxu0 0.0
      %2452 = vmatpush1.msra.mxu0 0.0
      %2453 = vmatprep.subr.mxu0 0.0
      %2454 = vmatpush1.msra.mxu0 0.0
      %2455 = vmatprep.subr.mxu0 0.0
      %2456 = vmatpush1.msra.mxu0 0.0
      %2457 = vmatprep.subr.mxu0 0.0
      %2458 = vmatpush1.msra.mxu0 0.0
      %2459 = vmatprep.subr.mxu0 0.0
      %2460 = vmatpush1.msra.mxu0 0.0
      %2461 = vmatprep.subr.mxu0 0.0
      %2462 = vmatpush1.msra.mxu0 0.0
      %2463 = vmatprep.subr.mxu0 0.0
      %2464 = vmatpush1.msra.mxu0 0.0
      %2465 = vmatprep.subr.mxu0 0.0
      %2466 = vmatpush1.msra.mxu0 0.0
      %2467 = vmatprep.subr.mxu0 0.0
      %2468 = vmatpush1.msra.mxu0 0.0
      %2469 = vmatprep.subr.mxu0 0.0
      %2470 = vmatpush1.msra.mxu0 0.0
      %2471 = vmatprep.subr.mxu0 0.0
      %2472 = vmatpush1.msra.mxu0 0.0
      %2473 = vmatprep.subr.mxu0 0.0
      %2474 = vmatpush1.msra.mxu0 0.0
      %2475 = vmatprep.subr.mxu0 0.0
      %2476 = vmatpush1.msra.mxu0 0.0
      %2477 = vmatprep.subr.mxu0 0.0
      %2478 = vmatpush1.msra.mxu0 0.0
      %2479 = vmatprep.subr.mxu0 0.0
      %2480 = vmatpush1.msra.mxu0 0.0
      %2481 = vmatprep.subr.mxu0 0.0
      %2482 = vmatpush1.msra.mxu0 0.0
      %2483 = vmatprep.subr.mxu0 0.0
      %2484 = vmatpush1.msra.mxu0 0.0
      %2485 = vmatprep.subr.mxu0 0.0
      %2486 = vmatpush1.msra.mxu0 0.0
      %2487 = vmatprep.subr.mxu0 0.0
      %2488 = vmatpush1.msra.mxu0 0.0
      %2489 = vmatprep.subr.mxu0 0.0
      %2490 = vmatpush1.msra.mxu0 0.0
      %2491 = vmatprep.subr.mxu0 0.0
      %2492 = vmatpush1.msra.mxu0 0.0
      %2493 = vmatprep.subr.mxu0 0.0
      %2494 = vmatpush1.msra.mxu0 0.0
      %2495 = vmatprep.subr.mxu0 0.0
      %2496 = vmatpush1.msra.mxu0 0.0
      %2497 = vmatprep.subr.mxu0 0.0
      %2498 = vmatpush1.msra.mxu0 0.0
      %2499 = vmatprep.subr.mxu0 0.0
      %2500 = vmatpush1.msra.mxu0 0.0
      %2501 = vmatprep.subr.mxu0 0.0
      %2502 = vmatpush1.msra.mxu0 0.0
      %2503 = vmatprep.subr.mxu0 0.0
      %2504 = vmatpush1.msra.mxu0 0.0
      %2505 = vmatprep.subr.mxu0 0.0
      %2506 = vmatpush1.msra.mxu0 0.0
      %2507 = vmatprep.subr.mxu0 0.0
      %2508 = vmatpush1.msra.mxu0 0.0
      %2509 = vmatprep.mubr.f32.mxu0 0.0
      %2510 = vmatmul.mubr.f32.gmra.mrb[0].mxu0 %v2338
      %v2511 = vpop.f32.mrb[0].mxu0
      %v2512 = vadd.f32 0.0, %v2511
      %v2513 = vpop.f32.mrb[0].mxu0
      %2514 = vmatprep.mubr.f32.mxu0 0.0
      %2515 = vmatmul.mubr.f32.gmra.mrb[0].mxu0 %v2341
      %v2516 = vpop.f32.mrb[0].mxu0
      %v2517 = vadd.f32 0.0, %v2516
      %v2518 = vpop.f32.mrb[0].mxu0
      %2519 = vmatprep.mubr.f32.mxu0 0.0
      %2520 = vmatmul.mubr.f32.gmra.mrb[0].mxu0 %v2344
      %v2521 = vpop.f32.mrb[0].mxu0
      %v2522 = vadd.f32 0.0, %v2521
      %v2523 = vpop.f32.mrb[0].mxu0
      %2524 = vmatprep.mubr.f32.mxu0 0.0
      %2525 = vmatmul.mubr.f32.gmra.mrb[0].mxu0 %v2347
      %v2526 = vpop.f32.mrb[0].mxu0
      %v2527 = vadd.f32 0.0, %v2526
      %v2528 = vpop.f32.mrb[0].mxu0
      %2529 = vmatprep.mubr.f32.mxu0 0.0
      %2530 = vmatmul.mubr.f32.gmra.mrb[0].mxu0 %v2350
      %v2531 = vpop.f32.mrb[0].mxu0
      %v2532 = vadd.f32 0.0, %v2531
      %v2533 = vpop.f32.mrb[0].mxu0
      %2534 = vmatprep.mubr.f32.mxu0 0.0
      %2535 = vmatmul.mubr.f32.gmra.mrb[0].mxu0 %v2353
      %v2536 = vpop.f32.mrb[0].mxu0
      %v2537 = vadd.f32 0.0, %v2536
      %v2538 = vpop.f32.mrb[0].mxu0
      %2539 = vmatprep.mubr.f32.mxu0 0.0
      %2540 = vmatmul.mubr.f32.gmra.mrb[0].mxu0 %v2356
      %v2541 = vpop.f32.mrb[0].mxu0
      %v2542 = vadd.f32 0.0, %v2541
      %v2543 = vpop.f32.mrb[0].mxu0
      %2544 = vmatprep.mubr.f32.mxu0 0.0
      %2545 = vmatmul.mubr.f32.gmra.mrb[0].mxu0 %v2359
      %v2546 = vpop.f32.mrb[0].mxu0
      %v2547 = vadd.f32 0.0, %v2546
      %v2548 = vpop.f32.mrb[0].mxu0
      %2549 = vmatprep.mubr.f32.mxu0 0.0
      %2550 = vmatmul.mubr.f32.gmra.mrb[0].mxu0 %v2362
      %v2551 = vpop.f32.mrb[0].mxu0
      %v2552 = vadd.f32 0.0, %v2551
      %v2553 = vpop.f32.mrb[0].mxu0
      %2554 = vmatprep.mubr.f32.mxu0 0.0
      %2555 = vmatmul.mubr.f32.gmra.mrb[0].mxu0 %v2365
      %v2556 = vpop.f32.mrb[0].mxu0
      %v2557 = vadd.f32 0.0, %v2556
      %v2558 = vpop.f32.mrb[0].mxu0
      %2559 = vmatprep.mubr.f32.mxu0 0.0
      %2560 = vmatmul.mubr.f32.gmra.mrb[0].mxu0 %v2368
      %v2561 = vpop.f32.mrb[0].mxu0
      %v2562 = vadd.f32 0.0, %v2561
      %v2563 = vpop.f32.mrb[0].mxu0
      %2564 = vmatprep.mubr.f32.mxu0 0.0
      %2565 = vmatmul.mubr.f32.gmra.mrb[0].mxu0 %v2371
      %v2566 = vpop.f32.mrb[0].mxu0
      %v2567 = vadd.f32 0.0, %v2566
      %v2568 = vpop.f32.mrb[0].mxu0
      %2569 = vmatprep.mubr.f32.mxu0 0.0
      %2570 = vmatmul.mubr.f32.gmra.mrb[0].mxu0 %v2374
      %v2571 = vpop.f32.mrb[0].mxu0
      %v2572 = vadd.f32 0.0, %v2571
      %v2573 = vpop.f32.mrb[0].mxu0
      %2574 = vmatprep.mubr.f32.mxu0 0.0
      %2575 = vmatmul.mubr.f32.gmra.mrb[0].mxu0 %v2377
      %v2576 = vpop.f32.mrb[0].mxu0
      %v2577 = vadd.f32 0.0, %v2576
      %v2578 = vpop.f32.mrb[0].mxu0
      %2579 = vmatprep.mubr.f32.mxu0 0.0
      %2580 = vmatmul.mubr.f32.gmra.mrb[0].mxu0 %v2380
      %v2581 = vpop.f32.mrb[0].mxu0
      %v2582 = vadd.f32 0.0, %v2581
      %v2583 = vpop.f32.mrb[0].mxu0
      %2584 = vmatprep.mubr.f32.mxu0 0.0
      %2585 = vmatmul.mubr.f32.gmra.mrb[0].mxu0 %v2383
      %v2586 = vpop.f32.mrb[0].mxu0
      %v2587 = vadd.f32 0.0, %v2586
      %v2588 = vpop.f32.mrb[0].mxu0
      %2589 = vmatprep.mubr.f32.mxu0 0.0
      %2590 = vmatmul.mubr.f32.gmra.mrb[0].mxu0 %v2386
      %v2591 = vpop.f32.mrb[0].mxu0
      %v2592 = vadd.f32 0.0, %v2591
      %v2593 = vpop.f32.mrb[0].mxu0
      %2594 = vmatprep.mubr.f32.mxu0 0.0
      %2595 = vmatmul.mubr.f32.gmra.mrb[0].mxu0 %v2389
      %v2596 = vpop.f32.mrb[0].mxu0
      %v2597 = vadd.f32 0.0, %v2596
      %v2598 = vpop.f32.mrb[0].mxu0
      %2599 = vmatprep.mubr.f32.mxu0 0.0
      %2600 = vmatmul.mubr.f32.gmra.mrb[0].mxu0 %v2392
      %v2601 = vpop.f32.mrb[0].mxu0
      %v2602 = vadd.f32 0.0, %v2601
      %v2603 = vpop.f32.mrb[0].mxu0
      %2604 = vmatprep.mubr.f32.mxu0 0.0
      %2605 = vmatmul.mubr.f32.gmra.mrb[0].mxu0 %v2395
      %v2606 = vpop.f32.mrb[0].mxu0
      %v2607 = vadd.f32 0.0, %v2606
      %v2608 = vpop.f32.mrb[0].mxu0
      %2609 = vmatprep.mubr.f32.mxu0 0.0
      %2610 = vmatmul.mubr.f32.gmra.mrb[0].mxu0 %v2398
      %v2611 = vpop.f32.mrb[0].mxu0
      %v2612 = vadd.f32 0.0, %v2611
      %v2613 = vpop.f32.mrb[0].mxu0
      %2614 = vmatprep.mubr.f32.mxu0 0.0
      %2615 = vmatmul.mubr.f32.gmra.mrb[0].mxu0 %v2401
      %v2616 = vpop.f32.mrb[0].mxu0
      %v2617 = vadd.f32 0.0, %v2616
      %v2618 = vpop.f32.mrb[0].mxu0
      %2619 = vmatprep.mubr.f32.mxu0 0.0
      %2620 = vmatmul.mubr.f32.gmra.mrb[0].mxu0 %v2404
      %v2621 = vpop.f32.mrb[0].mxu0
      %v2622 = vadd.f32 0.0, %v2621
      %v2623 = vpop.f32.mrb[0].mxu0
      %2624 = vmatprep.mubr.f32.mxu0 0.0
      %2625 = vmatmul.mubr.f32.gmra.mrb[0].mxu0 %v2407
      %v2626 = vpop.f32.mrb[0].mxu0
      %v2627 = vadd.f32 0.0, %v2626
      %v2628 = vpop.f32.mrb[0].mxu0
      %2629 = vmatprep.mubr.f32.mxu0 0.0
      %2630 = vmatmul.mubr.f32.gmra.mrb[0].mxu0 %v2410
      %v2631 = vpop.f32.mrb[0].mxu0
      %v2632 = vadd.f32 0.0, %v2631
      %v2633 = vpop.f32.mrb[0].mxu0
      %2634 = vmatprep.mubr.f32.mxu0 0.0
      %2635 = vmatmul.mubr.f32.gmra.mrb[0].mxu0 %v2413
      %v2636 = vpop.f32.mrb[0].mxu0
      %v2637 = vadd.f32 0.0, %v2636
      %v2638 = vpop.f32.mrb[0].mxu0
      %2639 = vmatprep.mubr.f32.mxu0 0.0
      %2640 = vmatmul.mubr.f32.gmra.mrb[0].mxu0 %v2416
      %v2641 = vpop.f32.mrb[0].mxu0
      %v2642 = vadd.f32 0.0, %v2641
      %v2643 = vpop.f32.mrb[0].mxu0
      %2644 = vmatprep.mubr.f32.mxu0 0.0
      %2645 = vmatmul.mubr.f32.gmra.mrb[0].mxu0 %v2419
      %v2646 = vpop.f32.mrb[0].mxu0
      %v2647 = vadd.f32 0.0, %v2646
      %v2648 = vpop.f32.mrb[0].mxu0
      %2649 = vmatprep.mubr.f32.mxu0 0.0
      %2650 = vmatmul.mubr.f32.gmra.mrb[0].mxu0 %v2422
      %v2651 = vpop.f32.mrb[0].mxu0
      %v2652 = vadd.f32 0.0, %v2651
      %v2653 = vpop.f32.mrb[0].mxu0
      %2654 = vmatprep.mubr.f32.mxu0 0.0
      %2655 = vmatmul.mubr.f32.gmra.mrb[0].mxu0 %v2425
      %v2656 = vpop.f32.mrb[0].mxu0
      %v2657 = vadd.f32 0.0, %v2656
      %v2658 = vpop.f32.mrb[0].mxu0
      %2659 = vmatprep.mubr.f32.mxu0 0.0
      %2660 = vmatmul.mubr.f32.gmra.mrb[0].mxu0 %v2428
      %v2661 = vpop.f32.mrb[0].mxu0
      %v2662 = vadd.f32 0.0, %v2661
      %v2663 = vpop.f32.mrb[0].mxu0
      %2664 = vmatprep.mubr.f32.mxu0 0.0
      %2665 = vmatmul.mubr.f32.gmra.mrb[0].mxu0 %v2431
      %v2666 = vpop.f32.mrb[0].mxu0
      %v2667 = vadd.f32 0.0, %v2666
      %v2668 = vpop.f32.mrb[0].mxu0
      %2669 = vmatprep.mubr.f32.mxu0 0.0
      %2670 = vmatmul.mubr.f32.gmra.mrb[0].mxu0 %v2434
      %v2671 = vpop.f32.mrb[0].mxu0
      %v2672 = vadd.f32 0.0, %v2671
      %v2673 = vpop.f32.mrb[0].mxu0
      %2674 = vmatprep.mubr.f32.mxu0 0.0
      %2675 = vmatmul.mubr.f32.gmra.mrb[0].mxu0 %v2437
      %v2676 = vpop.f32.mrb[0].mxu0
      %v2677 = vadd.f32 0.0, %v2676
      %v2678 = vpop.f32.mrb[0].mxu0
      %2679 = vmatprep.mubr.f32.mxu0 0.0
      %2680 = vmatmul.mubr.f32.gmra.mrb[0].mxu0 %v2440
      %v2681 = vpop.f32.mrb[0].mxu0
      %v2682 = vadd.f32 0.0, %v2681
      %v2683 = vpop.f32.mrb[0].mxu0
      %2684 = vmatprep.mubr.f32.mxu0 0.0
      %2685 = vmatmul.mubr.f32.gmra.mrb[0].mxu0 %v2443
      %v2686 = vpop.f32.mrb[0].mxu0
      %v2687 = vadd.f32 0.0, %v2686
      %v2688 = vpop.f32.mrb[0].mxu0
      %2689 = vdwg.mxu0
      %v2690 = vadd.f32 %v2263, %v2512
      %v2691 = vadd.f32 %v2264, %v2517
      %v2692 = vadd.f32 %v2265, %v2522
      %v2693 = vadd.f32 %v2266, %v2527
      %v2694 = vadd.f32 %v2267, %v2532
      %v2695 = vadd.f32 %v2268, %v2537
      %v2696 = vadd.f32 %v2269, %v2542
      %v2697 = vadd.f32 %v2270, %v2547
      %v2698 = vadd.f32 %v2271, %v2552
      %v2699 = vadd.f32 %v2272, %v2557
      %v2700 = vadd.f32 %v2273, %v2562
      %v2701 = vadd.f32 %v2274, %v2567
      %v2702 = vadd.f32 %v2275, %v2572
      %v2703 = vadd.f32 %v2276, %v2577
      %v2704 = vadd.f32 %v2277, %v2582
      %v2705 = vadd.f32 %v2278, %v2587
      %v2706 = vadd.f32 %v2279, %v2592
      %v2707 = vadd.f32 %v2280, %v2597
      %v2708 = vadd.f32 %v2281, %v2602
      %v2709 = vadd.f32 %v2282, %v2607
      %v2710 = vadd.f32 %v2283, %v2612
      %v2711 = vadd.f32 %v2284, %v2617
      %v2712 = vadd.f32 %v2285, %v2622
      %v2713 = vadd.f32 %v2286, %v2627
      %v2714 = vadd.f32 %v2287, %v2632
      %v2715 = vadd.f32 %v2288, %v2637
      %v2716 = vadd.f32 %v2289, %v2642
      %v2717 = vadd.f32 %v2290, %v2647
      %v2718 = vadd.f32 %v2291, %v2652
      %v2719 = vadd.f32 %v2292, %v2657
      %v2720 = vadd.f32 %v2293, %v2662
      %v2721 = vadd.f32 %v2294, %v2667
      %v2722 = vadd.f32 %v2295, %v2672
      %v2723 = vadd.f32 %v2296, %v2677
      %v2724 = vadd.f32 %v2297, %v2682
      %v2725 = vadd.f32 %v2298, %v2687
      %v2726 = vld [vmem:[%s226 + $0x24] sm:$0xff]
      %v2727 = vld [vmem:[%s226 + $0x2c] sm:$0xff]
      %v2728 = vld [vmem:[%s226 + $0x34] sm:$0xff]
      %v2729 = vld [vmem:[%s226 + $0x3c] sm:$0xff]
      %v2730 = vld [vmem:[%s226 + $0x44] sm:$0xff]
      %v2731 = vld [vmem:[%s226 + $0x4c] sm:$0xff]
      %v2732 = vld [vmem:[%s226 + $0x54] sm:$0xff]
      %v2733 = vld [vmem:[%s226 + $0x5c] sm:$0xff]
      %v2734 = vld [vmem:[%s226 + $0x64] sm:$0xff]
      %v2735 = vld [vmem:[%s226 + $0x6c] sm:$0xff]
      %v2736 = vld [vmem:[%s226 + $0x74] sm:$0xff]
      %v2737 = vld [vmem:[%s226 + $0x7c] sm:$0xff]
      %v2738 = vld [vmem:[%s226 + $0x84] sm:$0xff]
      %v2739 = vld [vmem:[%s226 + $0x8c] sm:$0xff]
      %v2740 = vld [vmem:[%s226 + $0x94] sm:$0xff]
      %v2741 = vld [vmem:[%s226 + $0x9c] sm:$0xff]
      %v2742 = vld [vmem:[%s226 + $0xa4] sm:$0xff]
      %v2743 = vld [vmem:[%s226 + $0xac] sm:$0xff]
      %v2744 = vld [vmem:[%s226 + $0xb4] sm:$0xff]
      %v2745 = vld [vmem:[%s226 + $0xbc] sm:$0xff]
      %v2746 = vld [vmem:[%s226 + $0xc4] sm:$0xff]
      %v2747 = vld [vmem:[%s226 + $0xcc] sm:$0xff]
      %v2748 = vld [vmem:[%s226 + $0xd4] sm:$0xff]
      %v2749 = vld [vmem:[%s226 + $0xdc] sm:$0xff]
      %v2750 = vld [vmem:[%s226 + $0xe4] sm:$0xff]
      %v2751 = vld [vmem:[%s226 + $0xec] sm:$0xff]
      %v2752 = vld [vmem:[%s226 + $0xf4] sm:$0xff]
      %v2753 = vld [vmem:[%s226 + $0xfc] sm:$0xff]
      %v2754 = vld [vmem:[%s226 + $0x104] sm:$0xff]
      %v2755 = vld [vmem:[%s226 + $0x10c] sm:$0xff]
      %v2756 = vld [vmem:[%s226 + $0x114] sm:$0xff]
      %v2757 = vld [vmem:[%s226 + $0x11c] sm:$0xff]
      %v2758 = vld [vmem:[%s226 + $0x124] sm:$0xff]
      %v2759 = vld [vmem:[%s226 + $0x12c] sm:$0xff]
      %v2760 = vld [vmem:[%s226 + $0x134] sm:$0xff]
      %v2761 = vld [vmem:[%s226 + $0x13c] sm:$0xff]
      %s2762 = scalar_lea.vmem %s1, 48
      %v2763 = vld [vmem:[%s2762] sm:$0xff]
      %v2765 = vsel %vm311, %v2726, 0
      %v2768 = vsel %vm311, %v2727, 0
      %v2771 = vsel %vm311, %v2728, 0
      %v2774 = vsel %vm311, %v2729, 0
      %v2777 = vsel %vm311, %v2730, 0
      %v2780 = vsel %vm311, %v2731, 0
      %v2783 = vsel %vm311, %v2732, 0
      %v2786 = vsel %vm311, %v2733, 0
      %v2789 = vsel %vm311, %v2734, 0
      %v2792 = vsel %vm311, %v2735, 0
      %v2795 = vsel %vm311, %v2736, 0
      %v2798 = vsel %vm311, %v2737, 0
      %v2801 = vsel %vm311, %v2738, 0
      %v2804 = vsel %vm311, %v2739, 0
      %v2807 = vsel %vm311, %v2740, 0
      %v2810 = vsel %vm311, %v2741, 0
      %v2813 = vsel %vm311, %v2742, 0
      %v2816 = vsel %vm311, %v2743, 0
      %v2819 = vsel %vm311, %v2744, 0
      %v2822 = vsel %vm311, %v2745, 0
      %v2825 = vsel %vm311, %v2746, 0
      %v2828 = vsel %vm311, %v2747, 0
      %v2831 = vsel %vm311, %v2748, 0
      %v2834 = vsel %vm311, %v2749, 0
      %v2837 = vsel %vm311, %v2750, 0
      %v2840 = vsel %vm311, %v2751, 0
      %v2843 = vsel %vm311, %v2752, 0
      %v2846 = vsel %vm311, %v2753, 0
      %v2849 = vsel %vm311, %v2754, 0
      %v2852 = vsel %vm311, %v2755, 0
      %v2855 = vsel %vm311, %v2756, 0
      %v2858 = vsel %vm311, %v2757, 0
      %v2861 = vsel %vm311, %v2758, 0
      %v2864 = vsel %vm311, %v2759, 0
      %v2867 = vsel %vm311, %v2760, 0
      %v2870 = vsel %vm311, %v2761, 0
      %2872 = vmatprep.subr.mxu0 0.0
      %2873 = vmatpush1.msra.mxu0 %v2763
      %2874 = vmatprep.subr.mxu0 0.0
      %2875 = vmatpush1.msra.mxu0 0.0
      %2876 = vmatprep.subr.mxu0 0.0
      %2877 = vmatpush1.msra.mxu0 0.0
      %2878 = vmatprep.subr.mxu0 0.0
      %2879 = vmatpush1.msra.mxu0 0.0
      %2880 = vmatprep.subr.mxu0 0.0
      %2881 = vmatpush1.msra.mxu0 0.0
      %2882 = vmatprep.subr.mxu0 0.0
      %2883 = vmatpush1.msra.mxu0 0.0
      %2884 = vmatprep.subr.mxu0 0.0
      %2885 = vmatpush1.msra.mxu0 0.0
      %2886 = vmatprep.subr.mxu0 0.0
      %2887 = vmatpush1.msra.mxu0 0.0
      %2888 = vmatprep.subr.mxu0 0.0
      %2889 = vmatpush1.msra.mxu0 0.0
      %2890 = vmatprep.subr.mxu0 0.0
      %2891 = vmatpush1.msra.mxu0 0.0
      %2892 = vmatprep.subr.mxu0 0.0
      %2893 = vmatpush1.msra.mxu0 0.0
      %2894 = vmatprep.subr.mxu0 0.0
      %2895 = vmatpush1.msra.mxu0 0.0
      %2896 = vmatprep.subr.mxu0 0.0
      %2897 = vmatpush1.msra.mxu0 0.0
      %2898 = vmatprep.subr.mxu0 0.0
      %2899 = vmatpush1.msra.mxu0 0.0
      %2900 = vmatprep.subr.mxu0 0.0
      %2901 = vmatpush1.msra.mxu0 0.0
      %2902 = vmatprep.subr.mxu0 0.0
      %2903 = vmatpush1.msra.mxu0 0.0
      %2904 = vmatprep.subr.mxu0 0.0
      %2905 = vmatpush1.msra.mxu0 0.0
      %2906 = vmatprep.subr.mxu0 0.0
      %2907 = vmatpush1.msra.mxu0 0.0
      %2908 = vmatprep.subr.mxu0 0.0
      %2909 = vmatpush1.msra.mxu0 0.0
      %2910 = vmatprep.subr.mxu0 0.0
      %2911 = vmatpush1.msra.mxu0 0.0
      %2912 = vmatprep.subr.mxu0 0.0
      %2913 = vmatpush1.msra.mxu0 0.0
      %2914 = vmatprep.subr.mxu0 0.0
      %2915 = vmatpush1.msra.mxu0 0.0
      %2916 = vmatprep.subr.mxu0 0.0
      %2917 = vmatpush1.msra.mxu0 0.0
      %2918 = vmatprep.subr.mxu0 0.0
      %2919 = vmatpush1.msra.mxu0 0.0
      %2920 = vmatprep.subr.mxu0 0.0
      %2921 = vmatpush1.msra.mxu0 0.0
      %2922 = vmatprep.subr.mxu0 0.0
      %2923 = vmatpush1.msra.mxu0 0.0
      %2924 = vmatprep.subr.mxu0 0.0
      %2925 = vmatpush1.msra.mxu0 0.0
      %2926 = vmatprep.subr.mxu0 0.0
      %2927 = vmatpush1.msra.mxu0 0.0
      %2928 = vmatprep.subr.mxu0 0.0
      %2929 = vmatpush1.msra.mxu0 0.0
      %2930 = vmatprep.subr.mxu0 0.0
      %2931 = vmatpush1.msra.mxu0 0.0
      %2932 = vmatprep.subr.mxu0 0.0
      %2933 = vmatpush1.msra.mxu0 0.0
      %2934 = vmatprep.subr.mxu0 0.0
      %2935 = vmatpush1.msra.mxu0 0.0
      %2936 = vmatprep.mubr.f32.mxu0 0.0
      %2937 = vmatmul.mubr.f32.gmra.mrb[0].mxu0 %v2765
      %v2938 = vpop.f32.mrb[0].mxu0
      %v2939 = vadd.f32 0.0, %v2938
      %v2940 = vpop.f32.mrb[0].mxu0
      %2941 = vmatprep.mubr.f32.mxu0 0.0
      %2942 = vmatmul.mubr.f32.gmra.mrb[0].mxu0 %v2768
      %v2943 = vpop.f32.mrb[0].mxu0
      %v2944 = vadd.f32 0.0, %v2943
      %v2945 = vpop.f32.mrb[0].mxu0
      %2946 = vmatprep.mubr.f32.mxu0 0.0
      %2947 = vmatmul.mubr.f32.gmra.mrb[0].mxu0 %v2771
      %v2948 = vpop.f32.mrb[0].mxu0
      %v2949 = vadd.f32 0.0, %v2948
      %v2950 = vpop.f32.mrb[0].mxu0
      %2951 = vmatprep.mubr.f32.mxu0 0.0
      %2952 = vmatmul.mubr.f32.gmra.mrb[0].mxu0 %v2774
      %v2953 = vpop.f32.mrb[0].mxu0
      %v2954 = vadd.f32 0.0, %v2953
      %v2955 = vpop.f32.mrb[0].mxu0
      %2956 = vmatprep.mubr.f32.mxu0 0.0
      %2957 = vmatmul.mubr.f32.gmra.mrb[0].mxu0 %v2777
      %v2958 = vpop.f32.mrb[0].mxu0
      %v2959 = vadd.f32 0.0, %v2958
      %v2960 = vpop.f32.mrb[0].mxu0
      %2961 = vmatprep.mubr.f32.mxu0 0.0
      %2962 = vmatmul.mubr.f32.gmra.mrb[0].mxu0 %v2780
      %v2963 = vpop.f32.mrb[0].mxu0
      %v2964 = vadd.f32 0.0, %v2963
      %v2965 = vpop.f32.mrb[0].mxu0
      %2966 = vmatprep.mubr.f32.mxu0 0.0
      %2967 = vmatmul.mubr.f32.gmra.mrb[0].mxu0 %v2783
      %v2968 = vpop.f32.mrb[0].mxu0
      %v2969 = vadd.f32 0.0, %v2968
      %v2970 = vpop.f32.mrb[0].mxu0
      %2971 = vmatprep.mubr.f32.mxu0 0.0
      %2972 = vmatmul.mubr.f32.gmra.mrb[0].mxu0 %v2786
      %v2973 = vpop.f32.mrb[0].mxu0
      %v2974 = vadd.f32 0.0, %v2973
      %v2975 = vpop.f32.mrb[0].mxu0
      %2976 = vmatprep.mubr.f32.mxu0 0.0
      %2977 = vmatmul.mubr.f32.gmra.mrb[0].mxu0 %v2789
      %v2978 = vpop.f32.mrb[0].mxu0
      %v2979 = vadd.f32 0.0, %v2978
      %v2980 = vpop.f32.mrb[0].mxu0
      %2981 = vmatprep.mubr.f32.mxu0 0.0
      %2982 = vmatmul.mubr.f32.gmra.mrb[0].mxu0 %v2792
      %v2983 = vpop.f32.mrb[0].mxu0
      %v2984 = vadd.f32 0.0, %v2983
      %v2985 = vpop.f32.mrb[0].mxu0
      %2986 = vmatprep.mubr.f32.mxu0 0.0
      %2987 = vmatmul.mubr.f32.gmra.mrb[0].mxu0 %v2795
      %v2988 = vpop.f32.mrb[0].mxu0
      %v2989 = vadd.f32 0.0, %v2988
      %v2990 = vpop.f32.mrb[0].mxu0
      %2991 = vmatprep.mubr.f32.mxu0 0.0
      %2992 = vmatmul.mubr.f32.gmra.mrb[0].mxu0 %v2798
      %v2993 = vpop.f32.mrb[0].mxu0
      %v2994 = vadd.f32 0.0, %v2993
      %v2995 = vpop.f32.mrb[0].mxu0
      %2996 = vmatprep.mubr.f32.mxu0 0.0
      %2997 = vmatmul.mubr.f32.gmra.mrb[0].mxu0 %v2801
      %v2998 = vpop.f32.mrb[0].mxu0
      %v2999 = vadd.f32 0.0, %v2998
      %v3000 = vpop.f32.mrb[0].mxu0
      %3001 = vmatprep.mubr.f32.mxu0 0.0
      %3002 = vmatmul.mubr.f32.gmra.mrb[0].mxu0 %v2804
      %v3003 = vpop.f32.mrb[0].mxu0
      %v3004 = vadd.f32 0.0, %v3003
      %v3005 = vpop.f32.mrb[0].mxu0
      %3006 = vmatprep.mubr.f32.mxu0 0.0
      %3007 = vmatmul.mubr.f32.gmra.mrb[0].mxu0 %v2807
      %v3008 = vpop.f32.mrb[0].mxu0
      %v3009 = vadd.f32 0.0, %v3008
      %v3010 = vpop.f32.mrb[0].mxu0
      %3011 = vmatprep.mubr.f32.mxu0 0.0
      %3012 = vmatmul.mubr.f32.gmra.mrb[0].mxu0 %v2810
      %v3013 = vpop.f32.mrb[0].mxu0
      %v3014 = vadd.f32 0.0, %v3013
      %v3015 = vpop.f32.mrb[0].mxu0
      %3016 = vmatprep.mubr.f32.mxu0 0.0
      %3017 = vmatmul.mubr.f32.gmra.mrb[0].mxu0 %v2813
      %v3018 = vpop.f32.mrb[0].mxu0
      %v3019 = vadd.f32 0.0, %v3018
      %v3020 = vpop.f32.mrb[0].mxu0
      %3021 = vmatprep.mubr.f32.mxu0 0.0
      %3022 = vmatmul.mubr.f32.gmra.mrb[0].mxu0 %v2816
      %v3023 = vpop.f32.mrb[0].mxu0
      %v3024 = vadd.f32 0.0, %v3023
      %v3025 = vpop.f32.mrb[0].mxu0
      %3026 = vmatprep.mubr.f32.mxu0 0.0
      %3027 = vmatmul.mubr.f32.gmra.mrb[0].mxu0 %v2819
      %v3028 = vpop.f32.mrb[0].mxu0
      %v3029 = vadd.f32 0.0, %v3028
      %v3030 = vpop.f32.mrb[0].mxu0
      %3031 = vmatprep.mubr.f32.mxu0 0.0
      %3032 = vmatmul.mubr.f32.gmra.mrb[0].mxu0 %v2822
      %v3033 = vpop.f32.mrb[0].mxu0
      %v3034 = vadd.f32 0.0, %v3033
      %v3035 = vpop.f32.mrb[0].mxu0
      %3036 = vmatprep.mubr.f32.mxu0 0.0
      %3037 = vmatmul.mubr.f32.gmra.mrb[0].mxu0 %v2825
      %v3038 = vpop.f32.mrb[0].mxu0
      %v3039 = vadd.f32 0.0, %v3038
      %v3040 = vpop.f32.mrb[0].mxu0
      %3041 = vmatprep.mubr.f32.mxu0 0.0
      %3042 = vmatmul.mubr.f32.gmra.mrb[0].mxu0 %v2828
      %v3043 = vpop.f32.mrb[0].mxu0
      %v3044 = vadd.f32 0.0, %v3043
      %v3045 = vpop.f32.mrb[0].mxu0
      %3046 = vmatprep.mubr.f32.mxu0 0.0
      %3047 = vmatmul.mubr.f32.gmra.mrb[0].mxu0 %v2831
      %v3048 = vpop.f32.mrb[0].mxu0
      %v3049 = vadd.f32 0.0, %v3048
      %v3050 = vpop.f32.mrb[0].mxu0
      %3051 = vmatprep.mubr.f32.mxu0 0.0
      %3052 = vmatmul.mubr.f32.gmra.mrb[0].mxu0 %v2834
      %v3053 = vpop.f32.mrb[0].mxu0
      %v3054 = vadd.f32 0.0, %v3053
      %v3055 = vpop.f32.mrb[0].mxu0
      %3056 = vmatprep.mubr.f32.mxu0 0.0
      %3057 = vmatmul.mubr.f32.gmra.mrb[0].mxu0 %v2837
      %v3058 = vpop.f32.mrb[0].mxu0
      %v3059 = vadd.f32 0.0, %v3058
      %v3060 = vpop.f32.mrb[0].mxu0
      %3061 = vmatprep.mubr.f32.mxu0 0.0
      %3062 = vmatmul.mubr.f32.gmra.mrb[0].mxu0 %v2840
      %v3063 = vpop.f32.mrb[0].mxu0
      %v3064 = vadd.f32 0.0, %v3063
      %v3065 = vpop.f32.mrb[0].mxu0
      %3066 = vmatprep.mubr.f32.mxu0 0.0
      %3067 = vmatmul.mubr.f32.gmra.mrb[0].mxu0 %v2843
      %v3068 = vpop.f32.mrb[0].mxu0
      %v3069 = vadd.f32 0.0, %v3068
      %v3070 = vpop.f32.mrb[0].mxu0
      %3071 = vmatprep.mubr.f32.mxu0 0.0
      %3072 = vmatmul.mubr.f32.gmra.mrb[0].mxu0 %v2846
      %v3073 = vpop.f32.mrb[0].mxu0
      %v3074 = vadd.f32 0.0, %v3073
      %v3075 = vpop.f32.mrb[0].mxu0
      %3076 = vmatprep.mubr.f32.mxu0 0.0
      %3077 = vmatmul.mubr.f32.gmra.mrb[0].mxu0 %v2849
      %v3078 = vpop.f32.mrb[0].mxu0
      %v3079 = vadd.f32 0.0, %v3078
      %v3080 = vpop.f32.mrb[0].mxu0
      %3081 = vmatprep.mubr.f32.mxu0 0.0
      %3082 = vmatmul.mubr.f32.gmra.mrb[0].mxu0 %v2852
      %v3083 = vpop.f32.mrb[0].mxu0
      %v3084 = vadd.f32 0.0, %v3083
      %v3085 = vpop.f32.mrb[0].mxu0
      %3086 = vmatprep.mubr.f32.mxu0 0.0
      %3087 = vmatmul.mubr.f32.gmra.mrb[0].mxu0 %v2855
      %v3088 = vpop.f32.mrb[0].mxu0
      %v3089 = vadd.f32 0.0, %v3088
      %v3090 = vpop.f32.mrb[0].mxu0
      %3091 = vmatprep.mubr.f32.mxu0 0.0
      %3092 = vmatmul.mubr.f32.gmra.mrb[0].mxu0 %v2858
      %v3093 = vpop.f32.mrb[0].mxu0
      %v3094 = vadd.f32 0.0, %v3093
      %v3095 = vpop.f32.mrb[0].mxu0
      %3096 = vmatprep.mubr.f32.mxu0 0.0
      %3097 = vmatmul.mubr.f32.gmra.mrb[0].mxu0 %v2861
      %v3098 = vpop.f32.mrb[0].mxu0
      %v3099 = vadd.f32 0.0, %v3098
      %v3100 = vpop.f32.mrb[0].mxu0
      %3101 = vmatprep.mubr.f32.mxu0 0.0
      %3102 = vmatmul.mubr.f32.gmra.mrb[0].mxu0 %v2864
      %v3103 = vpop.f32.mrb[0].mxu0
      %v3104 = vadd.f32 0.0, %v3103
      %v3105 = vpop.f32.mrb[0].mxu0
      %3106 = vmatprep.mubr.f32.mxu0 0.0
      %3107 = vmatmul.mubr.f32.gmra.mrb[0].mxu0 %v2867
      %v3108 = vpop.f32.mrb[0].mxu0
      %v3109 = vadd.f32 0.0, %v3108
      %v3110 = vpop.f32.mrb[0].mxu0
      %3111 = vmatprep.mubr.f32.mxu0 0.0
      %3112 = vmatmul.mubr.f32.gmra.mrb[0].mxu0 %v2870
      %v3113 = vpop.f32.mrb[0].mxu0
      %v3114 = vadd.f32 0.0, %v3113
      %v3115 = vpop.f32.mrb[0].mxu0
      %3116 = vdwg.mxu0
      %v3117 = vadd.f32 %v2690, %v2939
      %v3118 = vadd.f32 %v2691, %v2944
      %v3119 = vadd.f32 %v2692, %v2949
      %v3120 = vadd.f32 %v2693, %v2954
      %v3121 = vadd.f32 %v2694, %v2959
      %v3122 = vadd.f32 %v2695, %v2964
      %v3123 = vadd.f32 %v2696, %v2969
      %v3124 = vadd.f32 %v2697, %v2974
      %v3125 = vadd.f32 %v2698, %v2979
      %v3126 = vadd.f32 %v2699, %v2984
      %v3127 = vadd.f32 %v2700, %v2989
      %v3128 = vadd.f32 %v2701, %v2994
      %v3129 = vadd.f32 %v2702, %v2999
      %v3130 = vadd.f32 %v2703, %v3004
      %v3131 = vadd.f32 %v2704, %v3009
      %v3132 = vadd.f32 %v2705, %v3014
      %v3133 = vadd.f32 %v2706, %v3019
      %v3134 = vadd.f32 %v2707, %v3024
      %v3135 = vadd.f32 %v2708, %v3029
      %v3136 = vadd.f32 %v2709, %v3034
      %v3137 = vadd.f32 %v2710, %v3039
      %v3138 = vadd.f32 %v2711, %v3044
      %v3139 = vadd.f32 %v2712, %v3049
      %v3140 = vadd.f32 %v2713, %v3054
      %v3141 = vadd.f32 %v2714, %v3059
      %v3142 = vadd.f32 %v2715, %v3064
      %v3143 = vadd.f32 %v2716, %v3069
      %v3144 = vadd.f32 %v2717, %v3074
      %v3145 = vadd.f32 %v2718, %v3079
      %v3146 = vadd.f32 %v2719, %v3084
      %v3147 = vadd.f32 %v2720, %v3089
      %v3148 = vadd.f32 %v2721, %v3094
      %v3149 = vadd.f32 %v2722, %v3099
      %v3150 = vadd.f32 %v2723, %v3104
      %v3151 = vadd.f32 %v2724, %v3109
      %v3152 = vadd.f32 %v2725, %v3114
      %v3153 = vld [vmem:[%s226 + $0x25] sm:$0xff]
      %v3154 = vld [vmem:[%s226 + $0x2d] sm:$0xff]
      %v3155 = vld [vmem:[%s226 + $0x35] sm:$0xff]
      %v3156 = vld [vmem:[%s226 + $0x3d] sm:$0xff]
      %v3157 = vld [vmem:[%s226 + $0x45] sm:$0xff]
      %v3158 = vld [vmem:[%s226 + $0x4d] sm:$0xff]
      %v3159 = vld [vmem:[%s226 + $0x55] sm:$0xff]
      %v3160 = vld [vmem:[%s226 + $0x5d] sm:$0xff]
      %v3161 = vld [vmem:[%s226 + $0x65] sm:$0xff]
      %v3162 = vld [vmem:[%s226 + $0x6d] sm:$0xff]
      %v3163 = vld [vmem:[%s226 + $0x75] sm:$0xff]
      %v3164 = vld [vmem:[%s226 + $0x7d] sm:$0xff]
      %v3165 = vld [vmem:[%s226 + $0x85] sm:$0xff]
      %v3166 = vld [vmem:[%s226 + $0x8d] sm:$0xff]
      %v3167 = vld [vmem:[%s226 + $0x95] sm:$0xff]
      %v3168 = vld [vmem:[%s226 + $0x9d] sm:$0xff]
      %v3169 = vld [vmem:[%s226 + $0xa5] sm:$0xff]
      %v3170 = vld [vmem:[%s226 + $0xad] sm:$0xff]
      %v3171 = vld [vmem:[%s226 + $0xb5] sm:$0xff]
      %v3172 = vld [vmem:[%s226 + $0xbd] sm:$0xff]
      %v3173 = vld [vmem:[%s226 + $0xc5] sm:$0xff]
      %v3174 = vld [vmem:[%s226 + $0xcd] sm:$0xff]
      %v3175 = vld [vmem:[%s226 + $0xd5] sm:$0xff]
      %v3176 = vld [vmem:[%s226 + $0xdd] sm:$0xff]
      %v3177 = vld [vmem:[%s226 + $0xe5] sm:$0xff]
      %v3178 = vld [vmem:[%s226 + $0xed] sm:$0xff]
      %v3179 = vld [vmem:[%s226 + $0xf5] sm:$0xff]
      %v3180 = vld [vmem:[%s226 + $0xfd] sm:$0xff]
      %v3181 = vld [vmem:[%s226 + $0x105] sm:$0xff]
      %v3182 = vld [vmem:[%s226 + $0x10d] sm:$0xff]
      %v3183 = vld [vmem:[%s226 + $0x115] sm:$0xff]
      %v3184 = vld [vmem:[%s226 + $0x11d] sm:$0xff]
      %v3185 = vld [vmem:[%s226 + $0x125] sm:$0xff]
      %v3186 = vld [vmem:[%s226 + $0x12d] sm:$0xff]
      %v3187 = vld [vmem:[%s226 + $0x135] sm:$0xff]
      %v3188 = vld [vmem:[%s226 + $0x13d] sm:$0xff]
      %s3189 = scalar_lea.vmem %s1, 56
      %v3190 = vld [vmem:[%s3189] sm:$0xff]
      %v3192 = vsel %vm311, %v3153, 0
      %v3195 = vsel %vm311, %v3154, 0
      %v3198 = vsel %vm311, %v3155, 0
      %v3201 = vsel %vm311, %v3156, 0
      %v3204 = vsel %vm311, %v3157, 0
      %v3207 = vsel %vm311, %v3158, 0
      %v3210 = vsel %vm311, %v3159, 0
      %v3213 = vsel %vm311, %v3160, 0
      %v3216 = vsel %vm311, %v3161, 0
      %v3219 = vsel %vm311, %v3162, 0
      %v3222 = vsel %vm311, %v3163, 0
      %v3225 = vsel %vm311, %v3164, 0
      %v3228 = vsel %vm311, %v3165, 0
      %v3231 = vsel %vm311, %v3166, 0
      %v3234 = vsel %vm311, %v3167, 0
      %v3237 = vsel %vm311, %v3168, 0
      %v3240 = vsel %vm311, %v3169, 0
      %v3243 = vsel %vm311, %v3170, 0
      %v3246 = vsel %vm311, %v3171, 0
      %v3249 = vsel %vm311, %v3172, 0
      %v3252 = vsel %vm311, %v3173, 0
      %v3255 = vsel %vm311, %v3174, 0
      %v3258 = vsel %vm311, %v3175, 0
      %v3261 = vsel %vm311, %v3176, 0
      %v3264 = vsel %vm311, %v3177, 0
      %v3267 = vsel %vm311, %v3178, 0
      %v3270 = vsel %vm311, %v3179, 0
      %v3273 = vsel %vm311, %v3180, 0
      %v3276 = vsel %vm311, %v3181, 0
      %v3279 = vsel %vm311, %v3182, 0
      %v3282 = vsel %vm311, %v3183, 0
      %v3285 = vsel %vm311, %v3184, 0
      %v3288 = vsel %vm311, %v3185, 0
      %v3291 = vsel %vm311, %v3186, 0
      %v3294 = vsel %vm311, %v3187, 0
      %v3297 = vsel %vm311, %v3188, 0
      %3299 = vmatprep.subr.mxu0 0.0
      %3300 = vmatpush1.msra.mxu0 %v3190
      %3301 = vmatprep.subr.mxu0 0.0
      %3302 = vmatpush1.msra.mxu0 0.0
      %3303 = vmatprep.subr.mxu0 0.0
      %3304 = vmatpush1.msra.mxu0 0.0
      %3305 = vmatprep.subr.mxu0 0.0
      %3306 = vmatpush1.msra.mxu0 0.0
      %3307 = vmatprep.subr.mxu0 0.0
      %3308 = vmatpush1.msra.mxu0 0.0
      %3309 = vmatprep.subr.mxu0 0.0
      %3310 = vmatpush1.msra.mxu0 0.0
      %3311 = vmatprep.subr.mxu0 0.0
      %3312 = vmatpush1.msra.mxu0 0.0
      %3313 = vmatprep.subr.mxu0 0.0
      %3314 = vmatpush1.msra.mxu0 0.0
      %3315 = vmatprep.subr.mxu0 0.0
      %3316 = vmatpush1.msra.mxu0 0.0
      %3317 = vmatprep.subr.mxu0 0.0
      %3318 = vmatpush1.msra.mxu0 0.0
      %3319 = vmatprep.subr.mxu0 0.0
      %3320 = vmatpush1.msra.mxu0 0.0
      %3321 = vmatprep.subr.mxu0 0.0
      %3322 = vmatpush1.msra.mxu0 0.0
      %3323 = vmatprep.subr.mxu0 0.0
      %3324 = vmatpush1.msra.mxu0 0.0
      %3325 = vmatprep.subr.mxu0 0.0
      %3326 = vmatpush1.msra.mxu0 0.0
      %3327 = vmatprep.subr.mxu0 0.0
      %3328 = vmatpush1.msra.mxu0 0.0
      %3329 = vmatprep.subr.mxu0 0.0
      %3330 = vmatpush1.msra.mxu0 0.0
      %3331 = vmatprep.subr.mxu0 0.0
      %3332 = vmatpush1.msra.mxu0 0.0
      %3333 = vmatprep.subr.mxu0 0.0
      %3334 = vmatpush1.msra.mxu0 0.0
      %3335 = vmatprep.subr.mxu0 0.0
      %3336 = vmatpush1.msra.mxu0 0.0
      %3337 = vmatprep.subr.mxu0 0.0
      %3338 = vmatpush1.msra.mxu0 0.0
      %3339 = vmatprep.subr.mxu0 0.0
      %3340 = vmatpush1.msra.mxu0 0.0
      %3341 = vmatprep.subr.mxu0 0.0
      %3342 = vmatpush1.msra.mxu0 0.0
      %3343 = vmatprep.subr.mxu0 0.0
      %3344 = vmatpush1.msra.mxu0 0.0
      %3345 = vmatprep.subr.mxu0 0.0
      %3346 = vmatpush1.msra.mxu0 0.0
      %3347 = vmatprep.subr.mxu0 0.0
      %3348 = vmatpush1.msra.mxu0 0.0
      %3349 = vmatprep.subr.mxu0 0.0
      %3350 = vmatpush1.msra.mxu0 0.0
      %3351 = vmatprep.subr.mxu0 0.0
      %3352 = vmatpush1.msra.mxu0 0.0
      %3353 = vmatprep.subr.mxu0 0.0
      %3354 = vmatpush1.msra.mxu0 0.0
      %3355 = vmatprep.subr.mxu0 0.0
      %3356 = vmatpush1.msra.mxu0 0.0
      %3357 = vmatprep.subr.mxu0 0.0
      %3358 = vmatpush1.msra.mxu0 0.0
      %3359 = vmatprep.subr.mxu0 0.0
      %3360 = vmatpush1.msra.mxu0 0.0
      %3361 = vmatprep.subr.mxu0 0.0
      %3362 = vmatpush1.msra.mxu0 0.0
      %3363 = vmatprep.mubr.f32.mxu0 0.0
      %3364 = vmatmul.mubr.f32.gmra.mrb[0].mxu0 %v3192
      %v3365 = vpop.f32.mrb[0].mxu0
      %v3366 = vadd.f32 0.0, %v3365
      %v3367 = vpop.f32.mrb[0].mxu0
      %3368 = vmatprep.mubr.f32.mxu0 0.0
      %3369 = vmatmul.mubr.f32.gmra.mrb[0].mxu0 %v3195
      %v3370 = vpop.f32.mrb[0].mxu0
      %v3371 = vadd.f32 0.0, %v3370
      %v3372 = vpop.f32.mrb[0].mxu0
      %3373 = vmatprep.mubr.f32.mxu0 0.0
      %3374 = vmatmul.mubr.f32.gmra.mrb[0].mxu0 %v3198
      %v3375 = vpop.f32.mrb[0].mxu0
      %v3376 = vadd.f32 0.0, %v3375
      %v3377 = vpop.f32.mrb[0].mxu0
      %3378 = vmatprep.mubr.f32.mxu0 0.0
      %3379 = vmatmul.mubr.f32.gmra.mrb[0].mxu0 %v3201
      %v3380 = vpop.f32.mrb[0].mxu0
      %v3381 = vadd.f32 0.0, %v3380
      %v3382 = vpop.f32.mrb[0].mxu0
      %3383 = vmatprep.mubr.f32.mxu0 0.0
      %3384 = vmatmul.mubr.f32.gmra.mrb[0].mxu0 %v3204
      %v3385 = vpop.f32.mrb[0].mxu0
      %v3386 = vadd.f32 0.0, %v3385
      %v3387 = vpop.f32.mrb[0].mxu0
      %3388 = vmatprep.mubr.f32.mxu0 0.0
      %3389 = vmatmul.mubr.f32.gmra.mrb[0].mxu0 %v3207
      %v3390 = vpop.f32.mrb[0].mxu0
      %v3391 = vadd.f32 0.0, %v3390
      %v3392 = vpop.f32.mrb[0].mxu0
      %3393 = vmatprep.mubr.f32.mxu0 0.0
      %3394 = vmatmul.mubr.f32.gmra.mrb[0].mxu0 %v3210
      %v3395 = vpop.f32.mrb[0].mxu0
      %v3396 = vadd.f32 0.0, %v3395
      %v3397 = vpop.f32.mrb[0].mxu0
      %3398 = vmatprep.mubr.f32.mxu0 0.0
      %3399 = vmatmul.mubr.f32.gmra.mrb[0].mxu0 %v3213
      %v3400 = vpop.f32.mrb[0].mxu0
      %v3401 = vadd.f32 0.0, %v3400
      %v3402 = vpop.f32.mrb[0].mxu0
      %3403 = vmatprep.mubr.f32.mxu0 0.0
      %3404 = vmatmul.mubr.f32.gmra.mrb[0].mxu0 %v3216
      %v3405 = vpop.f32.mrb[0].mxu0
      %v3406 = vadd.f32 0.0, %v3405
      %v3407 = vpop.f32.mrb[0].mxu0
      %3408 = vmatprep.mubr.f32.mxu0 0.0
      %3409 = vmatmul.mubr.f32.gmra.mrb[0].mxu0 %v3219
      %v3410 = vpop.f32.mrb[0].mxu0
      %v3411 = vadd.f32 0.0, %v3410
      %v3412 = vpop.f32.mrb[0].mxu0
      %3413 = vmatprep.mubr.f32.mxu0 0.0
      %3414 = vmatmul.mubr.f32.gmra.mrb[0].mxu0 %v3222
      %v3415 = vpop.f32.mrb[0].mxu0
      %v3416 = vadd.f32 0.0, %v3415
      %v3417 = vpop.f32.mrb[0].mxu0
      %3418 = vmatprep.mubr.f32.mxu0 0.0
      %3419 = vmatmul.mubr.f32.gmra.mrb[0].mxu0 %v3225
      %v3420 = vpop.f32.mrb[0].mxu0
      %v3421 = vadd.f32 0.0, %v3420
      %v3422 = vpop.f32.mrb[0].mxu0
      %3423 = vmatprep.mubr.f32.mxu0 0.0
      %3424 = vmatmul.mubr.f32.gmra.mrb[0].mxu0 %v3228
      %v3425 = vpop.f32.mrb[0].mxu0
      %v3426 = vadd.f32 0.0, %v3425
      %v3427 = vpop.f32.mrb[0].mxu0
      %3428 = vmatprep.mubr.f32.mxu0 0.0
      %3429 = vmatmul.mubr.f32.gmra.mrb[0].mxu0 %v3231
      %v3430 = vpop.f32.mrb[0].mxu0
      %v3431 = vadd.f32 0.0, %v3430
      %v3432 = vpop.f32.mrb[0].mxu0
      %3433 = vmatprep.mubr.f32.mxu0 0.0
      %3434 = vmatmul.mubr.f32.gmra.mrb[0].mxu0 %v3234
      %v3435 = vpop.f32.mrb[0].mxu0
      %v3436 = vadd.f32 0.0, %v3435
      %v3437 = vpop.f32.mrb[0].mxu0
      %3438 = vmatprep.mubr.f32.mxu0 0.0
      %3439 = vmatmul.mubr.f32.gmra.mrb[0].mxu0 %v3237
      %v3440 = vpop.f32.mrb[0].mxu0
      %v3441 = vadd.f32 0.0, %v3440
      %v3442 = vpop.f32.mrb[0].mxu0
      %3443 = vmatprep.mubr.f32.mxu0 0.0
      %3444 = vmatmul.mubr.f32.gmra.mrb[0].mxu0 %v3240
      %v3445 = vpop.f32.mrb[0].mxu0
      %v3446 = vadd.f32 0.0, %v3445
      %v3447 = vpop.f32.mrb[0].mxu0
      %3448 = vmatprep.mubr.f32.mxu0 0.0
      %3449 = vmatmul.mubr.f32.gmra.mrb[0].mxu0 %v3243
      %v3450 = vpop.f32.mrb[0].mxu0
      %v3451 = vadd.f32 0.0, %v3450
      %v3452 = vpop.f32.mrb[0].mxu0
      %3453 = vmatprep.mubr.f32.mxu0 0.0
      %3454 = vmatmul.mubr.f32.gmra.mrb[0].mxu0 %v3246
      %v3455 = vpop.f32.mrb[0].mxu0
      %v3456 = vadd.f32 0.0, %v3455
      %v3457 = vpop.f32.mrb[0].mxu0
      %3458 = vmatprep.mubr.f32.mxu0 0.0
      %3459 = vmatmul.mubr.f32.gmra.mrb[0].mxu0 %v3249
      %v3460 = vpop.f32.mrb[0].mxu0
      %v3461 = vadd.f32 0.0, %v3460
      %v3462 = vpop.f32.mrb[0].mxu0
      %3463 = vmatprep.mubr.f32.mxu0 0.0
      %3464 = vmatmul.mubr.f32.gmra.mrb[0].mxu0 %v3252
      %v3465 = vpop.f32.mrb[0].mxu0
      %v3466 = vadd.f32 0.0, %v3465
      %v3467 = vpop.f32.mrb[0].mxu0
      %3468 = vmatprep.mubr.f32.mxu0 0.0
      %3469 = vmatmul.mubr.f32.gmra.mrb[0].mxu0 %v3255
      %v3470 = vpop.f32.mrb[0].mxu0
      %v3471 = vadd.f32 0.0, %v3470
      %v3472 = vpop.f32.mrb[0].mxu0
      %3473 = vmatprep.mubr.f32.mxu0 0.0
      %3474 = vmatmul.mubr.f32.gmra.mrb[0].mxu0 %v3258
      %v3475 = vpop.f32.mrb[0].mxu0
      %v3476 = vadd.f32 0.0, %v3475
      %v3477 = vpop.f32.mrb[0].mxu0
      %3478 = vmatprep.mubr.f32.mxu0 0.0
      %3479 = vmatmul.mubr.f32.gmra.mrb[0].mxu0 %v3261
      %v3480 = vpop.f32.mrb[0].mxu0
      %v3481 = vadd.f32 0.0, %v3480
      %v3482 = vpop.f32.mrb[0].mxu0
      %3483 = vmatprep.mubr.f32.mxu0 0.0
      %3484 = vmatmul.mubr.f32.gmra.mrb[0].mxu0 %v3264
      %v3485 = vpop.f32.mrb[0].mxu0
      %v3486 = vadd.f32 0.0, %v3485
      %v3487 = vpop.f32.mrb[0].mxu0
      %3488 = vmatprep.mubr.f32.mxu0 0.0
      %3489 = vmatmul.mubr.f32.gmra.mrb[0].mxu0 %v3267
      %v3490 = vpop.f32.mrb[0].mxu0
      %v3491 = vadd.f32 0.0, %v3490
      %v3492 = vpop.f32.mrb[0].mxu0
      %3493 = vmatprep.mubr.f32.mxu0 0.0
      %3494 = vmatmul.mubr.f32.gmra.mrb[0].mxu0 %v3270
      %v3495 = vpop.f32.mrb[0].mxu0
      %v3496 = vadd.f32 0.0, %v3495
      %v3497 = vpop.f32.mrb[0].mxu0
      %3498 = vmatprep.mubr.f32.mxu0 0.0
      %3499 = vmatmul.mubr.f32.gmra.mrb[0].mxu0 %v3273
      %v3500 = vpop.f32.mrb[0].mxu0
      %v3501 = vadd.f32 0.0, %v3500
      %v3502 = vpop.f32.mrb[0].mxu0
      %3503 = vmatprep.mubr.f32.mxu0 0.0
      %3504 = vmatmul.mubr.f32.gmra.mrb[0].mxu0 %v3276
      %v3505 = vpop.f32.mrb[0].mxu0
      %v3506 = vadd.f32 0.0, %v3505
      %v3507 = vpop.f32.mrb[0].mxu0
      %3508 = vmatprep.mubr.f32.mxu0 0.0
      %3509 = vmatmul.mubr.f32.gmra.mrb[0].mxu0 %v3279
      %v3510 = vpop.f32.mrb[0].mxu0
      %v3511 = vadd.f32 0.0, %v3510
      %v3512 = vpop.f32.mrb[0].mxu0
      %3513 = vmatprep.mubr.f32.mxu0 0.0
      %3514 = vmatmul.mubr.f32.gmra.mrb[0].mxu0 %v3282
      %v3515 = vpop.f32.mrb[0].mxu0
      %v3516 = vadd.f32 0.0, %v3515
      %v3517 = vpop.f32.mrb[0].mxu0
      %3518 = vmatprep.mubr.f32.mxu0 0.0
      %3519 = vmatmul.mubr.f32.gmra.mrb[0].mxu0 %v3285
      %v3520 = vpop.f32.mrb[0].mxu0
      %v3521 = vadd.f32 0.0, %v3520
      %v3522 = vpop.f32.mrb[0].mxu0
      %3523 = vmatprep.mubr.f32.mxu0 0.0
      %3524 = vmatmul.mubr.f32.gmra.mrb[0].mxu0 %v3288
      %v3525 = vpop.f32.mrb[0].mxu0
      %v3526 = vadd.f32 0.0, %v3525
      %v3527 = vpop.f32.mrb[0].mxu0
      %3528 = vmatprep.mubr.f32.mxu0 0.0
      %3529 = vmatmul.mubr.f32.gmra.mrb[0].mxu0 %v3291
      %v3530 = vpop.f32.mrb[0].mxu0
      %v3531 = vadd.f32 0.0, %v3530
      %v3532 = vpop.f32.mrb[0].mxu0
      %3533 = vmatprep.mubr.f32.mxu0 0.0
      %3534 = vmatmul.mubr.f32.gmra.mrb[0].mxu0 %v3294
      %v3535 = vpop.f32.mrb[0].mxu0
      %v3536 = vadd.f32 0.0, %v3535
      %v3537 = vpop.f32.mrb[0].mxu0
      %3538 = vmatprep.mubr.f32.mxu0 0.0
      %3539 = vmatmul.mubr.f32.gmra.mrb[0].mxu0 %v3297
      %v3540 = vpop.f32.mrb[0].mxu0
      %v3541 = vadd.f32 0.0, %v3540
      %v3542 = vpop.f32.mrb[0].mxu0
      %3543 = vdwg.mxu0
      %v3544 = vadd.f32 %v3117, %v3366
      %v3545 = vadd.f32 %v3118, %v3371
      %v3546 = vadd.f32 %v3119, %v3376
      %v3547 = vadd.f32 %v3120, %v3381
      %v3548 = vadd.f32 %v3121, %v3386
      %v3549 = vadd.f32 %v3122, %v3391
      %v3550 = vadd.f32 %v3123, %v3396
      %v3551 = vadd.f32 %v3124, %v3401
      %v3552 = vadd.f32 %v3125, %v3406
      %v3553 = vadd.f32 %v3126, %v3411
      %v3554 = vadd.f32 %v3127, %v3416
      %v3555 = vadd.f32 %v3128, %v3421
      %v3556 = vadd.f32 %v3129, %v3426
      %v3557 = vadd.f32 %v3130, %v3431
      %v3558 = vadd.f32 %v3131, %v3436
      %v3559 = vadd.f32 %v3132, %v3441
      %v3560 = vadd.f32 %v3133, %v3446
      %v3561 = vadd.f32 %v3134, %v3451
      %v3562 = vadd.f32 %v3135, %v3456
      %v3563 = vadd.f32 %v3136, %v3461
      %v3564 = vadd.f32 %v3137, %v3466
      %v3565 = vadd.f32 %v3138, %v3471
      %v3566 = vadd.f32 %v3139, %v3476
      %v3567 = vadd.f32 %v3140, %v3481
      %v3568 = vadd.f32 %v3141, %v3486
      %v3569 = vadd.f32 %v3142, %v3491
      %v3570 = vadd.f32 %v3143, %v3496
      %v3571 = vadd.f32 %v3144, %v3501
      %v3572 = vadd.f32 %v3145, %v3506
      %v3573 = vadd.f32 %v3146, %v3511
      %v3574 = vadd.f32 %v3147, %v3516
      %v3575 = vadd.f32 %v3148, %v3521
      %v3576 = vadd.f32 %v3149, %v3526
      %v3577 = vadd.f32 %v3150, %v3531
      %v3578 = vadd.f32 %v3151, %v3536
      %v3579 = vadd.f32 %v3152, %v3541
      %v3580 = vld [vmem:[%s226 + $0x26] sm:$0xff]
      %v3581 = vld [vmem:[%s226 + $0x2e] sm:$0xff]
      %v3582 = vld [vmem:[%s226 + $0x36] sm:$0xff]
      %v3583 = vld [vmem:[%s226 + $0x3e] sm:$0xff]
      %v3584 = vld [vmem:[%s226 + $0x46] sm:$0xff]
      %v3585 = vld [vmem:[%s226 + $0x4e] sm:$0xff]
      %v3586 = vld [vmem:[%s226 + $0x56] sm:$0xff]
      %v3587 = vld [vmem:[%s226 + $0x5e] sm:$0xff]
      %v3588 = vld [vmem:[%s226 + $0x66] sm:$0xff]
      %v3589 = vld [vmem:[%s226 + $0x6e] sm:$0xff]
      %v3590 = vld [vmem:[%s226 + $0x76] sm:$0xff]
      %v3591 = vld [vmem:[%s226 + $0x7e] sm:$0xff]
      %v3592 = vld [vmem:[%s226 + $0x86] sm:$0xff]
      %v3593 = vld [vmem:[%s226 + $0x8e] sm:$0xff]
      %v3594 = vld [vmem:[%s226 + $0x96] sm:$0xff]
      %v3595 = vld [vmem:[%s226 + $0x9e] sm:$0xff]
      %v3596 = vld [vmem:[%s226 + $0xa6] sm:$0xff]
      %v3597 = vld [vmem:[%s226 + $0xae] sm:$0xff]
      %v3598 = vld [vmem:[%s226 + $0xb6] sm:$0xff]
      %v3599 = vld [vmem:[%s226 + $0xbe] sm:$0xff]
      %v3600 = vld [vmem:[%s226 + $0xc6] sm:$0xff]
      %v3601 = vld [vmem:[%s226 + $0xce] sm:$0xff]
      %v3602 = vld [vmem:[%s226 + $0xd6] sm:$0xff]
      %v3603 = vld [vmem:[%s226 + $0xde] sm:$0xff]
      %v3604 = vld [vmem:[%s226 + $0xe6] sm:$0xff]
      %v3605 = vld [vmem:[%s226 + $0xee] sm:$0xff]
      %v3606 = vld [vmem:[%s226 + $0xf6] sm:$0xff]
      %v3607 = vld [vmem:[%s226 + $0xfe] sm:$0xff]
      %v3608 = vld [vmem:[%s226 + $0x106] sm:$0xff]
      %v3609 = vld [vmem:[%s226 + $0x10e] sm:$0xff]
      %v3610 = vld [vmem:[%s226 + $0x116] sm:$0xff]
      %v3611 = vld [vmem:[%s226 + $0x11e] sm:$0xff]
      %v3612 = vld [vmem:[%s226 + $0x126] sm:$0xff]
      %v3613 = vld [vmem:[%s226 + $0x12e] sm:$0xff]
      %v3614 = vld [vmem:[%s226 + $0x136] sm:$0xff]
      %v3615 = vld [vmem:[%s226 + $0x13e] sm:$0xff]
      %s3616 = scalar_lea.vmem %s1, 64
      %v3617 = vld [vmem:[%s3616] sm:$0xff]
      %v3619 = vsel %vm311, %v3580, 0
      %v3622 = vsel %vm311, %v3581, 0
      %v3625 = vsel %vm311, %v3582, 0
      %v3628 = vsel %vm311, %v3583, 0
      %v3631 = vsel %vm311, %v3584, 0
      %v3634 = vsel %vm311, %v3585, 0
      %v3637 = vsel %vm311, %v3586, 0
      %v3640 = vsel %vm311, %v3587, 0
      %v3643 = vsel %vm311, %v3588, 0
      %v3646 = vsel %vm311, %v3589, 0
      %v3649 = vsel %vm311, %v3590, 0
      %v3652 = vsel %vm311, %v3591, 0
      %v3655 = vsel %vm311, %v3592, 0
      %v3658 = vsel %vm311, %v3593, 0
      %v3661 = vsel %vm311, %v3594, 0
      %v3664 = vsel %vm311, %v3595, 0
      %v3667 = vsel %vm311, %v3596, 0
      %v3670 = vsel %vm311, %v3597, 0
      %v3673 = vsel %vm311, %v3598, 0
      %v3676 = vsel %vm311, %v3599, 0
      %v3679 = vsel %vm311, %v3600, 0
      %v3682 = vsel %vm311, %v3601, 0
      %v3685 = vsel %vm311, %v3602, 0
      %v3688 = vsel %vm311, %v3603, 0
      %v3691 = vsel %vm311, %v3604, 0
      %v3694 = vsel %vm311, %v3605, 0
      %v3697 = vsel %vm311, %v3606, 0
      %v3700 = vsel %vm311, %v3607, 0
      %v3703 = vsel %vm311, %v3608, 0
      %v3706 = vsel %vm311, %v3609, 0
      %v3709 = vsel %vm311, %v3610, 0
      %v3712 = vsel %vm311, %v3611, 0
      %v3715 = vsel %vm311, %v3612, 0
      %v3718 = vsel %vm311, %v3613, 0
      %v3721 = vsel %vm311, %v3614, 0
      %v3724 = vsel %vm311, %v3615, 0
      %3726 = vmatprep.subr.mxu0 0.0
      %3727 = vmatpush1.msra.mxu0 %v3617
      %3728 = vmatprep.subr.mxu0 0.0
      %3729 = vmatpush1.msra.mxu0 0.0
      %3730 = vmatprep.subr.mxu0 0.0
      %3731 = vmatpush1.msra.mxu0 0.0
      %3732 = vmatprep.subr.mxu0 0.0
      %3733 = vmatpush1.msra.mxu0 0.0
      %3734 = vmatprep.subr.mxu0 0.0
      %3735 = vmatpush1.msra.mxu0 0.0
      %3736 = vmatprep.subr.mxu0 0.0
      %3737 = vmatpush1.msra.mxu0 0.0
      %3738 = vmatprep.subr.mxu0 0.0
      %3739 = vmatpush1.msra.mxu0 0.0
      %3740 = vmatprep.subr.mxu0 0.0
      %3741 = vmatpush1.msra.mxu0 0.0
      %3742 = vmatprep.subr.mxu0 0.0
      %3743 = vmatpush1.msra.mxu0 0.0
      %3744 = vmatprep.subr.mxu0 0.0
      %3745 = vmatpush1.msra.mxu0 0.0
      %3746 = vmatprep.subr.mxu0 0.0
      %3747 = vmatpush1.msra.mxu0 0.0
      %3748 = vmatprep.subr.mxu0 0.0
      %3749 = vmatpush1.msra.mxu0 0.0
      %3750 = vmatprep.subr.mxu0 0.0
      %3751 = vmatpush1.msra.mxu0 0.0
      %3752 = vmatprep.subr.mxu0 0.0
      %3753 = vmatpush1.msra.mxu0 0.0
      %3754 = vmatprep.subr.mxu0 0.0
      %3755 = vmatpush1.msra.mxu0 0.0
      %3756 = vmatprep.subr.mxu0 0.0
      %3757 = vmatpush1.msra.mxu0 0.0
      %3758 = vmatprep.subr.mxu0 0.0
      %3759 = vmatpush1.msra.mxu0 0.0
      %3760 = vmatprep.subr.mxu0 0.0
      %3761 = vmatpush1.msra.mxu0 0.0
      %3762 = vmatprep.subr.mxu0 0.0
      %3763 = vmatpush1.msra.mxu0 0.0
      %3764 = vmatprep.subr.mxu0 0.0
      %3765 = vmatpush1.msra.mxu0 0.0
      %3766 = vmatprep.subr.mxu0 0.0
      %3767 = vmatpush1.msra.mxu0 0.0
      %3768 = vmatprep.subr.mxu0 0.0
      %3769 = vmatpush1.msra.mxu0 0.0
      %3770 = vmatprep.subr.mxu0 0.0
      %3771 = vmatpush1.msra.mxu0 0.0
      %3772 = vmatprep.subr.mxu0 0.0
      %3773 = vmatpush1.msra.mxu0 0.0
      %3774 = vmatprep.subr.mxu0 0.0
      %3775 = vmatpush1.msra.mxu0 0.0
      %3776 = vmatprep.subr.mxu0 0.0
      %3777 = vmatpush1.msra.mxu0 0.0
      %3778 = vmatprep.subr.mxu0 0.0
      %3779 = vmatpush1.msra.mxu0 0.0
      %3780 = vmatprep.subr.mxu0 0.0
      %3781 = vmatpush1.msra.mxu0 0.0
      %3782 = vmatprep.subr.mxu0 0.0
      %3783 = vmatpush1.msra.mxu0 0.0
      %3784 = vmatprep.subr.mxu0 0.0
      %3785 = vmatpush1.msra.mxu0 0.0
      %3786 = vmatprep.subr.mxu0 0.0
      %3787 = vmatpush1.msra.mxu0 0.0
      %3788 = vmatprep.subr.mxu0 0.0
      %3789 = vmatpush1.msra.mxu0 0.0
      %3790 = vmatprep.mubr.f32.mxu0 0.0
      %3791 = vmatmul.mubr.f32.gmra.mrb[0].mxu0 %v3619
      %v3792 = vpop.f32.mrb[0].mxu0
      %v3793 = vadd.f32 0.0, %v3792
      %v3794 = vpop.f32.mrb[0].mxu0
      %3795 = vmatprep.mubr.f32.mxu0 0.0
      %3796 = vmatmul.mubr.f32.gmra.mrb[0].mxu0 %v3622
      %v3797 = vpop.f32.mrb[0].mxu0
      %v3798 = vadd.f32 0.0, %v3797
      %v3799 = vpop.f32.mrb[0].mxu0
      %3800 = vmatprep.mubr.f32.mxu0 0.0
      %3801 = vmatmul.mubr.f32.gmra.mrb[0].mxu0 %v3625
      %v3802 = vpop.f32.mrb[0].mxu0
      %v3803 = vadd.f32 0.0, %v3802
      %v3804 = vpop.f32.mrb[0].mxu0
      %3805 = vmatprep.mubr.f32.mxu0 0.0
      %3806 = vmatmul.mubr.f32.gmra.mrb[0].mxu0 %v3628
      %v3807 = vpop.f32.mrb[0].mxu0
      %v3808 = vadd.f32 0.0, %v3807
      %v3809 = vpop.f32.mrb[0].mxu0
      %3810 = vmatprep.mubr.f32.mxu0 0.0
      %3811 = vmatmul.mubr.f32.gmra.mrb[0].mxu0 %v3631
      %v3812 = vpop.f32.mrb[0].mxu0
      %v3813 = vadd.f32 0.0, %v3812
      %v3814 = vpop.f32.mrb[0].mxu0
      %3815 = vmatprep.mubr.f32.mxu0 0.0
      %3816 = vmatmul.mubr.f32.gmra.mrb[0].mxu0 %v3634
      %v3817 = vpop.f32.mrb[0].mxu0
      %v3818 = vadd.f32 0.0, %v3817
      %v3819 = vpop.f32.mrb[0].mxu0
      %3820 = vmatprep.mubr.f32.mxu0 0.0
      %3821 = vmatmul.mubr.f32.gmra.mrb[0].mxu0 %v3637
      %v3822 = vpop.f32.mrb[0].mxu0
      %v3823 = vadd.f32 0.0, %v3822
      %v3824 = vpop.f32.mrb[0].mxu0
      %3825 = vmatprep.mubr.f32.mxu0 0.0
      %3826 = vmatmul.mubr.f32.gmra.mrb[0].mxu0 %v3640
      %v3827 = vpop.f32.mrb[0].mxu0
      %v3828 = vadd.f32 0.0, %v3827
      %v3829 = vpop.f32.mrb[0].mxu0
      %3830 = vmatprep.mubr.f32.mxu0 0.0
      %3831 = vmatmul.mubr.f32.gmra.mrb[0].mxu0 %v3643
      %v3832 = vpop.f32.mrb[0].mxu0
      %v3833 = vadd.f32 0.0, %v3832
      %v3834 = vpop.f32.mrb[0].mxu0
      %3835 = vmatprep.mubr.f32.mxu0 0.0
      %3836 = vmatmul.mubr.f32.gmra.mrb[0].mxu0 %v3646
      %v3837 = vpop.f32.mrb[0].mxu0
      %v3838 = vadd.f32 0.0, %v3837
      %v3839 = vpop.f32.mrb[0].mxu0
      %3840 = vmatprep.mubr.f32.mxu0 0.0
      %3841 = vmatmul.mubr.f32.gmra.mrb[0].mxu0 %v3649
      %v3842 = vpop.f32.mrb[0].mxu0
      %v3843 = vadd.f32 0.0, %v3842
      %v3844 = vpop.f32.mrb[0].mxu0
      %3845 = vmatprep.mubr.f32.mxu0 0.0
      %3846 = vmatmul.mubr.f32.gmra.mrb[0].mxu0 %v3652
      %v3847 = vpop.f32.mrb[0].mxu0
      %v3848 = vadd.f32 0.0, %v3847
      %v3849 = vpop.f32.mrb[0].mxu0
      %3850 = vmatprep.mubr.f32.mxu0 0.0
      %3851 = vmatmul.mubr.f32.gmra.mrb[0].mxu0 %v3655
      %v3852 = vpop.f32.mrb[0].mxu0
      %v3853 = vadd.f32 0.0, %v3852
      %v3854 = vpop.f32.mrb[0].mxu0
      %3855 = vmatprep.mubr.f32.mxu0 0.0
      %3856 = vmatmul.mubr.f32.gmra.mrb[0].mxu0 %v3658
      %v3857 = vpop.f32.mrb[0].mxu0
      %v3858 = vadd.f32 0.0, %v3857
      %v3859 = vpop.f32.mrb[0].mxu0
      %3860 = vmatprep.mubr.f32.mxu0 0.0
      %3861 = vmatmul.mubr.f32.gmra.mrb[0].mxu0 %v3661
      %v3862 = vpop.f32.mrb[0].mxu0
      %v3863 = vadd.f32 0.0, %v3862
      %v3864 = vpop.f32.mrb[0].mxu0
      %3865 = vmatprep.mubr.f32.mxu0 0.0
      %3866 = vmatmul.mubr.f32.gmra.mrb[0].mxu0 %v3664
      %v3867 = vpop.f32.mrb[0].mxu0
      %v3868 = vadd.f32 0.0, %v3867
      %v3869 = vpop.f32.mrb[0].mxu0
      %3870 = vmatprep.mubr.f32.mxu0 0.0
      %3871 = vmatmul.mubr.f32.gmra.mrb[0].mxu0 %v3667
      %v3872 = vpop.f32.mrb[0].mxu0
      %v3873 = vadd.f32 0.0, %v3872
      %v3874 = vpop.f32.mrb[0].mxu0
      %3875 = vmatprep.mubr.f32.mxu0 0.0
      %3876 = vmatmul.mubr.f32.gmra.mrb[0].mxu0 %v3670
      %v3877 = vpop.f32.mrb[0].mxu0
      %v3878 = vadd.f32 0.0, %v3877
      %v3879 = vpop.f32.mrb[0].mxu0
      %3880 = vmatprep.mubr.f32.mxu0 0.0
      %3881 = vmatmul.mubr.f32.gmra.mrb[0].mxu0 %v3673
      %v3882 = vpop.f32.mrb[0].mxu0
      %v3883 = vadd.f32 0.0, %v3882
      %v3884 = vpop.f32.mrb[0].mxu0
      %3885 = vmatprep.mubr.f32.mxu0 0.0
      %3886 = vmatmul.mubr.f32.gmra.mrb[0].mxu0 %v3676
      %v3887 = vpop.f32.mrb[0].mxu0
      %v3888 = vadd.f32 0.0, %v3887
      %v3889 = vpop.f32.mrb[0].mxu0
      %3890 = vmatprep.mubr.f32.mxu0 0.0
      %3891 = vmatmul.mubr.f32.gmra.mrb[0].mxu0 %v3679
      %v3892 = vpop.f32.mrb[0].mxu0
      %v3893 = vadd.f32 0.0, %v3892
      %v3894 = vpop.f32.mrb[0].mxu0
      %3895 = vmatprep.mubr.f32.mxu0 0.0
      %3896 = vmatmul.mubr.f32.gmra.mrb[0].mxu0 %v3682
      %v3897 = vpop.f32.mrb[0].mxu0
      %v3898 = vadd.f32 0.0, %v3897
      %v3899 = vpop.f32.mrb[0].mxu0
      %3900 = vmatprep.mubr.f32.mxu0 0.0
      %3901 = vmatmul.mubr.f32.gmra.mrb[0].mxu0 %v3685
      %v3902 = vpop.f32.mrb[0].mxu0
      %v3903 = vadd.f32 0.0, %v3902
      %v3904 = vpop.f32.mrb[0].mxu0
      %3905 = vmatprep.mubr.f32.mxu0 0.0
      %3906 = vmatmul.mubr.f32.gmra.mrb[0].mxu0 %v3688
      %v3907 = vpop.f32.mrb[0].mxu0
      %v3908 = vadd.f32 0.0, %v3907
      %v3909 = vpop.f32.mrb[0].mxu0
      %3910 = vmatprep.mubr.f32.mxu0 0.0
      %3911 = vmatmul.mubr.f32.gmra.mrb[0].mxu0 %v3691
      %v3912 = vpop.f32.mrb[0].mxu0
      %v3913 = vadd.f32 0.0, %v3912
      %v3914 = vpop.f32.mrb[0].mxu0
      %3915 = vmatprep.mubr.f32.mxu0 0.0
      %3916 = vmatmul.mubr.f32.gmra.mrb[0].mxu0 %v3694
      %v3917 = vpop.f32.mrb[0].mxu0
      %v3918 = vadd.f32 0.0, %v3917
      %v3919 = vpop.f32.mrb[0].mxu0
      %3920 = vmatprep.mubr.f32.mxu0 0.0
      %3921 = vmatmul.mubr.f32.gmra.mrb[0].mxu0 %v3697
      %v3922 = vpop.f32.mrb[0].mxu0
      %v3923 = vadd.f32 0.0, %v3922
      %v3924 = vpop.f32.mrb[0].mxu0
      %3925 = vmatprep.mubr.f32.mxu0 0.0
      %3926 = vmatmul.mubr.f32.gmra.mrb[0].mxu0 %v3700
      %v3927 = vpop.f32.mrb[0].mxu0
      %v3928 = vadd.f32 0.0, %v3927
      %v3929 = vpop.f32.mrb[0].mxu0
      %3930 = vmatprep.mubr.f32.mxu0 0.0
      %3931 = vmatmul.mubr.f32.gmra.mrb[0].mxu0 %v3703
      %v3932 = vpop.f32.mrb[0].mxu0
      %v3933 = vadd.f32 0.0, %v3932
      %v3934 = vpop.f32.mrb[0].mxu0
      %3935 = vmatprep.mubr.f32.mxu0 0.0
      %3936 = vmatmul.mubr.f32.gmra.mrb[0].mxu0 %v3706
      %v3937 = vpop.f32.mrb[0].mxu0
      %v3938 = vadd.f32 0.0, %v3937
      %v3939 = vpop.f32.mrb[0].mxu0
      %3940 = vmatprep.mubr.f32.mxu0 0.0
      %3941 = vmatmul.mubr.f32.gmra.mrb[0].mxu0 %v3709
      %v3942 = vpop.f32.mrb[0].mxu0
      %v3943 = vadd.f32 0.0, %v3942
      %v3944 = vpop.f32.mrb[0].mxu0
      %3945 = vmatprep.mubr.f32.mxu0 0.0
      %3946 = vmatmul.mubr.f32.gmra.mrb[0].mxu0 %v3712
      %v3947 = vpop.f32.mrb[0].mxu0
      %v3948 = vadd.f32 0.0, %v3947
      %v3949 = vpop.f32.mrb[0].mxu0
      %3950 = vmatprep.mubr.f32.mxu0 0.0
      %3951 = vmatmul.mubr.f32.gmra.mrb[0].mxu0 %v3715
      %v3952 = vpop.f32.mrb[0].mxu0
      %v3953 = vadd.f32 0.0, %v3952
      %v3954 = vpop.f32.mrb[0].mxu0
      %3955 = vmatprep.mubr.f32.mxu0 0.0
      %3956 = vmatmul.mubr.f32.gmra.mrb[0].mxu0 %v3718
      %v3957 = vpop.f32.mrb[0].mxu0
      %v3958 = vadd.f32 0.0, %v3957
      %v3959 = vpop.f32.mrb[0].mxu0
      %3960 = vmatprep.mubr.f32.mxu0 0.0
      %3961 = vmatmul.mubr.f32.gmra.mrb[0].mxu0 %v3721
      %v3962 = vpop.f32.mrb[0].mxu0
      %v3963 = vadd.f32 0.0, %v3962
      %v3964 = vpop.f32.mrb[0].mxu0
      %3965 = vmatprep.mubr.f32.mxu0 0.0
      %3966 = vmatmul.mubr.f32.gmra.mrb[0].mxu0 %v3724
      %v3967 = vpop.f32.mrb[0].mxu0
      %v3968 = vadd.f32 0.0, %v3967
      %v3969 = vpop.f32.mrb[0].mxu0
      %3970 = vdwg.mxu0
      %v3971 = vadd.f32 %v3544, %v3793
      %v3972 = vadd.f32 %v3545, %v3798
      %v3973 = vadd.f32 %v3546, %v3803
      %v3974 = vadd.f32 %v3547, %v3808
      %v3975 = vadd.f32 %v3548, %v3813
      %v3976 = vadd.f32 %v3549, %v3818
      %v3977 = vadd.f32 %v3550, %v3823
      %v3978 = vadd.f32 %v3551, %v3828
      %v3979 = vadd.f32 %v3552, %v3833
      %v3980 = vadd.f32 %v3553, %v3838
      %v3981 = vadd.f32 %v3554, %v3843
      %v3982 = vadd.f32 %v3555, %v3848
      %v3983 = vadd.f32 %v3556, %v3853
      %v3984 = vadd.f32 %v3557, %v3858
      %v3985 = vadd.f32 %v3558, %v3863
      %v3986 = vadd.f32 %v3559, %v3868
      %v3987 = vadd.f32 %v3560, %v3873
      %v3988 = vadd.f32 %v3561, %v3878
      %v3989 = vadd.f32 %v3562, %v3883
      %v3990 = vadd.f32 %v3563, %v3888
      %v3991 = vadd.f32 %v3564, %v3893
      %v3992 = vadd.f32 %v3565, %v3898
      %v3993 = vadd.f32 %v3566, %v3903
      %v3994 = vadd.f32 %v3567, %v3908
      %v3995 = vadd.f32 %v3568, %v3913
      %v3996 = vadd.f32 %v3569, %v3918
      %v3997 = vadd.f32 %v3570, %v3923
      %v3998 = vadd.f32 %v3571, %v3928
      %v3999 = vadd.f32 %v3572, %v3933
      %v4000 = vadd.f32 %v3573, %v3938
      %v4001 = vadd.f32 %v3574, %v3943
      %v4002 = vadd.f32 %v3575, %v3948
      %v4003 = vadd.f32 %v3576, %v3953
      %v4004 = vadd.f32 %v3577, %v3958
      %v4005 = vadd.f32 %v3578, %v3963
      %v4006 = vadd.f32 %v3579, %v3968
      %v4007 = vld [vmem:[%s2] sm:$0x1]
      %v4009 = vlaneseq
      %v4010 = vshrl.u32 %v4009, 7
      %v4011 = vsub.s32 0, %v4010
      %v4012 = vrot.slane %v4007, %v4011
      %v4014 = vadd.f32 %v3971, %v4012
      %v4015 = vadd.f32 %v3972, %v4012
      %v4016 = vadd.f32 %v3973, %v4012
      %v4017 = vadd.f32 %v3974, %v4012
      %v4018 = vadd.f32 %v3975, %v4012
      %v4019 = vadd.f32 %v3976, %v4012
      %v4020 = vadd.f32 %v3977, %v4012
      %v4021 = vadd.f32 %v3978, %v4012
      %v4022 = vadd.f32 %v3979, %v4012
      %v4023 = vadd.f32 %v3980, %v4012
      %v4024 = vadd.f32 %v3981, %v4012
      %v4025 = vadd.f32 %v3982, %v4012
      %v4026 = vadd.f32 %v3983, %v4012
      %v4027 = vadd.f32 %v3984, %v4012
      %v4028 = vadd.f32 %v3985, %v4012
      %v4029 = vadd.f32 %v3986, %v4012
      %v4030 = vadd.f32 %v3987, %v4012
      %v4031 = vadd.f32 %v3988, %v4012
      %v4032 = vadd.f32 %v3989, %v4012
      %v4033 = vadd.f32 %v3990, %v4012
      %v4034 = vadd.f32 %v3991, %v4012
      %v4035 = vadd.f32 %v3992, %v4012
      %v4036 = vadd.f32 %v3993, %v4012
      %v4037 = vadd.f32 %v3994, %v4012
      %v4038 = vadd.f32 %v3995, %v4012
      %v4039 = vadd.f32 %v3996, %v4012
      %v4040 = vadd.f32 %v3997, %v4012
      %v4041 = vadd.f32 %v3998, %v4012
      %v4042 = vadd.f32 %v3999, %v4012
      %v4043 = vadd.f32 %v4000, %v4012
      %v4044 = vadd.f32 %v4001, %v4012
      %v4045 = vadd.f32 %v4002, %v4012
      %v4046 = vadd.f32 %v4003, %v4012
      %v4047 = vadd.f32 %v4004, %v4012
      %v4048 = vadd.f32 %v4005, %v4012
      %v4049 = vadd.f32 %v4006, %v4012
      %4050 = vst [vmem:[%s231] sm:$0xff] %v4014
      %4051 = vst [vmem:[%s231 + $0x8] sm:$0xff] %v4015
      %4052 = vst [vmem:[%s231 + $0x10] sm:$0xff] %v4016
      %4053 = vst [vmem:[%s231 + $0x18] sm:$0xff] %v4017
      %4054 = vst [vmem:[%s231 + $0x20] sm:$0xff] %v4018
      %4055 = vst [vmem:[%s231 + $0x28] sm:$0xff] %v4019
      %4056 = vst [vmem:[%s231 + $0x30] sm:$0xff] %v4020
      %4057 = vst [vmem:[%s231 + $0x38] sm:$0xff] %v4021
      %4058 = vst [vmem:[%s231 + $0x40] sm:$0xff] %v4022
      %4059 = vst [vmem:[%s231 + $0x48] sm:$0xff] %v4023
      %4060 = vst [vmem:[%s231 + $0x50] sm:$0xff] %v4024
      %4061 = vst [vmem:[%s231 + $0x58] sm:$0xff] %v4025
      %4062 = vst [vmem:[%s231 + $0x60] sm:$0xff] %v4026
      %4063 = vst [vmem:[%s231 + $0x68] sm:$0xff] %v4027
      %4064 = vst [vmem:[%s231 + $0x70] sm:$0xff] %v4028
      %4065 = vst [vmem:[%s231 + $0x78] sm:$0xff] %v4029
      %4066 = vst [vmem:[%s231 + $0x80] sm:$0xff] %v4030
      %4067 = vst [vmem:[%s231 + $0x88] sm:$0xff] %v4031
      %4068 = vst [vmem:[%s231 + $0x90] sm:$0xff] %v4032
      %4069 = vst [vmem:[%s231 + $0x98] sm:$0xff] %v4033
      %4070 = vst [vmem:[%s231 + $0xa0] sm:$0xff] %v4034
      %4071 = vst [vmem:[%s231 + $0xa8] sm:$0xff] %v4035
      %4072 = vst [vmem:[%s231 + $0xb0] sm:$0xff] %v4036
      %4073 = vst [vmem:[%s231 + $0xb8] sm:$0xff] %v4037
      %4074 = vst [vmem:[%s231 + $0xc0] sm:$0xff] %v4038
      %4075 = vst [vmem:[%s231 + $0xc8] sm:$0xff] %v4039
      %4076 = vst [vmem:[%s231 + $0xd0] sm:$0xff] %v4040
      %4077 = vst [vmem:[%s231 + $0xd8] sm:$0xff] %v4041
      %4078 = vst [vmem:[%s231 + $0xe0] sm:$0xff] %v4042
      %4079 = vst [vmem:[%s231 + $0xe8] sm:$0xff] %v4043
      %4080 = vst [vmem:[%s231 + $0xf0] sm:$0xff] %v4044
      %4081 = vst [vmem:[%s231 + $0xf8] sm:$0xff] %v4045
      %4082 = vst [vmem:[%s231 + $0x100] sm:$0xff] %v4046
      %4083 = vst [vmem:[%s231 + $0x108] sm:$0xff] %v4047
      %4084 = vst [vmem:[%s231 + $0x110] sm:$0xff] %v4048
      %4085 = vst [vmem:[%s231 + $0x118] sm:$0xff] %v4049
      %v4086 = vld [vmem:[%s3] sm:$0xff]
      %v4087 = vld [vmem:[%s3 + $0x8] sm:$0xff]
      %v4088 = vld [vmem:[%s3 + $0x10] sm:$0xff]
      %v4089 = vld [vmem:[%s3 + $0x18] sm:$0xff]
      %v4090 = vld [vmem:[%s3 + $0x20] sm:$0xff]
      %v4091 = vld [vmem:[%s3 + $0x28] sm:$0xff]
      %v4092 = vld [vmem:[%s3 + $0x30] sm:$0xff]
      %v4093 = vld [vmem:[%s3 + $0x38] sm:$0xff]
      %v4094 = vld [vmem:[%s3 + $0x40] sm:$0xff]
      %v4095 = vld [vmem:[%s3 + $0x48] sm:$0xff]
      %v4096 = vld [vmem:[%s3 + $0x50] sm:$0xff]
      %v4097 = vld [vmem:[%s3 + $0x58] sm:$0xff]
      %v4098 = vld [vmem:[%s3 + $0x60] sm:$0xff]
      %v4099 = vld [vmem:[%s3 + $0x68] sm:$0xff]
      %v4100 = vld [vmem:[%s3 + $0x70] sm:$0xff]
      %v4101 = vld [vmem:[%s3 + $0x78] sm:$0xff]
      %v4102 = vld [vmem:[%s3 + $0x80] sm:$0xff]
      %v4103 = vld [vmem:[%s3 + $0x88] sm:$0xff]
      %v4104 = vld [vmem:[%s3 + $0x90] sm:$0xff]
      %v4105 = vld [vmem:[%s3 + $0x98] sm:$0xff]
      %v4106 = vld [vmem:[%s3 + $0xa0] sm:$0xff]
      %v4107 = vld [vmem:[%s3 + $0xa8] sm:$0xff]
      %v4108 = vld [vmem:[%s3 + $0xb0] sm:$0xff]
      %v4109 = vld [vmem:[%s3 + $0xb8] sm:$0xff]
      %v4110 = vld [vmem:[%s3 + $0xc0] sm:$0xff]
      %v4111 = vld [vmem:[%s3 + $0xc8] sm:$0xff]
      %v4112 = vld [vmem:[%s3 + $0xd0] sm:$0xff]
      %v4113 = vld [vmem:[%s3 + $0xd8] sm:$0xff]
      %v4114 = vld [vmem:[%s3 + $0xe0] sm:$0xff]
      %v4115 = vld [vmem:[%s3 + $0xe8] sm:$0xff]
      %v4116 = vld [vmem:[%s3 + $0xf0] sm:$0xff]
      %v4117 = vld [vmem:[%s3 + $0xf8] sm:$0xff]
      %v4118 = vld [vmem:[%s3 + $0x100] sm:$0xff]
      %v4119 = vld [vmem:[%s3 + $0x108] sm:$0xff]
      %v4120 = vld [vmem:[%s3 + $0x110] sm:$0xff]
      %v4121 = vld [vmem:[%s3 + $0x118] sm:$0xff]
      %4123 = vset.pattern.permute.xlu0 0
      %4124 = vperm.xlu0 %4123, %v4086
      %v4125 = vpop.permute.xlu0 %4124
      %4128 = vset.pattern.permute.xlu0 0
      %4129 = vperm.xlu0 %4128, %v4087
      %v4130 = vpop.permute.xlu0 %4129
      %4133 = vset.pattern.permute.xlu0 0
      %4134 = vperm.xlu0 %4133, %v4088
      %v4135 = vpop.permute.xlu0 %4134
      %4138 = vset.pattern.permute.xlu0 0
      %4139 = vperm.xlu0 %4138, %v4089
      %v4140 = vpop.permute.xlu0 %4139
      %4143 = vset.pattern.permute.xlu0 0
      %4144 = vperm.xlu0 %4143, %v4090
      %v4145 = vpop.permute.xlu0 %4144
      %4148 = vset.pattern.permute.xlu0 0
      %4149 = vperm.xlu0 %4148, %v4091
      %v4150 = vpop.permute.xlu0 %4149
      %4153 = vset.pattern.permute.xlu0 0
      %4154 = vperm.xlu0 %4153, %v4092
      %v4155 = vpop.permute.xlu0 %4154
      %4158 = vset.pattern.permute.xlu0 0
      %4159 = vperm.xlu0 %4158, %v4093
      %v4160 = vpop.permute.xlu0 %4159
      %4163 = vset.pattern.permute.xlu0 0
      %4164 = vperm.xlu0 %4163, %v4094
      %v4165 = vpop.permute.xlu0 %4164
      %4168 = vset.pattern.permute.xlu0 0
      %4169 = vperm.xlu0 %4168, %v4095
      %v4170 = vpop.permute.xlu0 %4169
      %4173 = vset.pattern.permute.xlu0 0
      %4174 = vperm.xlu0 %4173, %v4096
      %v4175 = vpop.permute.xlu0 %4174
      %4178 = vset.pattern.permute.xlu0 0
      %4179 = vperm.xlu0 %4178, %v4097
      %v4180 = vpop.permute.xlu0 %4179
      %4183 = vset.pattern.permute.xlu0 0
      %4184 = vperm.xlu0 %4183, %v4098
      %v4185 = vpop.permute.xlu0 %4184
      %4188 = vset.pattern.permute.xlu0 0
      %4189 = vperm.xlu0 %4188, %v4099
      %v4190 = vpop.permute.xlu0 %4189
      %4193 = vset.pattern.permute.xlu0 0
      %4194 = vperm.xlu0 %4193, %v4100
      %v4195 = vpop.permute.xlu0 %4194
      %4198 = vset.pattern.permute.xlu0 0
      %4199 = vperm.xlu0 %4198, %v4101
      %v4200 = vpop.permute.xlu0 %4199
      %4203 = vset.pattern.permute.xlu0 0
      %4204 = vperm.xlu0 %4203, %v4102
      %v4205 = vpop.permute.xlu0 %4204
      %4208 = vset.pattern.permute.xlu0 0
      %4209 = vperm.xlu0 %4208, %v4103
      %v4210 = vpop.permute.xlu0 %4209
      %4213 = vset.pattern.permute.xlu0 0
      %4214 = vperm.xlu0 %4213, %v4104
      %v4215 = vpop.permute.xlu0 %4214
      %4218 = vset.pattern.permute.xlu0 0
      %4219 = vperm.xlu0 %4218, %v4105
      %v4220 = vpop.permute.xlu0 %4219
      %4223 = vset.pattern.permute.xlu0 0
      %4224 = vperm.xlu0 %4223, %v4106
      %v4225 = vpop.permute.xlu0 %4224
      %4228 = vset.pattern.permute.xlu0 0
      %4229 = vperm.xlu0 %4228, %v4107
      %v4230 = vpop.permute.xlu0 %4229
      %4233 = vset.pattern.permute.xlu0 0
      %4234 = vperm.xlu0 %4233, %v4108
      %v4235 = vpop.permute.xlu0 %4234
      %4238 = vset.pattern.permute.xlu0 0
      %4239 = vperm.xlu0 %4238, %v4109
      %v4240 = vpop.permute.xlu0 %4239
      %4243 = vset.pattern.permute.xlu0 0
      %4244 = vperm.xlu0 %4243, %v4110
      %v4245 = vpop.permute.xlu0 %4244
      %4248 = vset.pattern.permute.xlu0 0
      %4249 = vperm.xlu0 %4248, %v4111
      %v4250 = vpop.permute.xlu0 %4249
      %4253 = vset.pattern.permute.xlu0 0
      %4254 = vperm.xlu0 %4253, %v4112
      %v4255 = vpop.permute.xlu0 %4254
      %4258 = vset.pattern.permute.xlu0 0
      %4259 = vperm.xlu0 %4258, %v4113
      %v4260 = vpop.permute.xlu0 %4259
      %4263 = vset.pattern.permute.xlu0 0
      %4264 = vperm.xlu0 %4263, %v4114
      %v4265 = vpop.permute.xlu0 %4264
      %4268 = vset.pattern.permute.xlu0 0
      %4269 = vperm.xlu0 %4268, %v4115
      %v4270 = vpop.permute.xlu0 %4269
      %4273 = vset.pattern.permute.xlu0 0
      %4274 = vperm.xlu0 %4273, %v4116
      %v4275 = vpop.permute.xlu0 %4274
      %4278 = vset.pattern.permute.xlu0 0
      %4279 = vperm.xlu0 %4278, %v4117
      %v4280 = vpop.permute.xlu0 %4279
      %4283 = vset.pattern.permute.xlu0 0
      %4284 = vperm.xlu0 %4283, %v4118
      %v4285 = vpop.permute.xlu0 %4284
      %4288 = vset.pattern.permute.xlu0 0
      %4289 = vperm.xlu0 %4288, %v4119
      %v4290 = vpop.permute.xlu0 %4289
      %4293 = vset.pattern.permute.xlu0 0
      %4294 = vperm.xlu0 %4293, %v4120
      %v4295 = vpop.permute.xlu0 %4294
      %4298 = vset.pattern.permute.xlu0 0
      %4299 = vperm.xlu0 %4298, %v4121
      %v4300 = vpop.permute.xlu0 %4299
      %v4302 = vmul.f32 %v4014, %v4125
      %v4303 = vmul.f32 %v4015, %v4130
      %v4304 = vmul.f32 %v4016, %v4135
      %v4305 = vmul.f32 %v4017, %v4140
      %v4306 = vmul.f32 %v4018, %v4145
      %v4307 = vmul.f32 %v4019, %v4150
      %v4308 = vmul.f32 %v4020, %v4155
      %v4309 = vmul.f32 %v4021, %v4160
      %v4310 = vmul.f32 %v4022, %v4165
      %v4311 = vmul.f32 %v4023, %v4170
      %v4312 = vmul.f32 %v4024, %v4175
      %v4313 = vmul.f32 %v4025, %v4180
      %v4314 = vmul.f32 %v4026, %v4185
      %v4315 = vmul.f32 %v4027, %v4190
      %v4316 = vmul.f32 %v4028, %v4195
      %v4317 = vmul.f32 %v4029, %v4200
      %v4318 = vmul.f32 %v4030, %v4205
      %v4319 = vmul.f32 %v4031, %v4210
      %v4320 = vmul.f32 %v4032, %v4215
      %v4321 = vmul.f32 %v4033, %v4220
      %v4322 = vmul.f32 %v4034, %v4225
      %v4323 = vmul.f32 %v4035, %v4230
      %v4324 = vmul.f32 %v4036, %v4235
      %v4325 = vmul.f32 %v4037, %v4240
      %v4326 = vmul.f32 %v4038, %v4245
      %v4327 = vmul.f32 %v4039, %v4250
      %v4328 = vmul.f32 %v4040, %v4255
      %v4329 = vmul.f32 %v4041, %v4260
      %v4330 = vmul.f32 %v4042, %v4265
      %v4331 = vmul.f32 %v4043, %v4270
      %v4332 = vmul.f32 %v4044, %v4275
      %v4333 = vmul.f32 %v4045, %v4280
      %v4334 = vmul.f32 %v4046, %v4285
      %v4335 = vmul.f32 %v4047, %v4290
      %v4336 = vmul.f32 %v4048, %v4295
      %v4337 = vmul.f32 %v4049, %v4300
      %v4338 = vadd.f32 %v4302, %v4303
      %v4339 = vadd.f32 %v4338, %v4304
      %v4340 = vadd.f32 %v4339, %v4305
      %v4341 = vadd.f32 %v4340, %v4306
      %v4342 = vadd.f32 %v4341, %v4307
      %v4343 = vadd.f32 %v4342, %v4308
      %v4344 = vadd.f32 %v4343, %v4309
      %v4345 = vadd.f32 %v4344, %v4310
      %v4346 = vadd.f32 %v4345, %v4311
      %v4347 = vadd.f32 %v4346, %v4312
      %v4348 = vadd.f32 %v4347, %v4313
      %v4349 = vadd.f32 %v4348, %v4314
      %v4350 = vadd.f32 %v4349, %v4315
      %v4351 = vadd.f32 %v4350, %v4316
      %v4352 = vadd.f32 %v4351, %v4317
      %v4353 = vadd.f32 %v4352, %v4318
      %v4354 = vadd.f32 %v4353, %v4319
      %v4355 = vadd.f32 %v4354, %v4320
      %v4356 = vadd.f32 %v4355, %v4321
      %v4357 = vadd.f32 %v4356, %v4322
      %v4358 = vadd.f32 %v4357, %v4323
      %v4359 = vadd.f32 %v4358, %v4324
      %v4360 = vadd.f32 %v4359, %v4325
      %v4361 = vadd.f32 %v4360, %v4326
      %v4362 = vadd.f32 %v4361, %v4327
      %v4363 = vadd.f32 %v4362, %v4328
      %v4364 = vadd.f32 %v4363, %v4329
      %v4365 = vadd.f32 %v4364, %v4330
      %v4366 = vadd.f32 %v4365, %v4331
      %v4367 = vadd.f32 %v4366, %v4332
      %v4368 = vadd.f32 %v4367, %v4333
      %v4369 = vadd.f32 %v4368, %v4334
      %v4370 = vadd.f32 %v4369, %v4335
      %v4371 = vadd.f32 %v4370, %v4336
      %v4372 = vadd.f32 %v4371, %v4337
      %v4373 = vrot.slane %v4372, 4
      %v4374 = vadd.f32 %v4372, %v4373
      %v4375 = vrot.slane %v4374, 2
      %v4376 = vadd.f32 %v4374, %v4375
      %v4377 = vrot.slane %v4376, 1
      %v4378 = vadd.f32 %v4376, %v4377
      %v4379 = vmul.f32 %v4302, %v4302
      %v4380 = vmul.f32 %v4303, %v4303
      %v4381 = vmul.f32 %v4304, %v4304
      %v4382 = vmul.f32 %v4305, %v4305
      %v4383 = vmul.f32 %v4306, %v4306
      %v4384 = vmul.f32 %v4307, %v4307
      %v4385 = vmul.f32 %v4308, %v4308
      %v4386 = vmul.f32 %v4309, %v4309
      %v4387 = vmul.f32 %v4310, %v4310
      %v4388 = vmul.f32 %v4311, %v4311
      %v4389 = vmul.f32 %v4312, %v4312
      %v4390 = vmul.f32 %v4313, %v4313
      %v4391 = vmul.f32 %v4314, %v4314
      %v4392 = vmul.f32 %v4315, %v4315
      %v4393 = vmul.f32 %v4316, %v4316
      %v4394 = vmul.f32 %v4317, %v4317
      %v4395 = vmul.f32 %v4318, %v4318
      %v4396 = vmul.f32 %v4319, %v4319
      %v4397 = vmul.f32 %v4320, %v4320
      %v4398 = vmul.f32 %v4321, %v4321
      %v4399 = vmul.f32 %v4322, %v4322
      %v4400 = vmul.f32 %v4323, %v4323
      %v4401 = vmul.f32 %v4324, %v4324
      %v4402 = vmul.f32 %v4325, %v4325
      %v4403 = vmul.f32 %v4326, %v4326
      %v4404 = vmul.f32 %v4327, %v4327
      %v4405 = vmul.f32 %v4328, %v4328
      %v4406 = vmul.f32 %v4329, %v4329
      %v4407 = vmul.f32 %v4330, %v4330
      %v4408 = vmul.f32 %v4331, %v4331
      %v4409 = vmul.f32 %v4332, %v4332
      %v4410 = vmul.f32 %v4333, %v4333
      %v4411 = vmul.f32 %v4334, %v4334
      %v4412 = vmul.f32 %v4335, %v4335
      %v4413 = vmul.f32 %v4336, %v4336
      %v4414 = vmul.f32 %v4337, %v4337
      %v4415 = vadd.f32 %v4379, %v4380
      %v4416 = vadd.f32 %v4415, %v4381
      %v4417 = vadd.f32 %v4416, %v4382
      %v4418 = vadd.f32 %v4417, %v4383
      %v4419 = vadd.f32 %v4418, %v4384
      %v4420 = vadd.f32 %v4419, %v4385
      %v4421 = vadd.f32 %v4420, %v4386
      %v4422 = vadd.f32 %v4421, %v4387
      %v4423 = vadd.f32 %v4422, %v4388
      %v4424 = vadd.f32 %v4423, %v4389
      %v4425 = vadd.f32 %v4424, %v4390
      %v4426 = vadd.f32 %v4425, %v4391
      %v4427 = vadd.f32 %v4426, %v4392
      %v4428 = vadd.f32 %v4427, %v4393
      %v4429 = vadd.f32 %v4428, %v4394
      %v4430 = vadd.f32 %v4429, %v4395
      %v4431 = vadd.f32 %v4430, %v4396
      %v4432 = vadd.f32 %v4431, %v4397
      %v4433 = vadd.f32 %v4432, %v4398
      %v4434 = vadd.f32 %v4433, %v4399
      %v4435 = vadd.f32 %v4434, %v4400
      %v4436 = vadd.f32 %v4435, %v4401
      %v4437 = vadd.f32 %v4436, %v4402
      %v4438 = vadd.f32 %v4437, %v4403
      %v4439 = vadd.f32 %v4438, %v4404
      %v4440 = vadd.f32 %v4439, %v4405
      %v4441 = vadd.f32 %v4440, %v4406
      %v4442 = vadd.f32 %v4441, %v4407
      %v4443 = vadd.f32 %v4442, %v4408
      %v4444 = vadd.f32 %v4443, %v4409
      %v4445 = vadd.f32 %v4444, %v4410
      %v4446 = vadd.f32 %v4445, %v4411
      %v4447 = vadd.f32 %v4446, %v4412
      %v4448 = vadd.f32 %v4447, %v4413
      %v4449 = vadd.f32 %v4448, %v4414
      %v4450 = vrot.slane %v4449, 4
      %v4451 = vadd.f32 %v4449, %v4450
      %v4452 = vrot.slane %v4451, 2
      %v4453 = vadd.f32 %v4451, %v4452
      %v4454 = vrot.slane %v4453, 1
      %v4455 = vadd.f32 %v4453, %v4454
      %vm4456 = vcmask 1040384
      %v4457 = vsel %vm4456, %v4378, %v4455
      %4458 = vst [vmem:[%s235] sm:$0x3] %v4457
      %p4459 = scmp.lt.s32.totalorder %s17, 1
      %s4460 = scalar_select %p4459, %s17, 1
      %s4461 = smul.addr %s4460, 36
      %s4462 = smul.addr %s4461, 8
      %s4463 = scalar_lea.vmem %s4, %s4462
      %p4464 = scmp.lt.s32.totalorder %s17, 1
      %s4465 = scalar_select %p4464, %s17, 1
      %s4466 = smul.addr %s4465, 2
      %s4467 = scalar_lea.vmem %s5, %s4466
      // Predicated region
      $region37: #{regular_forward.2} parent=35 // pred_check
        %p4468 = pneg %p124
      $region38: #{regular_forward.2} parent=35 // pred_check_branch
        %4470 = sbr.rel (%p4468) target = $region40
      $region39: #{regular_forward.2} parent=35 // pred_region
        _
      $region40: #{regular_forward.2} parent=35 // pred_fallthru
        _
      // Predicated region
      $region41: #{regular_forward.2} parent=35 // pred_check
        %p4471 = pneg %p150
      $region42: #{regular_forward.2} parent=35 // pred_check_branch
        %4473 = sbr.rel (%p4471) target = $region44
      $region43: #{regular_forward.2} parent=35 // pred_region
        _
      $region44: #{regular_forward.2} parent=35 // pred_fallthru
        _
    $region36: #{regular_forward.2} parent=5 // pred_fallthru
      _
    %p4474 = scmp.le.s32.totalorder 2, %s12
    // Predicated region
    $region45: #{regular_forward.2} parent=5 // pred_check
      %p4475 = pneg %p4474
    $region46: #{regular_forward.2} parent=5 // pred_check_branch
      %4477 = sbr.rel (%p4475) target = $region48
    $region47: #{regular_forward.2} parent=5 // pred_region
      %s4478 = ssub.s32 %s12, 2
      // Predicated region
      $region49: #{regular_forward.2} parent=47 // pred_check
        %p4479 = pneg %p130
      $region50: #{regular_forward.2} parent=47 // pred_check_branch
        %4481 = sbr.rel (%p4479) target = $region52
      $region51: #{regular_forward.2} parent=47 // pred_region
        %p4482 = scmp.lt.s32.totalorder %s18, 1
        %s4483 = scalar_select %p4482, %s18, 1
        %s4484 = smul.addr %s4483, 36
        %s4485 = smul.addr %s4484, 8
        %s4486 = scalar_lea.vmem %s4, %s4485
      $region52: #{regular_forward.2} parent=47 // pred_fallthru
        _
      // Predicated region
      $region53: #{regular_forward.2} parent=47 // pred_check
        %p4487 = pneg %p156
      $region54: #{regular_forward.2} parent=47 // pred_check_branch
        %4489 = sbr.rel (%p4487) target = $region56
      $region55: #{regular_forward.2} parent=47 // pred_region
        %p4490 = scmp.lt.s32.totalorder %s18, 1
        %s4491 = scalar_select %p4490, %s18, 1
        %s4492 = smul.addr %s4491, 2
        %s4493 = scalar_lea.vmem %s5, %s4492
      $region56: #{regular_forward.2} parent=47 // pred_fallthru
        _
    $region48: #{regular_forward.2} parent=5 // pred_fallthru
      _
  $region6: #{regular_forward.2} parent=0 // loop_footer
    %s16 = sadd.s32 1, %s12
  $region7: #{regular_forward.2} parent=0 // loop_footer_branch
    %11 = sbr.rel target = $region3
  $region8: #{regular_forward.2} parent=0 // loop_exit
    _

</llo_original>
